<compile_context>
chip_gen: v7x
topology: tpu7x:2x2x1
jax: 0.10.0
libtpu: 0.0.40
codegen_flags: <defaults>
</compile_context>

<pallas_src>
import functools

import numpy as np
import jax
import jax.numpy as jnp
from jax.experimental import pallas as pl
from jax.experimental.pallas import tpu as pltpu


def _pair(v):
    if isinstance(v, (tuple, list)):
        return int(v[0]), int(v[1])
    return int(v), int(v)


def _round_up(x, m):
    return ((x + m - 1) // m) * m


def _deconv_kernel(w_ref, b_ref, xd_ref, o_ref, col_ref, *,
                   kh, kw, cin, wd, m, apply_relu):
    """One grid step == one batch element, all channels.

    w_ref:   (Cout, kH*kW*Cin)  fused, spatially-flipped weights (constant map)
    b_ref:   (Cout, 1)          bias (constant map)
    xd_ref:  (Cin, Lpad)        dilated+padded input, spatial flattened (lanes)
    o_ref:   (Cout, Mpad)       "wide" output rows (OH x Wd), lane-dense
    col_ref: (kH*kW*Cin, Mpad)  VMEM scratch: im2col via static shifted slices
    """
    # im2col by contiguous static slices of the flattened dilated input:
    # col[(k, ci), m] = xd[ci, m + kh'*Wd + kw']  (k = kh'*kW + kw').
    for k in range(kh * kw):                     # static unroll, kH*kW is small
        r, c = divmod(k, kw)
        dk = r * wd + c                          # static lane offset of tap k
        col_ref[k * cin:(k + 1) * cin, :] = xd_ref[:, dk:dk + m]

    # Single fused MXU matmul: contraction depth kH*kW*Cin, f32 accumulate,
    # explicit HIGHEST precision (matches the f32 reference conv).
    acc = jnp.dot(w_ref[...], col_ref[...],
                  preferred_element_type=jnp.float32,
                  precision=jax.lax.Precision.HIGHEST)
    acc = acc + b_ref[...]
    if apply_relu:
        acc = jnp.maximum(acc, 0.0)
    o_ref[...] = acc.astype(o_ref.dtype)


def deconv_layer_forward(x, weight, bias, stride, padding, output_padding,
                         is_last=False):
    """Forward of DeConvLayer: ConvTranspose2d(x), then ReLU unless is_last.

    x:      (N, Cin, H, W)        NCHW, like PyTorch
    weight: (Cin, Cout, kH, kW)   PyTorch ConvTranspose2d layout
    bias:   (Cout,)
    """
    N, Cin, H, W = x.shape
    Cin_w, Cout, kH, kW = weight.shape
    assert Cin == Cin_w, "weight in_channels mismatch"
    sH, sW = _pair(stride)
    pH, pW = _pair(padding)
    opH, opW = _pair(output_padding)
    assert 0 <= opH < sH and 0 <= opW < sW, "output_padding must be < stride"

    OH = (H - 1) * sH - 2 * pH + kH + opH
    OW = (W - 1) * sW - 2 * pW + kW + opW
    assert OH > 0 and OW > 0, "non-positive output size"

    KK = kH * kW
    Hd, Wd = OH + kH - 1, OW + kW - 1            # dilated+padded input extent
    M = OH * Wd                                  # "wide" flattened output rows
    Mpad = _round_up(M, 128)                     # lane-dense output width
    dk_max = (kH - 1) * Wd + (kW - 1)
    Lpad = dk_max + Mpad                         # flattened input length needed

    # ---- wrapper-side layout plumbing (zero-insertion only, no FLOPs) ----
    # Interior-dilate by (stride-1) and pad/crop by (k-1-p, k-1-p+op) so that a
    # stride-1 correlation with the flipped kernel equals ConvTranspose2d.
    zero = jnp.zeros((), x.dtype)
    xd = jax.lax.pad(
        x, zero,
        ((0, 0, 0), (0, 0, 0),
         (kH - 1 - pH, kH - 1 - pH + opH, sH - 1),
         (kW - 1 - pW, kW - 1 - pW + opW, sW - 1)))            # (N, Cin, Hd, Wd)
    xd_flat = xd.reshape(N, Cin, Hd * Wd)
    xd_flat = jnp.pad(xd_flat, ((0, 0), (0, 0), (0, Lpad - Hd * Wd)))

    # Fused, spatially-flipped weight: Wfused[co, (kh*kW+kw)*Cin + ci]
    #   = W[ci, co, kH-1-kh, kW-1-kw]
    wf = jnp.flip(weight, axis=(2, 3))                          # (Cin,Cout,kH,kW)
    wf = jnp.transpose(wf, (1, 2, 3, 0)).reshape(Cout, KK * Cin)
    b2d = bias.reshape(Cout, 1).astype(jnp.float32)

    flops = int(N * 2 * Cout * KK * Cin * Mpad)
    bytes_accessed = int(4 * (wf.size + b2d.size
                              + N * Cin * Lpad + N * Cout * Mpad))

    kernel = functools.partial(_deconv_kernel, kh=kH, kw=kW, cin=Cin, wd=Wd,
                               m=Mpad, apply_relu=not is_last)

    out_wide = pl.pallas_call(
        kernel,
        out_shape=jax.ShapeDtypeStruct((N, Cout, Mpad), x.dtype),
        grid_spec=pltpu.PrefetchScalarGridSpec(
            num_scalar_prefetch=0,
            grid=(N,),
            in_specs=[
                pl.BlockSpec((Cout, KK * Cin), lambda n: (0, 0)),   # weights
                pl.BlockSpec((Cout, 1), lambda n: (0, 0)),          # bias
                pl.BlockSpec((None, Cin, Lpad), lambda n: (n, 0, 0)),  # x (1 batch)
            ],
            out_specs=pl.BlockSpec((None, Cout, Mpad), lambda n: (n, 0, 0)),
            scratch_shapes=[pltpu.VMEM((KK * Cin, Mpad), jnp.float32)],
        ),
        compiler_params=pltpu.CompilerParams(
            dimension_semantics=("parallel",),
            vmem_limit_bytes=32 * 1024 * 1024,
        ),
        cost_estimate=pl.CostEstimate(
            flops=flops, transcendentals=0, bytes_accessed=bytes_accessed),
    )(wf, b2d, xd_flat)

    # Crop the 128-pad and the "wide" columns; result is already NCHW.
    return out_wide[:, :, :M].reshape(N, Cout, OH, Wd)[:, :, :, :OW]


def _reference(x, weight, bias, stride, padding, output_padding, is_last):
    """Plain-JAX reference for ConvTranspose2d (+ ReLU unless is_last)."""
    sH, sW = _pair(stride)
    pH, pW = _pair(padding)
    opH, opW = _pair(output_padding)
    kH, kW = weight.shape[2], weight.shape[3]
    w_conv = jnp.transpose(jnp.flip(weight, axis=(2, 3)), (1, 0, 2, 3))
    out = jax.lax.conv_general_dilated(
        x, w_conv,
        window_strides=(1, 1),
        padding=((kH - 1 - pH, kH - 1 - pH + opH),
                 (kW - 1 - pW, kW - 1 - pW + opW)),
        lhs_dilation=(sH, sW),
        rhs_dilation=(1, 1),
        dimension_numbers=('NCHW', 'OIHW', 'NCHW'),
        precision=jax.lax.Precision.HIGHEST)
    out = out + bias[None, :, None, None]
    if not is_last:
        out = jnp.maximum(out, 0.0)
    return out


if __name__ == "__main__":
    key = jax.random.PRNGKey(0)
    kx, kw, kb = jax.random.split(key, 3)

    # Typical 2x-upsampling deconv, small shapes consistent with the module.
    N, Cin, H, W = 2, 4, 16, 16
    Cout, ksize, stride, padding, outpad = 8, 3, 2, 1, 1
    is_last = False  # forward applies ReLU

    x = jax.random.normal(kx, (N, Cin, H, W), dtype=jnp.float32)
    weight = 0.1 * jax.random.normal(kw, (Cin, Cout, ksize, ksize), dtype=jnp.float32)
    bias = 0.1 * jax.random.normal(kb, (Cout,), dtype=jnp.float32)

    out = deconv_layer_forward(x, weight, bias, stride, padding, outpad, is_last)
    out = jax.block_until_ready(out)

    ref = _reference(x, weight, bias, stride, padding, outpad, is_last)
    OH = (H - 1) * stride - 2 * padding + ksize + outpad
    OW = (W - 1) * stride - 2 * padding + ksize + outpad
    assert out.shape == (N, Cout, OH, OW), out.shape
    np.testing.assert_allclose(np.asarray(out), np.asarray(ref), rtol=1e-4, atol=1e-4)

    print("KERNEL_OK")
</pallas_src>

<mosaic_0001>
module attributes {stable_mosaic.version = 11 : i64} {
  func.func @_deconv_kernel(%arg0: i32, %arg1: memref<8x36xf32, #tpu.memory_space<vmem>>, %arg2: memref<8x1xf32, #tpu.memory_space<vmem>>, %arg3: memref<1x4x1222xf32, #tpu.memory_space<vmem>>, %arg4: memref<1x8x1152xf32, #tpu.memory_space<vmem>>, %arg5: memref<36x1152xf32, #tpu.memory_space<vmem>>) attributes {dimension_semantics = [#tpu.dimension_semantics<parallel>], iteration_bounds = array<i64: 2>, scalar_prefetch = 0 : i64, scratch_operands = 1 : i64, tpu.core_type = #tpu.core_type<tc>, window_params = [{pipeline_mode = #tpu.pipeline_mode<synchronous>, transform_indices = @transform_0, window_bounds = array<i64: 8, 36>}, {pipeline_mode = #tpu.pipeline_mode<synchronous>, transform_indices = @transform_1, window_bounds = array<i64: 8, 1>}, {transform_indices = @transform_2, window_bounds = array<i64: 1, 4, 1222>}, {transform_indices = @transform_3, window_bounds = array<i64: 1, 8, 1152>}]} {
    %c0 = arith.constant 0 : index
    %c0_0 = arith.constant 0 : index
    %c0_1 = arith.constant 0 : index
    %0 = vector.load %arg3[%c0, %c0_0, %c0_1] : memref<1x4x1222xf32, #tpu.memory_space<vmem>>, vector<1x4x1152xf32>
    %1 = vector.shape_cast %0 : vector<1x4x1152xf32> to vector<4x1152xf32>
    %c0_2 = arith.constant 0 : index
    %c0_3 = arith.constant 0 : index
    %2 = vector.load %arg5[%c0_2, %c0_3] : memref<36x1152xf32, #tpu.memory_space<vmem>>, vector<4x1152xf32>
    tpu.vector_store %arg5[%c0_2, %c0_3], %1 {strides = array<i32>} : memref<36x1152xf32, #tpu.memory_space<vmem>>, vector<4x1152xf32>,
    %c0_4 = arith.constant 0 : index
    %c0_5 = arith.constant 0 : index
    %c1 = arith.constant 1 : index
    %3 = vector.load %arg3[%c0_4, %c0_5, %c1] : memref<1x4x1222xf32, #tpu.memory_space<vmem>>, vector<1x4x1152xf32>
    %4 = vector.shape_cast %3 : vector<1x4x1152xf32> to vector<4x1152xf32>
    %c4 = arith.constant 4 : index
    %c0_6 = arith.constant 0 : index
    %5 = vector.load %arg5[%c4, %c0_6] : memref<36x1152xf32, #tpu.memory_space<vmem>>, vector<4x1152xf32>
    tpu.vector_store %arg5[%c4, %c0_6], %4 {strides = array<i32>} : memref<36x1152xf32, #tpu.memory_space<vmem>>, vector<4x1152xf32>,
    %c0_7 = arith.constant 0 : index
    %c0_8 = arith.constant 0 : index
    %c2 = arith.constant 2 : index
    %6 = vector.load %arg3[%c0_7, %c0_8, %c2] : memref<1x4x1222xf32, #tpu.memory_space<vmem>>, vector<1x4x1152xf32>
    %7 = vector.shape_cast %6 : vector<1x4x1152xf32> to vector<4x1152xf32>
    %c8 = arith.constant 8 : index
    %c0_9 = arith.constant 0 : index
    %8 = vector.load %arg5[%c8, %c0_9] : memref<36x1152xf32, #tpu.memory_space<vmem>>, vector<4x1152xf32>
    tpu.vector_store %arg5[%c8, %c0_9], %7 {strides = array<i32>} : memref<36x1152xf32, #tpu.memory_space<vmem>>, vector<4x1152xf32>,
    %c0_10 = arith.constant 0 : index
    %c0_11 = arith.constant 0 : index
    %c34 = arith.constant 34 : index
    %9 = vector.load %arg3[%c0_10, %c0_11, %c34] : memref<1x4x1222xf32, #tpu.memory_space<vmem>>, vector<1x4x1152xf32>
    %10 = vector.shape_cast %9 : vector<1x4x1152xf32> to vector<4x1152xf32>
    %c12 = arith.constant 12 : index
    %c0_12 = arith.constant 0 : index
    %11 = vector.load %arg5[%c12, %c0_12] : memref<36x1152xf32, #tpu.memory_space<vmem>>, vector<4x1152xf32>
    tpu.vector_store %arg5[%c12, %c0_12], %10 {strides = array<i32>} : memref<36x1152xf32, #tpu.memory_space<vmem>>, vector<4x1152xf32>,
    %c0_13 = arith.constant 0 : index
    %c0_14 = arith.constant 0 : index
    %c35 = arith.constant 35 : index
    %12 = vector.load %arg3[%c0_13, %c0_14, %c35] : memref<1x4x1222xf32, #tpu.memory_space<vmem>>, vector<1x4x1152xf32>
    %13 = vector.shape_cast %12 : vector<1x4x1152xf32> to vector<4x1152xf32>
    %c16 = arith.constant 16 : index
    %c0_15 = arith.constant 0 : index
    %14 = vector.load %arg5[%c16, %c0_15] : memref<36x1152xf32, #tpu.memory_space<vmem>>, vector<4x1152xf32>
    tpu.vector_store %arg5[%c16, %c0_15], %13 {strides = array<i32>} : memref<36x1152xf32, #tpu.memory_space<vmem>>, vector<4x1152xf32>,
    %c0_16 = arith.constant 0 : index
    %c0_17 = arith.constant 0 : index
    %c36 = arith.constant 36 : index
    %15 = vector.load %arg3[%c0_16, %c0_17, %c36] : memref<1x4x1222xf32, #tpu.memory_space<vmem>>, vector<1x4x1152xf32>
    %16 = vector.shape_cast %15 : vector<1x4x1152xf32> to vector<4x1152xf32>
    %c20 = arith.constant 20 : index
    %c0_18 = arith.constant 0 : index
    %17 = vector.load %arg5[%c20, %c0_18] : memref<36x1152xf32, #tpu.memory_space<vmem>>, vector<4x1152xf32>
    tpu.vector_store %arg5[%c20, %c0_18], %16 {strides = array<i32>} : memref<36x1152xf32, #tpu.memory_space<vmem>>, vector<4x1152xf32>,
    %c0_19 = arith.constant 0 : index
    %c0_20 = arith.constant 0 : index
    %c68 = arith.constant 68 : index
    %18 = vector.load %arg3[%c0_19, %c0_20, %c68] : memref<1x4x1222xf32, #tpu.memory_space<vmem>>, vector<1x4x1152xf32>
    %19 = vector.shape_cast %18 : vector<1x4x1152xf32> to vector<4x1152xf32>
    %c24 = arith.constant 24 : index
    %c0_21 = arith.constant 0 : index
    %20 = vector.load %arg5[%c24, %c0_21] : memref<36x1152xf32, #tpu.memory_space<vmem>>, vector<4x1152xf32>
    tpu.vector_store %arg5[%c24, %c0_21], %19 {strides = array<i32>} : memref<36x1152xf32, #tpu.memory_space<vmem>>, vector<4x1152xf32>,
    %c0_22 = arith.constant 0 : index
    %c0_23 = arith.constant 0 : index
    %c69 = arith.constant 69 : index
    %21 = vector.load %arg3[%c0_22, %c0_23, %c69] : memref<1x4x1222xf32, #tpu.memory_space<vmem>>, vector<1x4x1152xf32>
    %22 = vector.shape_cast %21 : vector<1x4x1152xf32> to vector<4x1152xf32>
    %c28 = arith.constant 28 : index
    %c0_24 = arith.constant 0 : index
    %23 = vector.load %arg5[%c28, %c0_24] : memref<36x1152xf32, #tpu.memory_space<vmem>>, vector<4x1152xf32>
    tpu.vector_store %arg5[%c28, %c0_24], %22 {strides = array<i32>} : memref<36x1152xf32, #tpu.memory_space<vmem>>, vector<4x1152xf32>,
    %c0_25 = arith.constant 0 : index
    %c0_26 = arith.constant 0 : index
    %c70 = arith.constant 70 : index
    %24 = vector.load %arg3[%c0_25, %c0_26, %c70] : memref<1x4x1222xf32, #tpu.memory_space<vmem>>, vector<1x4x1152xf32>
    %25 = vector.shape_cast %24 : vector<1x4x1152xf32> to vector<4x1152xf32>
    %c32 = arith.constant 32 : index
    %c0_27 = arith.constant 0 : index
    %26 = vector.load %arg5[%c32, %c0_27] : memref<36x1152xf32, #tpu.memory_space<vmem>>, vector<4x1152xf32>
    tpu.vector_store %arg5[%c32, %c0_27], %25 {strides = array<i32>} : memref<36x1152xf32, #tpu.memory_space<vmem>>, vector<4x1152xf32>,
    %c0_28 = arith.constant 0 : index
    %c0_29 = arith.constant 0 : index
    %27 = vector.load %arg1[%c0_28, %c0_29] : memref<8x36xf32, #tpu.memory_space<vmem>>, vector<8x36xf32>
    %c0_30 = arith.constant 0 : index
    %c0_31 = arith.constant 0 : index
    %28 = vector.load %arg5[%c0_30, %c0_31] : memref<36x1152xf32, #tpu.memory_space<vmem>>, vector<36x1152xf32>
    %cst = arith.constant dense<0.000000e+00> : vector<8x1152xf32>
    %29 = tpu.matmul %27, %28, %cst {dimension_numbers = #tpu.dot_dimension_numbers<[1], [0], [0], [1], [0, 0, 1, 1], [], []>, precision = #tpu.contract_precision<fp32>} : vector<8x36xf32>, vector<36x1152xf32>, vector<8x1152xf32> -> vector<8x1152xf32>
    %c0_32 = arith.constant 0 : index
    %c0_33 = arith.constant 0 : index
    %30 = vector.load %arg2[%c0_32, %c0_33] : memref<8x1xf32, #tpu.memory_space<vmem>>, vector<8x1xf32>
    %31 = vector.broadcast %30 : vector<8x1xf32> to vector<8x1152xf32>
    %32 = arith.addf %29, %31 : vector<8x1152xf32>
    %cst_34 = arith.constant 0.000000e+00 : f32
    %33 = vector.broadcast %cst_34 : f32 to vector<8x1152xf32>
    %34 = arith.maximumf %32, %33 : vector<8x1152xf32>
    %c0_35 = arith.constant 0 : index
    %c0_36 = arith.constant 0 : index
    %c0_37 = arith.constant 0 : index
    %35 = vector.load %arg4[%c0_35, %c0_36, %c0_37] : memref<1x8x1152xf32, #tpu.memory_space<vmem>>, vector<1x8x1152xf32>
    %36 = vector.shape_cast %35 : vector<1x8x1152xf32> to vector<8x1152xf32>
    %37 = vector.shape_cast %34 : vector<8x1152xf32> to vector<1x8x1152xf32>
    tpu.vector_store %arg4[%c0_35, %c0_36, %c0_37], %37 {strides = array<i32>} : memref<1x8x1152xf32, #tpu.memory_space<vmem>>, vector<1x8x1152xf32>,
    return
  }
  func.func @transform_0(%arg0: i32) -> (i32, i32) {
    %c0_i32 = arith.constant 0 : i32
    %c0_i32_0 = arith.constant 0 : i32
    %c0_i32_1 = arith.constant 0 : i32
    return %c0_i32, %c0_i32_0 : i32, i32
  }
  func.func @transform_1(%arg0: i32) -> (i32, i32) {
    %c0_i32 = arith.constant 0 : i32
    %c0_i32_0 = arith.constant 0 : i32
    %c0_i32_1 = arith.constant 0 : i32
    return %c0_i32, %c0_i32_0 : i32, i32
  }
  func.func @transform_2(%arg0: i32) -> (i32, i32, i32) {
    %c0_i32 = arith.constant 0 : i32
    %c0_i32_0 = arith.constant 0 : i32
    %c0_i32_1 = arith.constant 0 : i32
    return %arg0, %c0_i32, %c0_i32_0 : i32, i32, i32
  }
  func.func @transform_3(%arg0: i32) -> (i32, i32, i32) {
    %c0_i32 = arith.constant 0 : i32
    %c0_i32_0 = arith.constant 0 : i32
    %c0_i32_1 = arith.constant 0 : i32
    return %arg0, %c0_i32, %c0_i32_0 : i32, i32, i32
  }
}

</mosaic_0001>

<llo_original>
// kernel: tpu_custom_call.1
$region0: #{tpu_custom_call.1}
  #allocation0 [shape = 'u32[]', space=smem, size = 0x4, offset = 0x4, fixed_abs, tag = 'smem constant byte address 0x4 - core index']
  #allocation1 [shape = 'u32[144,128]{1,0:T(1,128)}', space=vmem, size = 0x12000, scoped, tag = 'internal scratch']
  #allocation2 [shape = 'f32[36,1152]{1,0:T(8,128)}', space=vmem, size = 0x2d000, scoped, tag = 'scratch operand']
  %s0 = inlined_call_operand.vmem [shape: f32[8,36], index: 0, kind: input, shape index: {}]
  %s1 = inlined_call_operand.vmem [shape: f32[8,1], index: 1, kind: input, shape index: {}]
  %s2 = inlined_call_operand.hbm [shape: f32[2,4,1222], index: 2, kind: input, shape index: {}]
  %s3 = inlined_call_operand.hbm [shape: f32[2,8,1152], index: 3, kind: output, shape index: {}]
  %s4 = sld [smem:[#allocation0]]
  $region49: #{tpu_custom_call.1} parent=0
    _
  %s6 = ssub.s32 1, %s4
  %s7 = scalar_select 0, %s6, %s4
  $region1: #{tpu_custom_call.1} parent=0
    #allocation3 [shape = 'u8[40960]{0}', space=vmem, size = 0xa000, scoped, tag = 'input window, operand 2']
    #allocation4 [shape = 's32[2]{0}', space=sflag, size = 0x8, scoped, tag = 'scoped memory for tpu_custom_call.1']
    #allocation5 [shape = 's32[2]{0}', space=sflag, size = 0x8, scoped, tag = 'scoped memory for tpu_custom_call.1']
    #allocation6 [shape = 'u8[73728]{0}', space=vmem, size = 0x12000, scoped, tag = 'output window, operand 0']
    %8 = vsyncpa [#allocation4], 0
    %s9 = scalar_lea.sflag [#allocation4], 1
    %10 = vsyncpa %s9, 0
    %11 = vsyncpa [#allocation5], 0
    %s12 = scalar_lea.sflag [#allocation5], 1
    %13 = vsyncpa %s12, 0
    loop: start=0, step=1, limit=4
    $region2: #{tpu_custom_call.1} parent=1 // loop_pre_header
      _
    $region3: #{tpu_custom_call.1} parent=1 // loop_header
      %s15 = sphi 0, %s19
      %p16 = scmp.ge.s32.totalorder %s15, 4
      %s23 = sphi 0, %s23
      %s25 = sphi 0, %s23
      %s26 = sphi 0, %s25
      %s40 = sphi 0, %s26
      %s44 = sphi 0, %s44
      %s46 = sphi 0, %s44
      %s47 = sphi 0, %s46
      %s61 = sphi 0, %s47
      %s67 = sphi 0, %s69
      %s70 = sphi 0, %s67
      %s71 = sphi 0, %s70
      %s87 = sphi 0, %s71
      %s93 = sphi 0, %s95
      %s96 = sphi 0, %s93
      %s97 = sphi 0, %s96
      %s113 = sphi 0, %s97
    $region4: #{tpu_custom_call.1} parent=1 // loop_header_branch
      %18 = sbr.rel (%p16) target = $region8
    $region5: #{tpu_custom_call.1} parent=1 // loop_body
      %s20 = ssub.s32 %s15, 1
      %s21 = ssub.s32 %s15, 2
      %s22 = sadd.s32 %s15, 1
      %s24 = sadd.s32 %s23, 1
      %p27 = scmp.eq.s32.totalorder %s15, 1
      %p28 = scmp.ne.s32.totalorder %s23, %s25
      %p29 = scmp.eq.s32.totalorder %s15, 0
      %p30 = por %p28, %p29
      %p31 = scmp.ne.s32.totalorder %s23, %s25
      %p32 = scmp.eq.s32.totalorder %s20, 1
      %p33 = por %p31, %p32
      %p34 = scmp.ne.s32.totalorder %s25, %s26
      %p35 = scmp.eq.s32.totalorder %s20, 0
      %p36 = por %p34, %p35
      %p37 = scmp.ne.s32.totalorder %s25, %s26
      %p38 = scmp.eq.s32.totalorder %s21, 1
      %p39 = por %p37, %p38
      %p41 = scmp.ne.s32.totalorder %s26, %s40
      %p42 = scmp.eq.s32.totalorder %s21, 0
      %p43 = por %p41, %p42
      %s45 = sadd.s32 %s44, 1
      %p48 = scmp.eq.s32.totalorder %s15, 1
      %p49 = scmp.ne.s32.totalorder %s44, %s46
      %p50 = scmp.eq.s32.totalorder %s15, 0
      %p51 = por %p49, %p50
      %p52 = scmp.ne.s32.totalorder %s44, %s46
      %p53 = scmp.eq.s32.totalorder %s20, 1
      %p54 = por %p52, %p53
      %p55 = scmp.ne.s32.totalorder %s46, %s47
      %p56 = scmp.eq.s32.totalorder %s20, 0
      %p57 = por %p55, %p56
      %p58 = scmp.ne.s32.totalorder %s46, %s47
      %p59 = scmp.eq.s32.totalorder %s21, 1
      %p60 = por %p58, %p59
      %p62 = scmp.ne.s32.totalorder %s47, %s61
      %p63 = scmp.eq.s32.totalorder %s21, 0
      %p64 = por %p62, %p63
      %s65 = ssub.s32 %s15, %s22
      %p66 = scmp.eq.s32.totalorder %s65, 0
      %s68 = sadd.s32 %s67, 1
      %s69 = scalar_select %p66, %s67, %s68
      %p72 = pneg %p66
      %p73 = scmp.eq.s32.totalorder %s15, 1
      %p74 = por %p72, %p73
      %p75 = scmp.ne.s32.totalorder %s67, %s70
      %p76 = scmp.eq.s32.totalorder %s15, 0
      %p77 = por %p75, %p76
      %p78 = scmp.ne.s32.totalorder %s67, %s70
      %p79 = scmp.eq.s32.totalorder %s20, 1
      %p80 = por %p78, %p79
      %p81 = scmp.ne.s32.totalorder %s70, %s71
      %p82 = scmp.eq.s32.totalorder %s20, 0
      %p83 = por %p81, %p82
      %p84 = scmp.ne.s32.totalorder %s70, %s71
      %p85 = scmp.eq.s32.totalorder %s21, 1
      %p86 = por %p84, %p85
      %p88 = scmp.ne.s32.totalorder %s71, %s87
      %p89 = scmp.eq.s32.totalorder %s21, 0
      %p90 = por %p88, %p89
      %s91 = ssub.s32 %s15, %s22
      %p92 = scmp.eq.s32.totalorder %s91, 0
      %s94 = sadd.s32 %s93, 1
      %s95 = scalar_select %p92, %s93, %s94
      %p98 = pneg %p92
      %p99 = scmp.eq.s32.totalorder %s15, 1
      %p100 = por %p98, %p99
      %p101 = scmp.ne.s32.totalorder %s93, %s96
      %p102 = scmp.eq.s32.totalorder %s15, 0
      %p103 = por %p101, %p102
      %p104 = scmp.ne.s32.totalorder %s93, %s96
      %p105 = scmp.eq.s32.totalorder %s20, 1
      %p106 = por %p104, %p105
      %p107 = scmp.ne.s32.totalorder %s96, %s97
      %p108 = scmp.eq.s32.totalorder %s20, 0
      %p109 = por %p107, %p108
      %p110 = scmp.ne.s32.totalorder %s96, %s97
      %p111 = scmp.eq.s32.totalorder %s21, 1
      %p112 = por %p110, %p111
      %p114 = scmp.ne.s32.totalorder %s97, %s113
      %p115 = scmp.eq.s32.totalorder %s21, 0
      %p116 = por %p114, %p115
      %p117 = scmp.le.s32.totalorder 1, %s15
      %p118 = scmp.lt.s32.totalorder %s15, 3
      %p119 = pnand %p117, %p118
      %p120 = pneg %p119
      // Predicated region
      $region9: #{tpu_custom_call.1} parent=5 // pred_check
        _
      $region10: #{tpu_custom_call.1} parent=5 // pred_check_branch
        %122 = sbr.rel (%p119) target = $region12
      $region11: #{tpu_custom_call.1} parent=5 // pred_region
        %s123 = ssub.s32 %s15, 1
        // Predicated region
        $region13: #{tpu_custom_call.1} parent=11 // pred_check
          %p124 = pneg %p36
        $region14: #{tpu_custom_call.1} parent=11 // pred_check_branch
          %126 = sbr.rel (%p124) target = $region16
        $region15: #{tpu_custom_call.1} parent=11 // pred_region
          _
        $region16: #{tpu_custom_call.1} parent=11 // pred_fallthru
          _
        // Predicated region
        $region17: #{tpu_custom_call.1} parent=11 // pred_check
          %p127 = pneg %p57
        $region18: #{tpu_custom_call.1} parent=11 // pred_check_branch
          %129 = sbr.rel (%p127) target = $region20
        $region19: #{tpu_custom_call.1} parent=11 // pred_region
          _
        $region20: #{tpu_custom_call.1} parent=11 // pred_fallthru
          _
      $region12: #{tpu_custom_call.1} parent=5 // pred_fallthru
        _
      %p130 = scmp.lt.s32.totalorder %s15, 2
      // Predicated region
      $region21: #{tpu_custom_call.1} parent=5 // pred_check
        %p131 = pneg %p130
      $region22: #{tpu_custom_call.1} parent=5 // pred_check_branch
        %133 = sbr.rel (%p131) target = $region24
      $region23: #{tpu_custom_call.1} parent=5 // pred_region
        // Predicated region
        $region25: #{tpu_custom_call.1} parent=23 // pred_check
          %p134 = pneg %p77
        $region26: #{tpu_custom_call.1} parent=23 // pred_check_branch
          %136 = sbr.rel (%p134) target = $region28
        $region27: #{tpu_custom_call.1} parent=23 // pred_region
          %s137 = sand.u32 %s67, 1
          %s138 = scalar_lea.sflag [#allocation4], %s137
          %s139 = sand.u32 %s67, 1
          %s140 = smul.addr %s139, 40
          %s141 = scalar_lea.vmem [#allocation3], %s140
          %s143 = ssub.s32 640, 640
          %144 = vsyncadd %s138, %s143
          %s145 = smul.addr %s15, 10
          %s146 = smul.addr %s145, 64
          %s147 = scalar_lea.hbm %s2, %s146
          %s149 = sshll.u32 %s141, 4
          %s150 = int_to_ptr.vmem [resolvable:$true] %s149
          %152 = dma.hbm_to_vmem [thread:$0]  %s147, 640, %s150, %s138
        $region28: #{tpu_custom_call.1} parent=23 // pred_fallthru
          _
      $region24: #{tpu_custom_call.1} parent=5 // pred_fallthru
        _
      %p153 = scmp.le.s32.totalorder 1, %s15
      %p154 = scmp.lt.s32.totalorder %s15, 3
      %p155 = pnand %p153, %p154
      %p156 = pneg %p155
      // Predicated region
      $region29: #{tpu_custom_call.1} parent=5 // pred_check
        _
      $region30: #{tpu_custom_call.1} parent=5 // pred_check_branch
        %158 = sbr.rel (%p155) target = $region32
      $region31: #{tpu_custom_call.1} parent=5 // pred_region
        %s159 = ssub.s32 %s15, 1
        %s160 = sand.u32 %s70, 1
        %s161 = scalar_lea.sflag [#allocation4], %s160
        %s162 = sand.u32 %s70, 1
        %s163 = smul.addr %s162, 40
        %s164 = scalar_lea.vmem [#allocation3], %s163
        // Predicated region
        $region33: #{tpu_custom_call.1} parent=31 // pred_check
          %p165 = pneg %p83
        $region34: #{tpu_custom_call.1} parent=31 // pred_check_branch
          %167 = sbr.rel (%p165) target = $region36
        $region35: #{tpu_custom_call.1} parent=31 // pred_region
          %168 = dma.done %s161, 640
        $region36: #{tpu_custom_call.1} parent=31 // pred_fallthru
          _
        %p169 = pneg %p36
        %p170 = pneg %p33
        %p171 = pneg %p57
        %p172 = pneg %p54
        %s173 = sand.u32 %s70, 1
        %s174 = scalar_lea.sflag [#allocation4], %s173
        %s175 = sand.u32 %s70, 1
        %s176 = smul.addr %s175, 40
        %s177 = scalar_lea.vmem [#allocation3], %s176
        %p178 = pneg %p83
        %p179 = pneg %p80
        %p180 = pneg %p109
        %p181 = pneg %p106
        %s182 = sand.u32 %s96, 1
        %s183 = scalar_lea.sflag [#allocation5], %s182
        %s184 = sand.u32 %s96, 1
        %s185 = smul.addr %s184, 72
        %s186 = scalar_lea.vmem [#allocation6], %s185
        %v187 = vld [vmem:[%s164] sm:$0xff]
        %v188 = vld [vmem:[%s164 + $0x8] sm:$0xff]
        %v189 = vld [vmem:[%s164 + $0x10] sm:$0xff]
        %v190 = vld [vmem:[%s164 + $0x18] sm:$0xff]
        %v191 = vld [vmem:[%s164 + $0x20] sm:$0xf]
        %v196 = vcombine.high %v187, %v187
        %v197 = vcombine.high %v188, %v188
        %v198 = vcombine.high %v189, %v189
        %v199 = vcombine.high %v190, %v190
        %204 = vst [vmem:[#allocation2] sm:$0xf] %v187
        %205 = vst [vmem:[#allocation2 + $0x8] sm:$0xf] %v196
        %206 = vst [vmem:[#allocation2 + $0x10] sm:$0xf] %v188
        %207 = vst [vmem:[#allocation2 + $0x18] sm:$0xf] %v197
        %208 = vst [vmem:[#allocation2 + $0x20] sm:$0xf] %v189
        %209 = vst [vmem:[#allocation2 + $0x28] sm:$0xf] %v198
        %210 = vst [vmem:[#allocation2 + $0x30] sm:$0xf] %v190
        %211 = vst [vmem:[#allocation2 + $0x38] sm:$0xf] %v199
        %212 = vst [vmem:[#allocation2 + $0x40] sm:$0xf] %v191
        %v213 = vld [vmem:[%s164] sm:$0xff]
        %v214 = vld [vmem:[%s164 + $0x8] sm:$0xff]
        %v215 = vld [vmem:[%s164 + $0x10] sm:$0xff]
        %v216 = vld [vmem:[%s164 + $0x18] sm:$0xff]
        %v217 = vld [vmem:[%s164 + $0x20] sm:$0xff]
        %v223 = vcombine.low %v213, %v213
        %v224 = vcombine.low %v214, %v214
        %v225 = vcombine.low %v215, %v215
        %v226 = vcombine.low %v216, %v216
        %v227 = vcombine.low %v217, %v217
        %228 = vrot.lane.b32.xlu0 %v223, 127
        %v229 = vpop.permute.xlu0 %228
        %230 = vrot.lane.b32.xlu0 %v213, 127
        %v231 = vpop.permute.xlu0 %230
        %232 = vrot.lane.b32.xlu0 %v224, 127
        %v233 = vpop.permute.xlu0 %232
        %234 = vrot.lane.b32.xlu0 %v214, 127
        %v235 = vpop.permute.xlu0 %234
        %236 = vrot.lane.b32.xlu0 %v225, 127
        %v237 = vpop.permute.xlu0 %236
        %238 = vrot.lane.b32.xlu0 %v215, 127
        %v239 = vpop.permute.xlu0 %238
        %240 = vrot.lane.b32.xlu0 %v226, 127
        %v241 = vpop.permute.xlu0 %240
        %242 = vrot.lane.b32.xlu0 %v216, 127
        %v243 = vpop.permute.xlu0 %242
        %244 = vrot.lane.b32.xlu0 %v227, 127
        %v245 = vpop.permute.xlu0 %244
        %246 = vrot.lane.b32.xlu0 %v217, 127
        %v247 = vpop.permute.xlu0 %246
        %vm248 = vcmask 1039360
        %v249 = vsel %vm248, %v229, %v231
        %v250 = vsel %vm248, %v231, %v233
        %v251 = vsel %vm248, %v233, %v235
        %v252 = vsel %vm248, %v235, %v237
        %v253 = vsel %vm248, %v237, %v239
        %v254 = vsel %vm248, %v239, %v241
        %v255 = vsel %vm248, %v241, %v243
        %v256 = vsel %vm248, %v243, %v245
        %v257 = vsel %vm248, %v245, %v247
        %267 = vst [vmem:[#allocation2] sm:$0xf0] %v249
        %268 = vst [vmem:[#allocation2 + $0x8] sm:$0xf0] %v250
        %269 = vst [vmem:[#allocation2 + $0x10] sm:$0xf0] %v251
        %270 = vst [vmem:[#allocation2 + $0x18] sm:$0xf0] %v252
        %271 = vst [vmem:[#allocation2 + $0x20] sm:$0xf0] %v253
        %272 = vst [vmem:[#allocation2 + $0x28] sm:$0xf0] %v254
        %273 = vst [vmem:[#allocation2 + $0x30] sm:$0xf0] %v255
        %274 = vst [vmem:[#allocation2 + $0x38] sm:$0xf0] %v256
        %275 = vst [vmem:[#allocation2 + $0x40] sm:$0xf0] %v257
        %v276 = vld [vmem:[%s164] sm:$0xff]
        %v277 = vld [vmem:[%s164 + $0x8] sm:$0xff]
        %v278 = vld [vmem:[%s164 + $0x10] sm:$0xff]
        %v279 = vld [vmem:[%s164 + $0x18] sm:$0xff]
        %v280 = vld [vmem:[%s164 + $0x20] sm:$0xff]
        %v286 = vcombine.high %v276, %v276
        %v287 = vcombine.high %v277, %v277
        %v288 = vcombine.high %v278, %v278
        %v289 = vcombine.high %v279, %v279
        %v290 = vcombine.high %v280, %v280
        %291 = vrot.lane.b32.xlu0 %v276, 126
        %v292 = vpop.permute.xlu0 %291
        %293 = vrot.lane.b32.xlu0 %v286, 126
        %v294 = vpop.permute.xlu0 %293
        %295 = vrot.lane.b32.xlu0 %v277, 126
        %v296 = vpop.permute.xlu0 %295
        %297 = vrot.lane.b32.xlu0 %v287, 126
        %v298 = vpop.permute.xlu0 %297
        %299 = vrot.lane.b32.xlu0 %v278, 126
        %v300 = vpop.permute.xlu0 %299
        %301 = vrot.lane.b32.xlu0 %v288, 126
        %v302 = vpop.permute.xlu0 %301
        %303 = vrot.lane.b32.xlu0 %v279, 126
        %v304 = vpop.permute.xlu0 %303
        %305 = vrot.lane.b32.xlu0 %v289, 126
        %v306 = vpop.permute.xlu0 %305
        %307 = vrot.lane.b32.xlu0 %v280, 126
        %v308 = vpop.permute.xlu0 %307
        %309 = vrot.lane.b32.xlu0 %v290, 126
        %v310 = vpop.permute.xlu0 %309
        %vm311 = vcmask 1031168
        %v312 = vsel %vm311, %v292, %v294
        %v313 = vsel %vm311, %v294, %v296
        %v314 = vsel %vm311, %v296, %v298
        %v315 = vsel %vm311, %v298, %v300
        %v316 = vsel %vm311, %v300, %v302
        %v317 = vsel %vm311, %v302, %v304
        %v318 = vsel %vm311, %v304, %v306
        %v319 = vsel %vm311, %v306, %v308
        %v320 = vsel %vm311, %v308, %v310
        %330 = vst [vmem:[#allocation2 + $0x48] sm:$0xf] %v312
        %331 = vst [vmem:[#allocation2 + $0x50] sm:$0xf] %v313
        %332 = vst [vmem:[#allocation2 + $0x58] sm:$0xf] %v314
        %333 = vst [vmem:[#allocation2 + $0x60] sm:$0xf] %v315
        %334 = vst [vmem:[#allocation2 + $0x68] sm:$0xf] %v316
        %335 = vst [vmem:[#allocation2 + $0x70] sm:$0xf] %v317
        %336 = vst [vmem:[#allocation2 + $0x78] sm:$0xf] %v318
        %337 = vst [vmem:[#allocation2 + $0x80] sm:$0xf] %v319
        %338 = vst [vmem:[#allocation2 + $0x88] sm:$0xf] %v320
        %v339 = vld [vmem:[%s164] sm:$0xff]
        %v340 = vld [vmem:[%s164 + $0x8] sm:$0xff]
        %v341 = vld [vmem:[%s164 + $0x10] sm:$0xff]
        %v342 = vld [vmem:[%s164 + $0x18] sm:$0xff]
        %v343 = vld [vmem:[%s164 + $0x20] sm:$0xff]
        %v349 = vcombine.low %v339, %v339
        %v350 = vcombine.low %v340, %v340
        %v351 = vcombine.low %v341, %v341
        %v352 = vcombine.low %v342, %v342
        %v353 = vcombine.low %v343, %v343
        %354 = vrot.lane.b32.xlu0 %v349, 94
        %v355 = vpop.permute.xlu0 %354
        %356 = vrot.lane.b32.xlu0 %v339, 94
        %v357 = vpop.permute.xlu0 %356
        %358 = vrot.lane.b32.xlu0 %v350, 94
        %v359 = vpop.permute.xlu0 %358
        %360 = vrot.lane.b32.xlu0 %v340, 94
        %v361 = vpop.permute.xlu0 %360
        %362 = vrot.lane.b32.xlu0 %v351, 94
        %v363 = vpop.permute.xlu0 %362
        %364 = vrot.lane.b32.xlu0 %v341, 94
        %v365 = vpop.permute.xlu0 %364
        %366 = vrot.lane.b32.xlu0 %v352, 94
        %v367 = vpop.permute.xlu0 %366
        %368 = vrot.lane.b32.xlu0 %v342, 94
        %v369 = vpop.permute.xlu0 %368
        %370 = vrot.lane.b32.xlu0 %v353, 94
        %v371 = vpop.permute.xlu0 %370
        %372 = vrot.lane.b32.xlu0 %v343, 94
        %v373 = vpop.permute.xlu0 %372
        %vm374 = vcmask 769024
        %v375 = vsel %vm374, %v355, %v357
        %v376 = vsel %vm374, %v357, %v359
        %v377 = vsel %vm374, %v359, %v361
        %v378 = vsel %vm374, %v361, %v363
        %v379 = vsel %vm374, %v363, %v365
        %v380 = vsel %vm374, %v365, %v367
        %v381 = vsel %vm374, %v367, %v369
        %v382 = vsel %vm374, %v369, %v371
        %v383 = vsel %vm374, %v371, %v373
        %393 = vst [vmem:[#allocation2 + $0x48] sm:$0xf0] %v375
        %394 = vst [vmem:[#allocation2 + $0x50] sm:$0xf0] %v376
        %395 = vst [vmem:[#allocation2 + $0x58] sm:$0xf0] %v377
        %396 = vst [vmem:[#allocation2 + $0x60] sm:$0xf0] %v378
        %397 = vst [vmem:[#allocation2 + $0x68] sm:$0xf0] %v379
        %398 = vst [vmem:[#allocation2 + $0x70] sm:$0xf0] %v380
        %399 = vst [vmem:[#allocation2 + $0x78] sm:$0xf0] %v381
        %400 = vst [vmem:[#allocation2 + $0x80] sm:$0xf0] %v382
        %401 = vst [vmem:[#allocation2 + $0x88] sm:$0xf0] %v383
        %v402 = vld [vmem:[%s164] sm:$0xff]
        %v403 = vld [vmem:[%s164 + $0x8] sm:$0xff]
        %v404 = vld [vmem:[%s164 + $0x10] sm:$0xff]
        %v405 = vld [vmem:[%s164 + $0x18] sm:$0xff]
        %v406 = vld [vmem:[%s164 + $0x20] sm:$0xff]
        %v412 = vcombine.high %v402, %v402
        %v413 = vcombine.high %v403, %v403
        %v414 = vcombine.high %v404, %v404
        %v415 = vcombine.high %v405, %v405
        %v416 = vcombine.high %v406, %v406
        %417 = vrot.lane.b32.xlu0 %v402, 93
        %v418 = vpop.permute.xlu0 %417
        %419 = vrot.lane.b32.xlu0 %v412, 93
        %v420 = vpop.permute.xlu0 %419
        %421 = vrot.lane.b32.xlu0 %v403, 93
        %v422 = vpop.permute.xlu0 %421
        %423 = vrot.lane.b32.xlu0 %v413, 93
        %v424 = vpop.permute.xlu0 %423
        %425 = vrot.lane.b32.xlu0 %v404, 93
        %v426 = vpop.permute.xlu0 %425
        %427 = vrot.lane.b32.xlu0 %v414, 93
        %v428 = vpop.permute.xlu0 %427
        %429 = vrot.lane.b32.xlu0 %v405, 93
        %v430 = vpop.permute.xlu0 %429
        %431 = vrot.lane.b32.xlu0 %v415, 93
        %v432 = vpop.permute.xlu0 %431
        %433 = vrot.lane.b32.xlu0 %v406, 93
        %v434 = vpop.permute.xlu0 %433
        %435 = vrot.lane.b32.xlu0 %v416, 93
        %v436 = vpop.permute.xlu0 %435
        %vm437 = vcmask 760832
        %v438 = vsel %vm437, %v418, %v420
        %v439 = vsel %vm437, %v420, %v422
        %v440 = vsel %vm437, %v422, %v424
        %v441 = vsel %vm437, %v424, %v426
        %v442 = vsel %vm437, %v426, %v428
        %v443 = vsel %vm437, %v428, %v430
        %v444 = vsel %vm437, %v430, %v432
        %v445 = vsel %vm437, %v432, %v434
        %v446 = vsel %vm437, %v434, %v436
        %456 = vst [vmem:[#allocation2 + $0x90] sm:$0xf] %v438
        %457 = vst [vmem:[#allocation2 + $0x98] sm:$0xf] %v439
        %458 = vst [vmem:[#allocation2 + $0xa0] sm:$0xf] %v440
        %459 = vst [vmem:[#allocation2 + $0xa8] sm:$0xf] %v441
        %460 = vst [vmem:[#allocation2 + $0xb0] sm:$0xf] %v442
        %461 = vst [vmem:[#allocation2 + $0xb8] sm:$0xf] %v443
        %462 = vst [vmem:[#allocation2 + $0xc0] sm:$0xf] %v444
        %463 = vst [vmem:[#allocation2 + $0xc8] sm:$0xf] %v445
        %464 = vst [vmem:[#allocation2 + $0xd0] sm:$0xf] %v446
        %v465 = vld [vmem:[%s164] sm:$0xff]
        %v466 = vld [vmem:[%s164 + $0x8] sm:$0xff]
        %v467 = vld [vmem:[%s164 + $0x10] sm:$0xff]
        %v468 = vld [vmem:[%s164 + $0x18] sm:$0xff]
        %v469 = vld [vmem:[%s164 + $0x20] sm:$0xff]
        %v475 = vcombine.low %v465, %v465
        %v476 = vcombine.low %v466, %v466
        %v477 = vcombine.low %v467, %v467
        %v478 = vcombine.low %v468, %v468
        %v479 = vcombine.low %v469, %v469
        %480 = vrot.lane.b32.xlu0 %v475, 92
        %v481 = vpop.permute.xlu0 %480
        %482 = vrot.lane.b32.xlu0 %v465, 92
        %v483 = vpop.permute.xlu0 %482
        %484 = vrot.lane.b32.xlu0 %v476, 92
        %v485 = vpop.permute.xlu0 %484
        %486 = vrot.lane.b32.xlu0 %v466, 92
        %v487 = vpop.permute.xlu0 %486
        %488 = vrot.lane.b32.xlu0 %v477, 92
        %v489 = vpop.permute.xlu0 %488
        %490 = vrot.lane.b32.xlu0 %v467, 92
        %v491 = vpop.permute.xlu0 %490
        %492 = vrot.lane.b32.xlu0 %v478, 92
        %v493 = vpop.permute.xlu0 %492
        %494 = vrot.lane.b32.xlu0 %v468, 92
        %v495 = vpop.permute.xlu0 %494
        %496 = vrot.lane.b32.xlu0 %v479, 92
        %v497 = vpop.permute.xlu0 %496
        %498 = vrot.lane.b32.xlu0 %v469, 92
        %v499 = vpop.permute.xlu0 %498
        %vm500 = vcmask 752640
        %v501 = vsel %vm500, %v481, %v483
        %v502 = vsel %vm500, %v483, %v485
        %v503 = vsel %vm500, %v485, %v487
        %v504 = vsel %vm500, %v487, %v489
        %v505 = vsel %vm500, %v489, %v491
        %v506 = vsel %vm500, %v491, %v493
        %v507 = vsel %vm500, %v493, %v495
        %v508 = vsel %vm500, %v495, %v497
        %v509 = vsel %vm500, %v497, %v499
        %519 = vst [vmem:[#allocation2 + $0x90] sm:$0xf0] %v501
        %520 = vst [vmem:[#allocation2 + $0x98] sm:$0xf0] %v502
        %521 = vst [vmem:[#allocation2 + $0xa0] sm:$0xf0] %v503
        %522 = vst [vmem:[#allocation2 + $0xa8] sm:$0xf0] %v504
        %523 = vst [vmem:[#allocation2 + $0xb0] sm:$0xf0] %v505
        %524 = vst [vmem:[#allocation2 + $0xb8] sm:$0xf0] %v506
        %525 = vst [vmem:[#allocation2 + $0xc0] sm:$0xf0] %v507
        %526 = vst [vmem:[#allocation2 + $0xc8] sm:$0xf0] %v508
        %527 = vst [vmem:[#allocation2 + $0xd0] sm:$0xf0] %v509
        %v528 = vld [vmem:[%s164] sm:$0xff]
        %v529 = vld [vmem:[%s164 + $0x8] sm:$0xff]
        %v530 = vld [vmem:[%s164 + $0x10] sm:$0xff]
        %v531 = vld [vmem:[%s164 + $0x18] sm:$0xff]
        %v532 = vld [vmem:[%s164 + $0x20] sm:$0xff]
        %v538 = vcombine.high %v528, %v528
        %v539 = vcombine.high %v529, %v529
        %v540 = vcombine.high %v530, %v530
        %v541 = vcombine.high %v531, %v531
        %v542 = vcombine.high %v532, %v532
        %543 = vrot.lane.b32.xlu0 %v528, 60
        %v544 = vpop.permute.xlu0 %543
        %545 = vrot.lane.b32.xlu0 %v538, 60
        %v546 = vpop.permute.xlu0 %545
        %547 = vrot.lane.b32.xlu0 %v529, 60
        %v548 = vpop.permute.xlu0 %547
        %549 = vrot.lane.b32.xlu0 %v539, 60
        %v550 = vpop.permute.xlu0 %549
        %551 = vrot.lane.b32.xlu0 %v530, 60
        %v552 = vpop.permute.xlu0 %551
        %553 = vrot.lane.b32.xlu0 %v540, 60
        %v554 = vpop.permute.xlu0 %553
        %555 = vrot.lane.b32.xlu0 %v531, 60
        %v556 = vpop.permute.xlu0 %555
        %557 = vrot.lane.b32.xlu0 %v541, 60
        %v558 = vpop.permute.xlu0 %557
        %559 = vrot.lane.b32.xlu0 %v532, 60
        %v560 = vpop.permute.xlu0 %559
        %561 = vrot.lane.b32.xlu0 %v542, 60
        %v562 = vpop.permute.xlu0 %561
        %vm563 = vcmask 490496
        %v564 = vsel %vm563, %v544, %v546
        %v565 = vsel %vm563, %v546, %v548
        %v566 = vsel %vm563, %v548, %v550
        %v567 = vsel %vm563, %v550, %v552
        %v568 = vsel %vm563, %v552, %v554
        %v569 = vsel %vm563, %v554, %v556
        %v570 = vsel %vm563, %v556, %v558
        %v571 = vsel %vm563, %v558, %v560
        %v572 = vsel %vm563, %v560, %v562
        %582 = vst [vmem:[#allocation2 + $0xd8] sm:$0xf] %v564
        %583 = vst [vmem:[#allocation2 + $0xe0] sm:$0xf] %v565
        %584 = vst [vmem:[#allocation2 + $0xe8] sm:$0xf] %v566
        %585 = vst [vmem:[#allocation2 + $0xf0] sm:$0xf] %v567
        %586 = vst [vmem:[#allocation2 + $0xf8] sm:$0xf] %v568
        %587 = vst [vmem:[#allocation2 + $0x100] sm:$0xf] %v569
        %588 = vst [vmem:[#allocation2 + $0x108] sm:$0xf] %v570
        %589 = vst [vmem:[#allocation2 + $0x110] sm:$0xf] %v571
        %590 = vst [vmem:[#allocation2 + $0x118] sm:$0xf] %v572
        %v591 = vld [vmem:[%s164] sm:$0xff]
        %v592 = vld [vmem:[%s164 + $0x8] sm:$0xff]
        %v593 = vld [vmem:[%s164 + $0x10] sm:$0xff]
        %v594 = vld [vmem:[%s164 + $0x18] sm:$0xff]
        %v595 = vld [vmem:[%s164 + $0x20] sm:$0xff]
        %v601 = vcombine.low %v591, %v591
        %v602 = vcombine.low %v592, %v592
        %v603 = vcombine.low %v593, %v593
        %v604 = vcombine.low %v594, %v594
        %v605 = vcombine.low %v595, %v595
        %606 = vrot.lane.b32.xlu0 %v601, 59
        %v607 = vpop.permute.xlu0 %606
        %608 = vrot.lane.b32.xlu0 %v591, 59
        %v609 = vpop.permute.xlu0 %608
        %610 = vrot.lane.b32.xlu0 %v602, 59
        %v611 = vpop.permute.xlu0 %610
        %612 = vrot.lane.b32.xlu0 %v592, 59
        %v613 = vpop.permute.xlu0 %612
        %614 = vrot.lane.b32.xlu0 %v603, 59
        %v615 = vpop.permute.xlu0 %614
        %616 = vrot.lane.b32.xlu0 %v593, 59
        %v617 = vpop.permute.xlu0 %616
        %618 = vrot.lane.b32.xlu0 %v604, 59
        %v619 = vpop.permute.xlu0 %618
        %620 = vrot.lane.b32.xlu0 %v594, 59
        %v621 = vpop.permute.xlu0 %620
        %622 = vrot.lane.b32.xlu0 %v605, 59
        %v623 = vpop.permute.xlu0 %622
        %624 = vrot.lane.b32.xlu0 %v595, 59
        %v625 = vpop.permute.xlu0 %624
        %vm626 = vcmask 482304
        %v627 = vsel %vm626, %v607, %v609
        %v628 = vsel %vm626, %v609, %v611
        %v629 = vsel %vm626, %v611, %v613
        %v630 = vsel %vm626, %v613, %v615
        %v631 = vsel %vm626, %v615, %v617
        %v632 = vsel %vm626, %v617, %v619
        %v633 = vsel %vm626, %v619, %v621
        %v634 = vsel %vm626, %v621, %v623
        %v635 = vsel %vm626, %v623, %v625
        %645 = vst [vmem:[#allocation2 + $0xd8] sm:$0xf0] %v627
        %646 = vst [vmem:[#allocation2 + $0xe0] sm:$0xf0] %v628
        %647 = vst [vmem:[#allocation2 + $0xe8] sm:$0xf0] %v629
        %648 = vst [vmem:[#allocation2 + $0xf0] sm:$0xf0] %v630
        %649 = vst [vmem:[#allocation2 + $0xf8] sm:$0xf0] %v631
        %650 = vst [vmem:[#allocation2 + $0x100] sm:$0xf0] %v632
        %651 = vst [vmem:[#allocation2 + $0x108] sm:$0xf0] %v633
        %652 = vst [vmem:[#allocation2 + $0x110] sm:$0xf0] %v634
        %653 = vst [vmem:[#allocation2 + $0x118] sm:$0xf0] %v635
        %v654 = vld [vmem:[%s164] sm:$0xff]
        %v655 = vld [vmem:[%s164 + $0x8] sm:$0xff]
        %v656 = vld [vmem:[%s164 + $0x10] sm:$0xff]
        %v657 = vld [vmem:[%s164 + $0x18] sm:$0xff]
        %v658 = vld [vmem:[%s164 + $0x20] sm:$0xff]
        %v664 = vcombine.high %v654, %v654
        %v665 = vcombine.high %v655, %v655
        %v666 = vcombine.high %v656, %v656
        %v667 = vcombine.high %v657, %v657
        %v668 = vcombine.high %v658, %v658
        %669 = vrot.lane.b32.xlu0 %v654, 58
        %v670 = vpop.permute.xlu0 %669
        %671 = vrot.lane.b32.xlu0 %v664, 58
        %v672 = vpop.permute.xlu0 %671
        %673 = vrot.lane.b32.xlu0 %v655, 58
        %v674 = vpop.permute.xlu0 %673
        %675 = vrot.lane.b32.xlu0 %v665, 58
        %v676 = vpop.permute.xlu0 %675
        %677 = vrot.lane.b32.xlu0 %v656, 58
        %v678 = vpop.permute.xlu0 %677
        %679 = vrot.lane.b32.xlu0 %v666, 58
        %v680 = vpop.permute.xlu0 %679
        %681 = vrot.lane.b32.xlu0 %v657, 58
        %v682 = vpop.permute.xlu0 %681
        %683 = vrot.lane.b32.xlu0 %v667, 58
        %v684 = vpop.permute.xlu0 %683
        %685 = vrot.lane.b32.xlu0 %v658, 58
        %v686 = vpop.permute.xlu0 %685
        %687 = vrot.lane.b32.xlu0 %v668, 58
        %v688 = vpop.permute.xlu0 %687
        %vm689 = vcmask 474112
        %v690 = vsel %vm689, %v670, %v672
        %v691 = vsel %vm689, %v672, %v674
        %v692 = vsel %vm689, %v674, %v676
        %v693 = vsel %vm689, %v676, %v678
        %v694 = vsel %vm689, %v678, %v680
        %v695 = vsel %vm689, %v680, %v682
        %v696 = vsel %vm689, %v682, %v684
        %v697 = vsel %vm689, %v684, %v686
        %v698 = vsel %vm689, %v686, %v688
        %708 = vst [vmem:[#allocation2 + $0x120] sm:$0xf] %v690
        %709 = vst [vmem:[#allocation2 + $0x128] sm:$0xf] %v691
        %710 = vst [vmem:[#allocation2 + $0x130] sm:$0xf] %v692
        %711 = vst [vmem:[#allocation2 + $0x138] sm:$0xf] %v693
        %712 = vst [vmem:[#allocation2 + $0x140] sm:$0xf] %v694
        %713 = vst [vmem:[#allocation2 + $0x148] sm:$0xf] %v695
        %714 = vst [vmem:[#allocation2 + $0x150] sm:$0xf] %v696
        %715 = vst [vmem:[#allocation2 + $0x158] sm:$0xf] %v697
        %716 = vst [vmem:[#allocation2 + $0x160] sm:$0xf] %v698
        %v717 = vld [vmem:[%s0] sm:$0xff]
        %v718 = vld [vmem:[#allocation2] sm:$0xff]
        %v719 = vld [vmem:[#allocation2 + $0x8] sm:$0xff]
        %v720 = vld [vmem:[#allocation2 + $0x10] sm:$0xff]
        %v721 = vld [vmem:[#allocation2 + $0x18] sm:$0xff]
        %v722 = vld [vmem:[#allocation2 + $0x20] sm:$0xff]
        %v723 = vld [vmem:[#allocation2 + $0x28] sm:$0xff]
        %v724 = vld [vmem:[#allocation2 + $0x30] sm:$0xff]
        %v725 = vld [vmem:[#allocation2 + $0x38] sm:$0xff]
        %v726 = vld [vmem:[#allocation2 + $0x40] sm:$0xff]
        %v727 = vld [vmem:[#allocation2 + $0x48] sm:$0xff]
        %v728 = vld [vmem:[#allocation2 + $0x50] sm:$0xff]
        %v729 = vld [vmem:[#allocation2 + $0x58] sm:$0xff]
        %v730 = vld [vmem:[#allocation2 + $0x60] sm:$0xff]
        %v731 = vld [vmem:[#allocation2 + $0x68] sm:$0xff]
        %v732 = vld [vmem:[#allocation2 + $0x70] sm:$0xff]
        %v733 = vld [vmem:[#allocation2 + $0x78] sm:$0xff]
        %v734 = vld [vmem:[#allocation2 + $0x80] sm:$0xff]
        %v735 = vld [vmem:[#allocation2 + $0x88] sm:$0xff]
        %v736 = vld [vmem:[#allocation2 + $0x90] sm:$0xff]
        %v737 = vld [vmem:[#allocation2 + $0x98] sm:$0xff]
        %v738 = vld [vmem:[#allocation2 + $0xa0] sm:$0xff]
        %v739 = vld [vmem:[#allocation2 + $0xa8] sm:$0xff]
        %v740 = vld [vmem:[#allocation2 + $0xb0] sm:$0xff]
        %v741 = vld [vmem:[#allocation2 + $0xb8] sm:$0xff]
        %v742 = vld [vmem:[#allocation2 + $0xc0] sm:$0xff]
        %v743 = vld [vmem:[#allocation2 + $0xc8] sm:$0xff]
        %v744 = vld [vmem:[#allocation2 + $0xd0] sm:$0xff]
        %v745 = vld [vmem:[#allocation2 + $0xd8] sm:$0xff]
        %v746 = vld [vmem:[#allocation2 + $0xe0] sm:$0xff]
        %v747 = vld [vmem:[#allocation2 + $0xe8] sm:$0xff]
        %v748 = vld [vmem:[#allocation2 + $0xf0] sm:$0xff]
        %v749 = vld [vmem:[#allocation2 + $0xf8] sm:$0xff]
        %v750 = vld [vmem:[#allocation2 + $0x100] sm:$0xff]
        %v751 = vld [vmem:[#allocation2 + $0x108] sm:$0xff]
        %v752 = vld [vmem:[#allocation2 + $0x110] sm:$0xff]
        %v753 = vld [vmem:[#allocation2 + $0x118] sm:$0xff]
        %v754 = vld [vmem:[#allocation2 + $0x120] sm:$0xf]
        %v755 = vld [vmem:[#allocation2 + $0x128] sm:$0xf]
        %v756 = vld [vmem:[#allocation2 + $0x130] sm:$0xf]
        %v757 = vld [vmem:[#allocation2 + $0x138] sm:$0xf]
        %v758 = vld [vmem:[#allocation2 + $0x140] sm:$0xf]
        %v759 = vld [vmem:[#allocation2 + $0x148] sm:$0xf]
        %v760 = vld [vmem:[#allocation2 + $0x150] sm:$0xf]
        %v761 = vld [vmem:[#allocation2 + $0x158] sm:$0xf]
        %v762 = vld [vmem:[#allocation2 + $0x160] sm:$0xf]
        %v763 = vld [vmem:[%s1] sm:$0xff]
        %765 = vset.pattern.permute.xlu0 0
        %766 = vperm.xlu0 %765, %v763
        %v767 = vpop.permute.xlu0 %766
        %vm769 = vcmask 293888
        %v771 = vsel %vm769, %v717, 0
        %vm773 = vcmask 1043456
        %v775 = vsel %vm773, %v754, 0
        %v778 = vsel %vm773, %v755, 0
        %v781 = vsel %vm773, %v756, 0
        %v784 = vsel %vm773, %v757, 0
        %v787 = vsel %vm773, %v758, 0
        %v790 = vsel %vm773, %v759, 0
        %v793 = vsel %vm773, %v760, 0
        %v796 = vsel %vm773, %v761, 0
        %v799 = vsel %vm773, %v762, 0
        %v801 = vand.u32 %v719, 4294901760
        %802 = vmatprep.subr.mxu0 %v801
        %v803 = vand.u32 %v718, 4294901760
        %804 = vmatpush1.msra.mxu0 %v803
        %v805 = vand.u32 %v728, 4294901760
        %806 = vmatprep.subr.mxu0 %v805
        %v807 = vand.u32 %v727, 4294901760
        %808 = vmatpush1.msra.mxu0 %v807
        %v809 = vand.u32 %v737, 4294901760
        %810 = vmatprep.subr.mxu0 %v809
        %v811 = vand.u32 %v736, 4294901760
        %812 = vmatpush1.msra.mxu0 %v811
        %v813 = vand.u32 %v746, 4294901760
        %814 = vmatprep.subr.mxu0 %v813
        %v815 = vand.u32 %v745, 4294901760
        %816 = vmatpush1.msra.mxu0 %v815
        %v817 = vand.u32 %v778, 4294901760
        %818 = vmatprep.subr.mxu0 %v817
        %v819 = vand.u32 %v775, 4294901760
        %820 = vmatpush1.msra.mxu0 %v819
        %821 = vmatprep.subr.mxu0 0.0
        %822 = vmatpush1.msra.mxu0 0.0
        %823 = vmatprep.subr.mxu0 0.0
        %824 = vmatpush1.msra.mxu0 0.0
        %825 = vmatprep.subr.mxu0 0.0
        %826 = vmatpush1.msra.mxu0 0.0
        %827 = vmatprep.subr.mxu0 0.0
        %828 = vmatpush1.msra.mxu0 0.0
        %829 = vmatprep.subr.mxu0 0.0
        %830 = vmatpush1.msra.mxu0 0.0
        %831 = vmatprep.subr.mxu0 0.0
        %832 = vmatpush1.msra.mxu0 0.0
        %833 = vmatprep.subr.mxu0 0.0
        %834 = vmatpush1.msra.mxu0 0.0
        %835 = vmatprep.subr.mxu0 0.0
        %836 = vmatpush1.msra.mxu0 0.0
        %837 = vmatprep.subr.mxu0 0.0
        %838 = vmatpush1.msra.mxu0 0.0
        %839 = vmatprep.subr.mxu0 0.0
        %840 = vmatpush1.msra.mxu0 0.0
        %841 = vmatprep.subr.mxu0 0.0
        %842 = vmatpush1.msra.mxu0 0.0
        %843 = vmatprep.subr.mxu0 0.0
        %844 = vmatpush1.msra.mxu0 0.0
        %845 = vmatprep.subr.mxu0 0.0
        %846 = vmatpush1.msra.mxu0 0.0
        %847 = vmatprep.subr.mxu0 0.0
        %848 = vmatpush1.msra.mxu0 0.0
        %849 = vmatprep.subr.mxu0 0.0
        %850 = vmatpush1.msra.mxu0 0.0
        %851 = vmatprep.subr.mxu0 0.0
        %852 = vmatpush1.msra.mxu0 0.0
        %853 = vmatprep.subr.mxu0 0.0
        %854 = vmatpush1.msra.mxu0 0.0
        %855 = vmatprep.subr.mxu0 0.0
        %856 = vmatpush1.msra.mxu0 0.0
        %857 = vmatprep.subr.mxu0 0.0
        %858 = vmatpush1.msra.mxu0 0.0
        %859 = vmatprep.subr.mxu0 0.0
        %860 = vmatpush1.msra.mxu0 0.0
        %861 = vmatprep.subr.mxu0 0.0
        %862 = vmatpush1.msra.mxu0 0.0
        %863 = vmatprep.subr.mxu0 0.0
        %864 = vmatpush1.msra.mxu0 0.0
        %865 = vmatprep.subr.mxu0 0.0
        %866 = vmatpush1.msra.mxu0 0.0
        %867 = vmatprep.subr.mxu0 0.0
        %868 = vmatpush1.msra.mxu0 0.0
        %869 = vmatprep.subr.mxu0 0.0
        %870 = vmatpush1.msra.mxu0 0.0
        %871 = vmatprep.subr.mxu0 0.0
        %872 = vmatpush1.msra.mxu0 0.0
        %873 = vmatprep.subr.mxu0 0.0
        %874 = vmatpush1.msra.mxu0 0.0
        %875 = vmatprep.mubr.f32.mxu0 0.0
        %v876 = vand.u32 %v771, 4294901760
        %v877 = vsub.f32 %v771, %v876
        %v878 = vand.u32 %v877, 4294901760
        %v879 = vsub.f32 %v877, %v878
        %v880 = vand.u32 %v879, 4294901760
        %881 = vmatmul.mubr.f32.gmra.mrb[0].mxu0 %v880
        %v882 = vpop.f32.mrb[0].mxu0
        %v883 = vadd.f32 %v767, %v882
        %v884 = vpop.f32.mrb[0].mxu0
        %v885 = vadd.f32 %v767, %v884
        %886 = vdwg.mxu0
        %v887 = vand.u32 %v719, 4294901760
        %v888 = vsub.f32 %v719, %v887
        %v889 = vand.u32 %v888, 4294901760
        %v890 = vsub.f32 %v888, %v889
        %v891 = vand.u32 %v890, 4294901760
        %892 = vmatprep.subr.mxu0 %v891
        %v893 = vand.u32 %v718, 4294901760
        %v894 = vsub.f32 %v718, %v893
        %v895 = vand.u32 %v894, 4294901760
        %v896 = vsub.f32 %v894, %v895
        %v897 = vand.u32 %v896, 4294901760
        %898 = vmatpush1.msra.mxu0 %v897
        %v899 = vand.u32 %v728, 4294901760
        %v900 = vsub.f32 %v728, %v899
        %v901 = vand.u32 %v900, 4294901760
        %v902 = vsub.f32 %v900, %v901
        %v903 = vand.u32 %v902, 4294901760
        %904 = vmatprep.subr.mxu0 %v903
        %v905 = vand.u32 %v727, 4294901760
        %v906 = vsub.f32 %v727, %v905
        %v907 = vand.u32 %v906, 4294901760
        %v908 = vsub.f32 %v906, %v907
        %v909 = vand.u32 %v908, 4294901760
        %910 = vmatpush1.msra.mxu0 %v909
        %v911 = vand.u32 %v737, 4294901760
        %v912 = vsub.f32 %v737, %v911
        %v913 = vand.u32 %v912, 4294901760
        %v914 = vsub.f32 %v912, %v913
        %v915 = vand.u32 %v914, 4294901760
        %916 = vmatprep.subr.mxu0 %v915
        %v917 = vand.u32 %v736, 4294901760
        %v918 = vsub.f32 %v736, %v917
        %v919 = vand.u32 %v918, 4294901760
        %v920 = vsub.f32 %v918, %v919
        %v921 = vand.u32 %v920, 4294901760
        %922 = vmatpush1.msra.mxu0 %v921
        %v923 = vand.u32 %v746, 4294901760
        %v924 = vsub.f32 %v746, %v923
        %v925 = vand.u32 %v924, 4294901760
        %v926 = vsub.f32 %v924, %v925
        %v927 = vand.u32 %v926, 4294901760
        %928 = vmatprep.subr.mxu0 %v927
        %v929 = vand.u32 %v745, 4294901760
        %v930 = vsub.f32 %v745, %v929
        %v931 = vand.u32 %v930, 4294901760
        %v932 = vsub.f32 %v930, %v931
        %v933 = vand.u32 %v932, 4294901760
        %934 = vmatpush1.msra.mxu0 %v933
        %v935 = vand.u32 %v778, 4294901760
        %v936 = vsub.f32 %v778, %v935
        %v937 = vand.u32 %v936, 4294901760
        %v938 = vsub.f32 %v936, %v937
        %v939 = vand.u32 %v938, 4294901760
        %940 = vmatprep.subr.mxu0 %v939
        %v941 = vand.u32 %v775, 4294901760
        %v942 = vsub.f32 %v775, %v941
        %v943 = vand.u32 %v942, 4294901760
        %v944 = vsub.f32 %v942, %v943
        %v945 = vand.u32 %v944, 4294901760
        %946 = vmatpush1.msra.mxu0 %v945
        %947 = vmatprep.subr.mxu0 0.0
        %948 = vmatpush1.msra.mxu0 0.0
        %949 = vmatprep.subr.mxu0 0.0
        %950 = vmatpush1.msra.mxu0 0.0
        %951 = vmatprep.subr.mxu0 0.0
        %952 = vmatpush1.msra.mxu0 0.0
        %953 = vmatprep.subr.mxu0 0.0
        %954 = vmatpush1.msra.mxu0 0.0
        %955 = vmatprep.subr.mxu0 0.0
        %956 = vmatpush1.msra.mxu0 0.0
        %957 = vmatprep.subr.mxu0 0.0
        %958 = vmatpush1.msra.mxu0 0.0
        %959 = vmatprep.subr.mxu0 0.0
        %960 = vmatpush1.msra.mxu0 0.0
        %961 = vmatprep.subr.mxu0 0.0
        %962 = vmatpush1.msra.mxu0 0.0
        %963 = vmatprep.subr.mxu0 0.0
        %964 = vmatpush1.msra.mxu0 0.0
        %965 = vmatprep.subr.mxu0 0.0
        %966 = vmatpush1.msra.mxu0 0.0
        %967 = vmatprep.subr.mxu0 0.0
        %968 = vmatpush1.msra.mxu0 0.0
        %969 = vmatprep.subr.mxu0 0.0
        %970 = vmatpush1.msra.mxu0 0.0
        %971 = vmatprep.subr.mxu0 0.0
        %972 = vmatpush1.msra.mxu0 0.0
        %973 = vmatprep.subr.mxu0 0.0
        %974 = vmatpush1.msra.mxu0 0.0
        %975 = vmatprep.subr.mxu0 0.0
        %976 = vmatpush1.msra.mxu0 0.0
        %977 = vmatprep.subr.mxu0 0.0
        %978 = vmatpush1.msra.mxu0 0.0
        %979 = vmatprep.subr.mxu0 0.0
        %980 = vmatpush1.msra.mxu0 0.0
        %981 = vmatprep.subr.mxu0 0.0
        %982 = vmatpush1.msra.mxu0 0.0
        %983 = vmatprep.subr.mxu0 0.0
        %984 = vmatpush1.msra.mxu0 0.0
        %985 = vmatprep.subr.mxu0 0.0
        %986 = vmatpush1.msra.mxu0 0.0
        %987 = vmatprep.subr.mxu0 0.0
        %988 = vmatpush1.msra.mxu0 0.0
        %989 = vmatprep.subr.mxu0 0.0
        %990 = vmatpush1.msra.mxu0 0.0
        %991 = vmatprep.subr.mxu0 0.0
        %992 = vmatpush1.msra.mxu0 0.0
        %993 = vmatprep.subr.mxu0 0.0
        %994 = vmatpush1.msra.mxu0 0.0
        %995 = vmatprep.subr.mxu0 0.0
        %996 = vmatpush1.msra.mxu0 0.0
        %997 = vmatprep.subr.mxu0 0.0
        %998 = vmatpush1.msra.mxu0 0.0
        %999 = vmatprep.subr.mxu0 0.0
        %1000 = vmatpush1.msra.mxu0 0.0
        %1001 = vmatprep.mubr.f32.mxu0 0.0
        %v1002 = vand.u32 %v771, 4294901760
        %1003 = vmatmul.mubr.f32.gmra.mrb[0].mxu0 %v1002
        %v1004 = vpop.f32.mrb[0].mxu0
        %v1005 = vadd.f32 %v883, %v1004
        %v1006 = vpop.f32.mrb[0].mxu0
        %v1007 = vadd.f32 %v885, %v1006
        %1008 = vdwg.mxu0
        %v1009 = vand.u32 %v719, 4294901760
        %v1010 = vsub.f32 %v719, %v1009
        %1011 = vmatprep.subr.mxu0 %v1010
        %v1012 = vand.u32 %v718, 4294901760
        %v1013 = vsub.f32 %v718, %v1012
        %1014 = vmatpush1.msra.mxu0 %v1013
        %v1015 = vand.u32 %v728, 4294901760
        %v1016 = vsub.f32 %v728, %v1015
        %1017 = vmatprep.subr.mxu0 %v1016
        %v1018 = vand.u32 %v727, 4294901760
        %v1019 = vsub.f32 %v727, %v1018
        %1020 = vmatpush1.msra.mxu0 %v1019
        %v1021 = vand.u32 %v737, 4294901760
        %v1022 = vsub.f32 %v737, %v1021
        %1023 = vmatprep.subr.mxu0 %v1022
        %v1024 = vand.u32 %v736, 4294901760
        %v1025 = vsub.f32 %v736, %v1024
        %1026 = vmatpush1.msra.mxu0 %v1025
        %v1027 = vand.u32 %v746, 4294901760
        %v1028 = vsub.f32 %v746, %v1027
        %1029 = vmatprep.subr.mxu0 %v1028
        %v1030 = vand.u32 %v745, 4294901760
        %v1031 = vsub.f32 %v745, %v1030
        %1032 = vmatpush1.msra.mxu0 %v1031
        %v1033 = vand.u32 %v778, 4294901760
        %v1034 = vsub.f32 %v778, %v1033
        %1035 = vmatprep.subr.mxu0 %v1034
        %v1036 = vand.u32 %v775, 4294901760
        %v1037 = vsub.f32 %v775, %v1036
        %1038 = vmatpush1.msra.mxu0 %v1037
        %1039 = vmatprep.subr.mxu0 0.0
        %1040 = vmatpush1.msra.mxu0 0.0
        %1041 = vmatprep.subr.mxu0 0.0
        %1042 = vmatpush1.msra.mxu0 0.0
        %1043 = vmatprep.subr.mxu0 0.0
        %1044 = vmatpush1.msra.mxu0 0.0
        %1045 = vmatprep.subr.mxu0 0.0
        %1046 = vmatpush1.msra.mxu0 0.0
        %1047 = vmatprep.subr.mxu0 0.0
        %1048 = vmatpush1.msra.mxu0 0.0
        %1049 = vmatprep.subr.mxu0 0.0
        %1050 = vmatpush1.msra.mxu0 0.0
        %1051 = vmatprep.subr.mxu0 0.0
        %1052 = vmatpush1.msra.mxu0 0.0
        %1053 = vmatprep.subr.mxu0 0.0
        %1054 = vmatpush1.msra.mxu0 0.0
        %1055 = vmatprep.subr.mxu0 0.0
        %1056 = vmatpush1.msra.mxu0 0.0
        %1057 = vmatprep.subr.mxu0 0.0
        %1058 = vmatpush1.msra.mxu0 0.0
        %1059 = vmatprep.subr.mxu0 0.0
        %1060 = vmatpush1.msra.mxu0 0.0
        %1061 = vmatprep.subr.mxu0 0.0
        %1062 = vmatpush1.msra.mxu0 0.0
        %1063 = vmatprep.subr.mxu0 0.0
        %1064 = vmatpush1.msra.mxu0 0.0
        %1065 = vmatprep.subr.mxu0 0.0
        %1066 = vmatpush1.msra.mxu0 0.0
        %1067 = vmatprep.subr.mxu0 0.0
        %1068 = vmatpush1.msra.mxu0 0.0
        %1069 = vmatprep.subr.mxu0 0.0
        %1070 = vmatpush1.msra.mxu0 0.0
        %1071 = vmatprep.subr.mxu0 0.0
        %1072 = vmatpush1.msra.mxu0 0.0
        %1073 = vmatprep.subr.mxu0 0.0
        %1074 = vmatpush1.msra.mxu0 0.0
        %1075 = vmatprep.subr.mxu0 0.0
        %1076 = vmatpush1.msra.mxu0 0.0
        %1077 = vmatprep.subr.mxu0 0.0
        %1078 = vmatpush1.msra.mxu0 0.0
        %1079 = vmatprep.subr.mxu0 0.0
        %1080 = vmatpush1.msra.mxu0 0.0
        %1081 = vmatprep.subr.mxu0 0.0
        %1082 = vmatpush1.msra.mxu0 0.0
        %1083 = vmatprep.subr.mxu0 0.0
        %1084 = vmatpush1.msra.mxu0 0.0
        %1085 = vmatprep.subr.mxu0 0.0
        %1086 = vmatpush1.msra.mxu0 0.0
        %1087 = vmatprep.subr.mxu0 0.0
        %1088 = vmatpush1.msra.mxu0 0.0
        %1089 = vmatprep.subr.mxu0 0.0
        %1090 = vmatpush1.msra.mxu0 0.0
        %1091 = vmatprep.subr.mxu0 0.0
        %1092 = vmatpush1.msra.mxu0 0.0
        %1093 = vmatprep.mubr.f32.mxu0 0.0
        %v1094 = vand.u32 %v771, 4294901760
        %v1095 = vsub.f32 %v771, %v1094
        %1096 = vmatmul.mubr.f32.gmra.mrb[0].mxu0 %v1095
        %v1097 = vpop.f32.mrb[0].mxu0
        %v1098 = vadd.f32 %v1005, %v1097
        %v1099 = vpop.f32.mrb[0].mxu0
        %v1100 = vadd.f32 %v1007, %v1099
        %1101 = vdwg.mxu0
        %v1102 = vand.u32 %v719, 4294901760
        %1103 = vmatprep.subr.mxu0 %v1102
        %v1104 = vand.u32 %v718, 4294901760
        %1105 = vmatpush1.msra.mxu0 %v1104
        %v1106 = vand.u32 %v728, 4294901760
        %1107 = vmatprep.subr.mxu0 %v1106
        %v1108 = vand.u32 %v727, 4294901760
        %1109 = vmatpush1.msra.mxu0 %v1108
        %v1110 = vand.u32 %v737, 4294901760
        %1111 = vmatprep.subr.mxu0 %v1110
        %v1112 = vand.u32 %v736, 4294901760
        %1113 = vmatpush1.msra.mxu0 %v1112
        %v1114 = vand.u32 %v746, 4294901760
        %1115 = vmatprep.subr.mxu0 %v1114
        %v1116 = vand.u32 %v745, 4294901760
        %1117 = vmatpush1.msra.mxu0 %v1116
        %v1118 = vand.u32 %v778, 4294901760
        %1119 = vmatprep.subr.mxu0 %v1118
        %v1120 = vand.u32 %v775, 4294901760
        %1121 = vmatpush1.msra.mxu0 %v1120
        %1122 = vmatprep.subr.mxu0 0.0
        %1123 = vmatpush1.msra.mxu0 0.0
        %1124 = vmatprep.subr.mxu0 0.0
        %1125 = vmatpush1.msra.mxu0 0.0
        %1126 = vmatprep.subr.mxu0 0.0
        %1127 = vmatpush1.msra.mxu0 0.0
        %1128 = vmatprep.subr.mxu0 0.0
        %1129 = vmatpush1.msra.mxu0 0.0
        %1130 = vmatprep.subr.mxu0 0.0
        %1131 = vmatpush1.msra.mxu0 0.0
        %1132 = vmatprep.subr.mxu0 0.0
        %1133 = vmatpush1.msra.mxu0 0.0
        %1134 = vmatprep.subr.mxu0 0.0
        %1135 = vmatpush1.msra.mxu0 0.0
        %1136 = vmatprep.subr.mxu0 0.0
        %1137 = vmatpush1.msra.mxu0 0.0
        %1138 = vmatprep.subr.mxu0 0.0
        %1139 = vmatpush1.msra.mxu0 0.0
        %1140 = vmatprep.subr.mxu0 0.0
        %1141 = vmatpush1.msra.mxu0 0.0
        %1142 = vmatprep.subr.mxu0 0.0
        %1143 = vmatpush1.msra.mxu0 0.0
        %1144 = vmatprep.subr.mxu0 0.0
        %1145 = vmatpush1.msra.mxu0 0.0
        %1146 = vmatprep.subr.mxu0 0.0
        %1147 = vmatpush1.msra.mxu0 0.0
        %1148 = vmatprep.subr.mxu0 0.0
        %1149 = vmatpush1.msra.mxu0 0.0
        %1150 = vmatprep.subr.mxu0 0.0
        %1151 = vmatpush1.msra.mxu0 0.0
        %1152 = vmatprep.subr.mxu0 0.0
        %1153 = vmatpush1.msra.mxu0 0.0
        %1154 = vmatprep.subr.mxu0 0.0
        %1155 = vmatpush1.msra.mxu0 0.0
        %1156 = vmatprep.subr.mxu0 0.0
        %1157 = vmatpush1.msra.mxu0 0.0
        %1158 = vmatprep.subr.mxu0 0.0
        %1159 = vmatpush1.msra.mxu0 0.0
        %1160 = vmatprep.subr.mxu0 0.0
        %1161 = vmatpush1.msra.mxu0 0.0
        %1162 = vmatprep.subr.mxu0 0.0
        %1163 = vmatpush1.msra.mxu0 0.0
        %1164 = vmatprep.subr.mxu0 0.0
        %1165 = vmatpush1.msra.mxu0 0.0
        %1166 = vmatprep.subr.mxu0 0.0
        %1167 = vmatpush1.msra.mxu0 0.0
        %1168 = vmatprep.subr.mxu0 0.0
        %1169 = vmatpush1.msra.mxu0 0.0
        %1170 = vmatprep.subr.mxu0 0.0
        %1171 = vmatpush1.msra.mxu0 0.0
        %1172 = vmatprep.subr.mxu0 0.0
        %1173 = vmatpush1.msra.mxu0 0.0
        %1174 = vmatprep.subr.mxu0 0.0
        %1175 = vmatpush1.msra.mxu0 0.0
        %1176 = vmatprep.mubr.f32.mxu0 0.0
        %v1177 = vand.u32 %v771, 4294901760
        %v1178 = vsub.f32 %v771, %v1177
        %v1179 = vand.u32 %v1178, 4294901760
        %1180 = vmatmul.mubr.f32.gmra.mrb[0].mxu0 %v1179
        %v1181 = vpop.f32.mrb[0].mxu0
        %v1182 = vadd.f32 %v1098, %v1181
        %v1183 = vpop.f32.mrb[0].mxu0
        %v1184 = vadd.f32 %v1100, %v1183
        %1185 = vdwg.mxu0
        %v1186 = vand.u32 %v719, 4294901760
        %v1187 = vsub.f32 %v719, %v1186
        %v1188 = vand.u32 %v1187, 4294901760
        %1189 = vmatprep.subr.mxu0 %v1188
        %v1190 = vand.u32 %v718, 4294901760
        %v1191 = vsub.f32 %v718, %v1190
        %v1192 = vand.u32 %v1191, 4294901760
        %1193 = vmatpush1.msra.mxu0 %v1192
        %v1194 = vand.u32 %v728, 4294901760
        %v1195 = vsub.f32 %v728, %v1194
        %v1196 = vand.u32 %v1195, 4294901760
        %1197 = vmatprep.subr.mxu0 %v1196
        %v1198 = vand.u32 %v727, 4294901760
        %v1199 = vsub.f32 %v727, %v1198
        %v1200 = vand.u32 %v1199, 4294901760
        %1201 = vmatpush1.msra.mxu0 %v1200
        %v1202 = vand.u32 %v737, 4294901760
        %v1203 = vsub.f32 %v737, %v1202
        %v1204 = vand.u32 %v1203, 4294901760
        %1205 = vmatprep.subr.mxu0 %v1204
        %v1206 = vand.u32 %v736, 4294901760
        %v1207 = vsub.f32 %v736, %v1206
        %v1208 = vand.u32 %v1207, 4294901760
        %1209 = vmatpush1.msra.mxu0 %v1208
        %v1210 = vand.u32 %v746, 4294901760
        %v1211 = vsub.f32 %v746, %v1210
        %v1212 = vand.u32 %v1211, 4294901760
        %1213 = vmatprep.subr.mxu0 %v1212
        %v1214 = vand.u32 %v745, 4294901760
        %v1215 = vsub.f32 %v745, %v1214
        %v1216 = vand.u32 %v1215, 4294901760
        %1217 = vmatpush1.msra.mxu0 %v1216
        %v1218 = vand.u32 %v778, 4294901760
        %v1219 = vsub.f32 %v778, %v1218
        %v1220 = vand.u32 %v1219, 4294901760
        %1221 = vmatprep.subr.mxu0 %v1220
        %v1222 = vand.u32 %v775, 4294901760
        %v1223 = vsub.f32 %v775, %v1222
        %v1224 = vand.u32 %v1223, 4294901760
        %1225 = vmatpush1.msra.mxu0 %v1224
        %1226 = vmatprep.subr.mxu0 0.0
        %1227 = vmatpush1.msra.mxu0 0.0
        %1228 = vmatprep.subr.mxu0 0.0
        %1229 = vmatpush1.msra.mxu0 0.0
        %1230 = vmatprep.subr.mxu0 0.0
        %1231 = vmatpush1.msra.mxu0 0.0
        %1232 = vmatprep.subr.mxu0 0.0
        %1233 = vmatpush1.msra.mxu0 0.0
        %1234 = vmatprep.subr.mxu0 0.0
        %1235 = vmatpush1.msra.mxu0 0.0
        %1236 = vmatprep.subr.mxu0 0.0
        %1237 = vmatpush1.msra.mxu0 0.0
        %1238 = vmatprep.subr.mxu0 0.0
        %1239 = vmatpush1.msra.mxu0 0.0
        %1240 = vmatprep.subr.mxu0 0.0
        %1241 = vmatpush1.msra.mxu0 0.0
        %1242 = vmatprep.subr.mxu0 0.0
        %1243 = vmatpush1.msra.mxu0 0.0
        %1244 = vmatprep.subr.mxu0 0.0
        %1245 = vmatpush1.msra.mxu0 0.0
        %1246 = vmatprep.subr.mxu0 0.0
        %1247 = vmatpush1.msra.mxu0 0.0
        %1248 = vmatprep.subr.mxu0 0.0
        %1249 = vmatpush1.msra.mxu0 0.0
        %1250 = vmatprep.subr.mxu0 0.0
        %1251 = vmatpush1.msra.mxu0 0.0
        %1252 = vmatprep.subr.mxu0 0.0
        %1253 = vmatpush1.msra.mxu0 0.0
        %1254 = vmatprep.subr.mxu0 0.0
        %1255 = vmatpush1.msra.mxu0 0.0
        %1256 = vmatprep.subr.mxu0 0.0
        %1257 = vmatpush1.msra.mxu0 0.0
        %1258 = vmatprep.subr.mxu0 0.0
        %1259 = vmatpush1.msra.mxu0 0.0
        %1260 = vmatprep.subr.mxu0 0.0
        %1261 = vmatpush1.msra.mxu0 0.0
        %1262 = vmatprep.subr.mxu0 0.0
        %1263 = vmatpush1.msra.mxu0 0.0
        %1264 = vmatprep.subr.mxu0 0.0
        %1265 = vmatpush1.msra.mxu0 0.0
        %1266 = vmatprep.subr.mxu0 0.0
        %1267 = vmatpush1.msra.mxu0 0.0
        %1268 = vmatprep.subr.mxu0 0.0
        %1269 = vmatpush1.msra.mxu0 0.0
        %1270 = vmatprep.subr.mxu0 0.0
        %1271 = vmatpush1.msra.mxu0 0.0
        %1272 = vmatprep.subr.mxu0 0.0
        %1273 = vmatpush1.msra.mxu0 0.0
        %1274 = vmatprep.subr.mxu0 0.0
        %1275 = vmatpush1.msra.mxu0 0.0
        %1276 = vmatprep.subr.mxu0 0.0
        %1277 = vmatpush1.msra.mxu0 0.0
        %1278 = vmatprep.subr.mxu0 0.0
        %1279 = vmatpush1.msra.mxu0 0.0
        %1280 = vmatprep.mubr.f32.mxu0 0.0
        %v1281 = vand.u32 %v771, 4294901760
        %1282 = vmatmul.mubr.f32.gmra.mrb[0].mxu0 %v1281
        %v1283 = vpop.f32.mrb[0].mxu0
        %v1284 = vadd.f32 %v1182, %v1283
        %v1285 = vpop.f32.mrb[0].mxu0
        %v1286 = vadd.f32 %v1184, %v1285
        %1287 = vdwg.mxu0
        %v1288 = vand.u32 %v719, 4294901760
        %1289 = vmatprep.subr.mxu0 %v1288
        %v1290 = vand.u32 %v718, 4294901760
        %1291 = vmatpush1.msra.mxu0 %v1290
        %v1292 = vand.u32 %v728, 4294901760
        %1293 = vmatprep.subr.mxu0 %v1292
        %v1294 = vand.u32 %v727, 4294901760
        %1295 = vmatpush1.msra.mxu0 %v1294
        %v1296 = vand.u32 %v737, 4294901760
        %1297 = vmatprep.subr.mxu0 %v1296
        %v1298 = vand.u32 %v736, 4294901760
        %1299 = vmatpush1.msra.mxu0 %v1298
        %v1300 = vand.u32 %v746, 4294901760
        %1301 = vmatprep.subr.mxu0 %v1300
        %v1302 = vand.u32 %v745, 4294901760
        %1303 = vmatpush1.msra.mxu0 %v1302
        %v1304 = vand.u32 %v778, 4294901760
        %1305 = vmatprep.subr.mxu0 %v1304
        %v1306 = vand.u32 %v775, 4294901760
        %1307 = vmatpush1.msra.mxu0 %v1306
        %1308 = vmatprep.subr.mxu0 0.0
        %1309 = vmatpush1.msra.mxu0 0.0
        %1310 = vmatprep.subr.mxu0 0.0
        %1311 = vmatpush1.msra.mxu0 0.0
        %1312 = vmatprep.subr.mxu0 0.0
        %1313 = vmatpush1.msra.mxu0 0.0
        %1314 = vmatprep.subr.mxu0 0.0
        %1315 = vmatpush1.msra.mxu0 0.0
        %1316 = vmatprep.subr.mxu0 0.0
        %1317 = vmatpush1.msra.mxu0 0.0
        %1318 = vmatprep.subr.mxu0 0.0
        %1319 = vmatpush1.msra.mxu0 0.0
        %1320 = vmatprep.subr.mxu0 0.0
        %1321 = vmatpush1.msra.mxu0 0.0
        %1322 = vmatprep.subr.mxu0 0.0
        %1323 = vmatpush1.msra.mxu0 0.0
        %1324 = vmatprep.subr.mxu0 0.0
        %1325 = vmatpush1.msra.mxu0 0.0
        %1326 = vmatprep.subr.mxu0 0.0
        %1327 = vmatpush1.msra.mxu0 0.0
        %1328 = vmatprep.subr.mxu0 0.0
        %1329 = vmatpush1.msra.mxu0 0.0
        %1330 = vmatprep.subr.mxu0 0.0
        %1331 = vmatpush1.msra.mxu0 0.0
        %1332 = vmatprep.subr.mxu0 0.0
        %1333 = vmatpush1.msra.mxu0 0.0
        %1334 = vmatprep.subr.mxu0 0.0
        %1335 = vmatpush1.msra.mxu0 0.0
        %1336 = vmatprep.subr.mxu0 0.0
        %1337 = vmatpush1.msra.mxu0 0.0
        %1338 = vmatprep.subr.mxu0 0.0
        %1339 = vmatpush1.msra.mxu0 0.0
        %1340 = vmatprep.subr.mxu0 0.0
        %1341 = vmatpush1.msra.mxu0 0.0
        %1342 = vmatprep.subr.mxu0 0.0
        %1343 = vmatpush1.msra.mxu0 0.0
        %1344 = vmatprep.subr.mxu0 0.0
        %1345 = vmatpush1.msra.mxu0 0.0
        %1346 = vmatprep.subr.mxu0 0.0
        %1347 = vmatpush1.msra.mxu0 0.0
        %1348 = vmatprep.subr.mxu0 0.0
        %1349 = vmatpush1.msra.mxu0 0.0
        %1350 = vmatprep.subr.mxu0 0.0
        %1351 = vmatpush1.msra.mxu0 0.0
        %1352 = vmatprep.subr.mxu0 0.0
        %1353 = vmatpush1.msra.mxu0 0.0
        %1354 = vmatprep.subr.mxu0 0.0
        %1355 = vmatpush1.msra.mxu0 0.0
        %1356 = vmatprep.subr.mxu0 0.0
        %1357 = vmatpush1.msra.mxu0 0.0
        %1358 = vmatprep.subr.mxu0 0.0
        %1359 = vmatpush1.msra.mxu0 0.0
        %1360 = vmatprep.subr.mxu0 0.0
        %1361 = vmatpush1.msra.mxu0 0.0
        %1362 = vmatprep.mubr.f32.mxu0 0.0
        %v1363 = vand.u32 %v771, 4294901760
        %1364 = vmatmul.mubr.f32.gmra.mrb[0].mxu0 %v1363
        %v1365 = vpop.f32.mrb[0].mxu0
        %v1366 = vadd.f32 %v1284, %v1365
        %v1367 = vpop.f32.mrb[0].mxu0
        %v1368 = vadd.f32 %v1286, %v1367
        %1369 = vdwg.mxu0
        %v1370 = vand.u32 %v721, 4294901760
        %1371 = vmatprep.subr.mxu0 %v1370
        %v1372 = vand.u32 %v720, 4294901760
        %1373 = vmatpush1.msra.mxu0 %v1372
        %v1374 = vand.u32 %v730, 4294901760
        %1375 = vmatprep.subr.mxu0 %v1374
        %v1376 = vand.u32 %v729, 4294901760
        %1377 = vmatpush1.msra.mxu0 %v1376
        %v1378 = vand.u32 %v739, 4294901760
        %1379 = vmatprep.subr.mxu0 %v1378
        %v1380 = vand.u32 %v738, 4294901760
        %1381 = vmatpush1.msra.mxu0 %v1380
        %v1382 = vand.u32 %v748, 4294901760
        %1383 = vmatprep.subr.mxu0 %v1382
        %v1384 = vand.u32 %v747, 4294901760
        %1385 = vmatpush1.msra.mxu0 %v1384
        %v1386 = vand.u32 %v784, 4294901760
        %1387 = vmatprep.subr.mxu0 %v1386
        %v1388 = vand.u32 %v781, 4294901760
        %1389 = vmatpush1.msra.mxu0 %v1388
        %1390 = vmatprep.subr.mxu0 0.0
        %1391 = vmatpush1.msra.mxu0 0.0
        %1392 = vmatprep.subr.mxu0 0.0
        %1393 = vmatpush1.msra.mxu0 0.0
        %1394 = vmatprep.subr.mxu0 0.0
        %1395 = vmatpush1.msra.mxu0 0.0
        %1396 = vmatprep.subr.mxu0 0.0
        %1397 = vmatpush1.msra.mxu0 0.0
        %1398 = vmatprep.subr.mxu0 0.0
        %1399 = vmatpush1.msra.mxu0 0.0
        %1400 = vmatprep.subr.mxu0 0.0
        %1401 = vmatpush1.msra.mxu0 0.0
        %1402 = vmatprep.subr.mxu0 0.0
        %1403 = vmatpush1.msra.mxu0 0.0
        %1404 = vmatprep.subr.mxu0 0.0
        %1405 = vmatpush1.msra.mxu0 0.0
        %1406 = vmatprep.subr.mxu0 0.0
        %1407 = vmatpush1.msra.mxu0 0.0
        %1408 = vmatprep.subr.mxu0 0.0
        %1409 = vmatpush1.msra.mxu0 0.0
        %1410 = vmatprep.subr.mxu0 0.0
        %1411 = vmatpush1.msra.mxu0 0.0
        %1412 = vmatprep.subr.mxu0 0.0
        %1413 = vmatpush1.msra.mxu0 0.0
        %1414 = vmatprep.subr.mxu0 0.0
        %1415 = vmatpush1.msra.mxu0 0.0
        %1416 = vmatprep.subr.mxu0 0.0
        %1417 = vmatpush1.msra.mxu0 0.0
        %1418 = vmatprep.subr.mxu0 0.0
        %1419 = vmatpush1.msra.mxu0 0.0
        %1420 = vmatprep.subr.mxu0 0.0
        %1421 = vmatpush1.msra.mxu0 0.0
        %1422 = vmatprep.subr.mxu0 0.0
        %1423 = vmatpush1.msra.mxu0 0.0
        %1424 = vmatprep.subr.mxu0 0.0
        %1425 = vmatpush1.msra.mxu0 0.0
        %1426 = vmatprep.subr.mxu0 0.0
        %1427 = vmatpush1.msra.mxu0 0.0
        %1428 = vmatprep.subr.mxu0 0.0
        %1429 = vmatpush1.msra.mxu0 0.0
        %1430 = vmatprep.subr.mxu0 0.0
        %1431 = vmatpush1.msra.mxu0 0.0
        %1432 = vmatprep.subr.mxu0 0.0
        %1433 = vmatpush1.msra.mxu0 0.0
        %1434 = vmatprep.subr.mxu0 0.0
        %1435 = vmatpush1.msra.mxu0 0.0
        %1436 = vmatprep.subr.mxu0 0.0
        %1437 = vmatpush1.msra.mxu0 0.0
        %1438 = vmatprep.subr.mxu0 0.0
        %1439 = vmatpush1.msra.mxu0 0.0
        %1440 = vmatprep.subr.mxu0 0.0
        %1441 = vmatpush1.msra.mxu0 0.0
        %1442 = vmatprep.subr.mxu0 0.0
        %1443 = vmatpush1.msra.mxu0 0.0
        %1444 = vmatprep.mubr.f32.mxu0 0.0
        %v1445 = vand.u32 %v771, 4294901760
        %v1446 = vsub.f32 %v771, %v1445
        %v1447 = vand.u32 %v1446, 4294901760
        %v1448 = vsub.f32 %v1446, %v1447
        %v1449 = vand.u32 %v1448, 4294901760
        %1450 = vmatmul.mubr.f32.gmra.mrb[0].mxu0 %v1449
        %v1451 = vpop.f32.mrb[0].mxu0
        %v1452 = vadd.f32 %v767, %v1451
        %v1453 = vpop.f32.mrb[0].mxu0
        %v1454 = vadd.f32 %v767, %v1453
        %1455 = vdwg.mxu0
        %v1456 = vand.u32 %v721, 4294901760
        %v1457 = vsub.f32 %v721, %v1456
        %v1458 = vand.u32 %v1457, 4294901760
        %v1459 = vsub.f32 %v1457, %v1458
        %v1460 = vand.u32 %v1459, 4294901760
        %1461 = vmatprep.subr.mxu0 %v1460
        %v1462 = vand.u32 %v720, 4294901760
        %v1463 = vsub.f32 %v720, %v1462
        %v1464 = vand.u32 %v1463, 4294901760
        %v1465 = vsub.f32 %v1463, %v1464
        %v1466 = vand.u32 %v1465, 4294901760
        %1467 = vmatpush1.msra.mxu0 %v1466
        %v1468 = vand.u32 %v730, 4294901760
        %v1469 = vsub.f32 %v730, %v1468
        %v1470 = vand.u32 %v1469, 4294901760
        %v1471 = vsub.f32 %v1469, %v1470
        %v1472 = vand.u32 %v1471, 4294901760
        %1473 = vmatprep.subr.mxu0 %v1472
        %v1474 = vand.u32 %v729, 4294901760
        %v1475 = vsub.f32 %v729, %v1474
        %v1476 = vand.u32 %v1475, 4294901760
        %v1477 = vsub.f32 %v1475, %v1476
        %v1478 = vand.u32 %v1477, 4294901760
        %1479 = vmatpush1.msra.mxu0 %v1478
        %v1480 = vand.u32 %v739, 4294901760
        %v1481 = vsub.f32 %v739, %v1480
        %v1482 = vand.u32 %v1481, 4294901760
        %v1483 = vsub.f32 %v1481, %v1482
        %v1484 = vand.u32 %v1483, 4294901760
        %1485 = vmatprep.subr.mxu0 %v1484
        %v1486 = vand.u32 %v738, 4294901760
        %v1487 = vsub.f32 %v738, %v1486
        %v1488 = vand.u32 %v1487, 4294901760
        %v1489 = vsub.f32 %v1487, %v1488
        %v1490 = vand.u32 %v1489, 4294901760
        %1491 = vmatpush1.msra.mxu0 %v1490
        %v1492 = vand.u32 %v748, 4294901760
        %v1493 = vsub.f32 %v748, %v1492
        %v1494 = vand.u32 %v1493, 4294901760
        %v1495 = vsub.f32 %v1493, %v1494
        %v1496 = vand.u32 %v1495, 4294901760
        %1497 = vmatprep.subr.mxu0 %v1496
        %v1498 = vand.u32 %v747, 4294901760
        %v1499 = vsub.f32 %v747, %v1498
        %v1500 = vand.u32 %v1499, 4294901760
        %v1501 = vsub.f32 %v1499, %v1500
        %v1502 = vand.u32 %v1501, 4294901760
        %1503 = vmatpush1.msra.mxu0 %v1502
        %v1504 = vand.u32 %v784, 4294901760
        %v1505 = vsub.f32 %v784, %v1504
        %v1506 = vand.u32 %v1505, 4294901760
        %v1507 = vsub.f32 %v1505, %v1506
        %v1508 = vand.u32 %v1507, 4294901760
        %1509 = vmatprep.subr.mxu0 %v1508
        %v1510 = vand.u32 %v781, 4294901760
        %v1511 = vsub.f32 %v781, %v1510
        %v1512 = vand.u32 %v1511, 4294901760
        %v1513 = vsub.f32 %v1511, %v1512
        %v1514 = vand.u32 %v1513, 4294901760
        %1515 = vmatpush1.msra.mxu0 %v1514
        %1516 = vmatprep.subr.mxu0 0.0
        %1517 = vmatpush1.msra.mxu0 0.0
        %1518 = vmatprep.subr.mxu0 0.0
        %1519 = vmatpush1.msra.mxu0 0.0
        %1520 = vmatprep.subr.mxu0 0.0
        %1521 = vmatpush1.msra.mxu0 0.0
        %1522 = vmatprep.subr.mxu0 0.0
        %1523 = vmatpush1.msra.mxu0 0.0
        %1524 = vmatprep.subr.mxu0 0.0
        %1525 = vmatpush1.msra.mxu0 0.0
        %1526 = vmatprep.subr.mxu0 0.0
        %1527 = vmatpush1.msra.mxu0 0.0
        %1528 = vmatprep.subr.mxu0 0.0
        %1529 = vmatpush1.msra.mxu0 0.0
        %1530 = vmatprep.subr.mxu0 0.0
        %1531 = vmatpush1.msra.mxu0 0.0
        %1532 = vmatprep.subr.mxu0 0.0
        %1533 = vmatpush1.msra.mxu0 0.0
        %1534 = vmatprep.subr.mxu0 0.0
        %1535 = vmatpush1.msra.mxu0 0.0
        %1536 = vmatprep.subr.mxu0 0.0
        %1537 = vmatpush1.msra.mxu0 0.0
        %1538 = vmatprep.subr.mxu0 0.0
        %1539 = vmatpush1.msra.mxu0 0.0
        %1540 = vmatprep.subr.mxu0 0.0
        %1541 = vmatpush1.msra.mxu0 0.0
        %1542 = vmatprep.subr.mxu0 0.0
        %1543 = vmatpush1.msra.mxu0 0.0
        %1544 = vmatprep.subr.mxu0 0.0
        %1545 = vmatpush1.msra.mxu0 0.0
        %1546 = vmatprep.subr.mxu0 0.0
        %1547 = vmatpush1.msra.mxu0 0.0
        %1548 = vmatprep.subr.mxu0 0.0
        %1549 = vmatpush1.msra.mxu0 0.0
        %1550 = vmatprep.subr.mxu0 0.0
        %1551 = vmatpush1.msra.mxu0 0.0
        %1552 = vmatprep.subr.mxu0 0.0
        %1553 = vmatpush1.msra.mxu0 0.0
        %1554 = vmatprep.subr.mxu0 0.0
        %1555 = vmatpush1.msra.mxu0 0.0
        %1556 = vmatprep.subr.mxu0 0.0
        %1557 = vmatpush1.msra.mxu0 0.0
        %1558 = vmatprep.subr.mxu0 0.0
        %1559 = vmatpush1.msra.mxu0 0.0
        %1560 = vmatprep.subr.mxu0 0.0
        %1561 = vmatpush1.msra.mxu0 0.0
        %1562 = vmatprep.subr.mxu0 0.0
        %1563 = vmatpush1.msra.mxu0 0.0
        %1564 = vmatprep.subr.mxu0 0.0
        %1565 = vmatpush1.msra.mxu0 0.0
        %1566 = vmatprep.subr.mxu0 0.0
        %1567 = vmatpush1.msra.mxu0 0.0
        %1568 = vmatprep.subr.mxu0 0.0
        %1569 = vmatpush1.msra.mxu0 0.0
        %1570 = vmatprep.mubr.f32.mxu0 0.0
        %v1571 = vand.u32 %v771, 4294901760
        %1572 = vmatmul.mubr.f32.gmra.mrb[0].mxu0 %v1571
        %v1573 = vpop.f32.mrb[0].mxu0
        %v1574 = vadd.f32 %v1452, %v1573
        %v1575 = vpop.f32.mrb[0].mxu0
        %v1576 = vadd.f32 %v1454, %v1575
        %1577 = vdwg.mxu0
        %v1578 = vand.u32 %v721, 4294901760
        %v1579 = vsub.f32 %v721, %v1578
        %1580 = vmatprep.subr.mxu0 %v1579
        %v1581 = vand.u32 %v720, 4294901760
        %v1582 = vsub.f32 %v720, %v1581
        %1583 = vmatpush1.msra.mxu0 %v1582
        %v1584 = vand.u32 %v730, 4294901760
        %v1585 = vsub.f32 %v730, %v1584
        %1586 = vmatprep.subr.mxu0 %v1585
        %v1587 = vand.u32 %v729, 4294901760
        %v1588 = vsub.f32 %v729, %v1587
        %1589 = vmatpush1.msra.mxu0 %v1588
        %v1590 = vand.u32 %v739, 4294901760
        %v1591 = vsub.f32 %v739, %v1590
        %1592 = vmatprep.subr.mxu0 %v1591
        %v1593 = vand.u32 %v738, 4294901760
        %v1594 = vsub.f32 %v738, %v1593
        %1595 = vmatpush1.msra.mxu0 %v1594
        %v1596 = vand.u32 %v748, 4294901760
        %v1597 = vsub.f32 %v748, %v1596
        %1598 = vmatprep.subr.mxu0 %v1597
        %v1599 = vand.u32 %v747, 4294901760
        %v1600 = vsub.f32 %v747, %v1599
        %1601 = vmatpush1.msra.mxu0 %v1600
        %v1602 = vand.u32 %v784, 4294901760
        %v1603 = vsub.f32 %v784, %v1602
        %1604 = vmatprep.subr.mxu0 %v1603
        %v1605 = vand.u32 %v781, 4294901760
        %v1606 = vsub.f32 %v781, %v1605
        %1607 = vmatpush1.msra.mxu0 %v1606
        %1608 = vmatprep.subr.mxu0 0.0
        %1609 = vmatpush1.msra.mxu0 0.0
        %1610 = vmatprep.subr.mxu0 0.0
        %1611 = vmatpush1.msra.mxu0 0.0
        %1612 = vmatprep.subr.mxu0 0.0
        %1613 = vmatpush1.msra.mxu0 0.0
        %1614 = vmatprep.subr.mxu0 0.0
        %1615 = vmatpush1.msra.mxu0 0.0
        %1616 = vmatprep.subr.mxu0 0.0
        %1617 = vmatpush1.msra.mxu0 0.0
        %1618 = vmatprep.subr.mxu0 0.0
        %1619 = vmatpush1.msra.mxu0 0.0
        %1620 = vmatprep.subr.mxu0 0.0
        %1621 = vmatpush1.msra.mxu0 0.0
        %1622 = vmatprep.subr.mxu0 0.0
        %1623 = vmatpush1.msra.mxu0 0.0
        %1624 = vmatprep.subr.mxu0 0.0
        %1625 = vmatpush1.msra.mxu0 0.0
        %1626 = vmatprep.subr.mxu0 0.0
        %1627 = vmatpush1.msra.mxu0 0.0
        %1628 = vmatprep.subr.mxu0 0.0
        %1629 = vmatpush1.msra.mxu0 0.0
        %1630 = vmatprep.subr.mxu0 0.0
        %1631 = vmatpush1.msra.mxu0 0.0
        %1632 = vmatprep.subr.mxu0 0.0
        %1633 = vmatpush1.msra.mxu0 0.0
        %1634 = vmatprep.subr.mxu0 0.0
        %1635 = vmatpush1.msra.mxu0 0.0
        %1636 = vmatprep.subr.mxu0 0.0
        %1637 = vmatpush1.msra.mxu0 0.0
        %1638 = vmatprep.subr.mxu0 0.0
        %1639 = vmatpush1.msra.mxu0 0.0
        %1640 = vmatprep.subr.mxu0 0.0
        %1641 = vmatpush1.msra.mxu0 0.0
        %1642 = vmatprep.subr.mxu0 0.0
        %1643 = vmatpush1.msra.mxu0 0.0
        %1644 = vmatprep.subr.mxu0 0.0
        %1645 = vmatpush1.msra.mxu0 0.0
        %1646 = vmatprep.subr.mxu0 0.0
        %1647 = vmatpush1.msra.mxu0 0.0
        %1648 = vmatprep.subr.mxu0 0.0
        %1649 = vmatpush1.msra.mxu0 0.0
        %1650 = vmatprep.subr.mxu0 0.0
        %1651 = vmatpush1.msra.mxu0 0.0
        %1652 = vmatprep.subr.mxu0 0.0
        %1653 = vmatpush1.msra.mxu0 0.0
        %1654 = vmatprep.subr.mxu0 0.0
        %1655 = vmatpush1.msra.mxu0 0.0
        %1656 = vmatprep.subr.mxu0 0.0
        %1657 = vmatpush1.msra.mxu0 0.0
        %1658 = vmatprep.subr.mxu0 0.0
        %1659 = vmatpush1.msra.mxu0 0.0
        %1660 = vmatprep.subr.mxu0 0.0
        %1661 = vmatpush1.msra.mxu0 0.0
        %1662 = vmatprep.mubr.f32.mxu0 0.0
        %v1663 = vand.u32 %v771, 4294901760
        %v1664 = vsub.f32 %v771, %v1663
        %1665 = vmatmul.mubr.f32.gmra.mrb[0].mxu0 %v1664
        %v1666 = vpop.f32.mrb[0].mxu0
        %v1667 = vadd.f32 %v1574, %v1666
        %v1668 = vpop.f32.mrb[0].mxu0
        %v1669 = vadd.f32 %v1576, %v1668
        %1670 = vdwg.mxu0
        %v1671 = vand.u32 %v721, 4294901760
        %1672 = vmatprep.subr.mxu0 %v1671
        %v1673 = vand.u32 %v720, 4294901760
        %1674 = vmatpush1.msra.mxu0 %v1673
        %v1675 = vand.u32 %v730, 4294901760
        %1676 = vmatprep.subr.mxu0 %v1675
        %v1677 = vand.u32 %v729, 4294901760
        %1678 = vmatpush1.msra.mxu0 %v1677
        %v1679 = vand.u32 %v739, 4294901760
        %1680 = vmatprep.subr.mxu0 %v1679
        %v1681 = vand.u32 %v738, 4294901760
        %1682 = vmatpush1.msra.mxu0 %v1681
        %v1683 = vand.u32 %v748, 4294901760
        %1684 = vmatprep.subr.mxu0 %v1683
        %v1685 = vand.u32 %v747, 4294901760
        %1686 = vmatpush1.msra.mxu0 %v1685
        %v1687 = vand.u32 %v784, 4294901760
        %1688 = vmatprep.subr.mxu0 %v1687
        %v1689 = vand.u32 %v781, 4294901760
        %1690 = vmatpush1.msra.mxu0 %v1689
        %1691 = vmatprep.subr.mxu0 0.0
        %1692 = vmatpush1.msra.mxu0 0.0
        %1693 = vmatprep.subr.mxu0 0.0
        %1694 = vmatpush1.msra.mxu0 0.0
        %1695 = vmatprep.subr.mxu0 0.0
        %1696 = vmatpush1.msra.mxu0 0.0
        %1697 = vmatprep.subr.mxu0 0.0
        %1698 = vmatpush1.msra.mxu0 0.0
        %1699 = vmatprep.subr.mxu0 0.0
        %1700 = vmatpush1.msra.mxu0 0.0
        %1701 = vmatprep.subr.mxu0 0.0
        %1702 = vmatpush1.msra.mxu0 0.0
        %1703 = vmatprep.subr.mxu0 0.0
        %1704 = vmatpush1.msra.mxu0 0.0
        %1705 = vmatprep.subr.mxu0 0.0
        %1706 = vmatpush1.msra.mxu0 0.0
        %1707 = vmatprep.subr.mxu0 0.0
        %1708 = vmatpush1.msra.mxu0 0.0
        %1709 = vmatprep.subr.mxu0 0.0
        %1710 = vmatpush1.msra.mxu0 0.0
        %1711 = vmatprep.subr.mxu0 0.0
        %1712 = vmatpush1.msra.mxu0 0.0
        %1713 = vmatprep.subr.mxu0 0.0
        %1714 = vmatpush1.msra.mxu0 0.0
        %1715 = vmatprep.subr.mxu0 0.0
        %1716 = vmatpush1.msra.mxu0 0.0
        %1717 = vmatprep.subr.mxu0 0.0
        %1718 = vmatpush1.msra.mxu0 0.0
        %1719 = vmatprep.subr.mxu0 0.0
        %1720 = vmatpush1.msra.mxu0 0.0
        %1721 = vmatprep.subr.mxu0 0.0
        %1722 = vmatpush1.msra.mxu0 0.0
        %1723 = vmatprep.subr.mxu0 0.0
        %1724 = vmatpush1.msra.mxu0 0.0
        %1725 = vmatprep.subr.mxu0 0.0
        %1726 = vmatpush1.msra.mxu0 0.0
        %1727 = vmatprep.subr.mxu0 0.0
        %1728 = vmatpush1.msra.mxu0 0.0
        %1729 = vmatprep.subr.mxu0 0.0
        %1730 = vmatpush1.msra.mxu0 0.0
        %1731 = vmatprep.subr.mxu0 0.0
        %1732 = vmatpush1.msra.mxu0 0.0
        %1733 = vmatprep.subr.mxu0 0.0
        %1734 = vmatpush1.msra.mxu0 0.0
        %1735 = vmatprep.subr.mxu0 0.0
        %1736 = vmatpush1.msra.mxu0 0.0
        %1737 = vmatprep.subr.mxu0 0.0
        %1738 = vmatpush1.msra.mxu0 0.0
        %1739 = vmatprep.subr.mxu0 0.0
        %1740 = vmatpush1.msra.mxu0 0.0
        %1741 = vmatprep.subr.mxu0 0.0
        %1742 = vmatpush1.msra.mxu0 0.0
        %1743 = vmatprep.subr.mxu0 0.0
        %1744 = vmatpush1.msra.mxu0 0.0
        %1745 = vmatprep.mubr.f32.mxu0 0.0
        %v1746 = vand.u32 %v771, 4294901760
        %v1747 = vsub.f32 %v771, %v1746
        %v1748 = vand.u32 %v1747, 4294901760
        %1749 = vmatmul.mubr.f32.gmra.mrb[0].mxu0 %v1748
        %v1750 = vpop.f32.mrb[0].mxu0
        %v1751 = vadd.f32 %v1667, %v1750
        %v1752 = vpop.f32.mrb[0].mxu0
        %v1753 = vadd.f32 %v1669, %v1752
        %1754 = vdwg.mxu0
        %v1755 = vand.u32 %v721, 4294901760
        %v1756 = vsub.f32 %v721, %v1755
        %v1757 = vand.u32 %v1756, 4294901760
        %1758 = vmatprep.subr.mxu0 %v1757
        %v1759 = vand.u32 %v720, 4294901760
        %v1760 = vsub.f32 %v720, %v1759
        %v1761 = vand.u32 %v1760, 4294901760
        %1762 = vmatpush1.msra.mxu0 %v1761
        %v1763 = vand.u32 %v730, 4294901760
        %v1764 = vsub.f32 %v730, %v1763
        %v1765 = vand.u32 %v1764, 4294901760
        %1766 = vmatprep.subr.mxu0 %v1765
        %v1767 = vand.u32 %v729, 4294901760
        %v1768 = vsub.f32 %v729, %v1767
        %v1769 = vand.u32 %v1768, 4294901760
        %1770 = vmatpush1.msra.mxu0 %v1769
        %v1771 = vand.u32 %v739, 4294901760
        %v1772 = vsub.f32 %v739, %v1771
        %v1773 = vand.u32 %v1772, 4294901760
        %1774 = vmatprep.subr.mxu0 %v1773
        %v1775 = vand.u32 %v738, 4294901760
        %v1776 = vsub.f32 %v738, %v1775
        %v1777 = vand.u32 %v1776, 4294901760
        %1778 = vmatpush1.msra.mxu0 %v1777
        %v1779 = vand.u32 %v748, 4294901760
        %v1780 = vsub.f32 %v748, %v1779
        %v1781 = vand.u32 %v1780, 4294901760
        %1782 = vmatprep.subr.mxu0 %v1781
        %v1783 = vand.u32 %v747, 4294901760
        %v1784 = vsub.f32 %v747, %v1783
        %v1785 = vand.u32 %v1784, 4294901760
        %1786 = vmatpush1.msra.mxu0 %v1785
        %v1787 = vand.u32 %v784, 4294901760
        %v1788 = vsub.f32 %v784, %v1787
        %v1789 = vand.u32 %v1788, 4294901760
        %1790 = vmatprep.subr.mxu0 %v1789
        %v1791 = vand.u32 %v781, 4294901760
        %v1792 = vsub.f32 %v781, %v1791
        %v1793 = vand.u32 %v1792, 4294901760
        %1794 = vmatpush1.msra.mxu0 %v1793
        %1795 = vmatprep.subr.mxu0 0.0
        %1796 = vmatpush1.msra.mxu0 0.0
        %1797 = vmatprep.subr.mxu0 0.0
        %1798 = vmatpush1.msra.mxu0 0.0
        %1799 = vmatprep.subr.mxu0 0.0
        %1800 = vmatpush1.msra.mxu0 0.0
        %1801 = vmatprep.subr.mxu0 0.0
        %1802 = vmatpush1.msra.mxu0 0.0
        %1803 = vmatprep.subr.mxu0 0.0
        %1804 = vmatpush1.msra.mxu0 0.0
        %1805 = vmatprep.subr.mxu0 0.0
        %1806 = vmatpush1.msra.mxu0 0.0
        %1807 = vmatprep.subr.mxu0 0.0
        %1808 = vmatpush1.msra.mxu0 0.0
        %1809 = vmatprep.subr.mxu0 0.0
        %1810 = vmatpush1.msra.mxu0 0.0
        %1811 = vmatprep.subr.mxu0 0.0
        %1812 = vmatpush1.msra.mxu0 0.0
        %1813 = vmatprep.subr.mxu0 0.0
        %1814 = vmatpush1.msra.mxu0 0.0
        %1815 = vmatprep.subr.mxu0 0.0
        %1816 = vmatpush1.msra.mxu0 0.0
        %1817 = vmatprep.subr.mxu0 0.0
        %1818 = vmatpush1.msra.mxu0 0.0
        %1819 = vmatprep.subr.mxu0 0.0
        %1820 = vmatpush1.msra.mxu0 0.0
        %1821 = vmatprep.subr.mxu0 0.0
        %1822 = vmatpush1.msra.mxu0 0.0
        %1823 = vmatprep.subr.mxu0 0.0
        %1824 = vmatpush1.msra.mxu0 0.0
        %1825 = vmatprep.subr.mxu0 0.0
        %1826 = vmatpush1.msra.mxu0 0.0
        %1827 = vmatprep.subr.mxu0 0.0
        %1828 = vmatpush1.msra.mxu0 0.0
        %1829 = vmatprep.subr.mxu0 0.0
        %1830 = vmatpush1.msra.mxu0 0.0
        %1831 = vmatprep.subr.mxu0 0.0
        %1832 = vmatpush1.msra.mxu0 0.0
        %1833 = vmatprep.subr.mxu0 0.0
        %1834 = vmatpush1.msra.mxu0 0.0
        %1835 = vmatprep.subr.mxu0 0.0
        %1836 = vmatpush1.msra.mxu0 0.0
        %1837 = vmatprep.subr.mxu0 0.0
        %1838 = vmatpush1.msra.mxu0 0.0
        %1839 = vmatprep.subr.mxu0 0.0
        %1840 = vmatpush1.msra.mxu0 0.0
        %1841 = vmatprep.subr.mxu0 0.0
        %1842 = vmatpush1.msra.mxu0 0.0
        %1843 = vmatprep.subr.mxu0 0.0
        %1844 = vmatpush1.msra.mxu0 0.0
        %1845 = vmatprep.subr.mxu0 0.0
        %1846 = vmatpush1.msra.mxu0 0.0
        %1847 = vmatprep.subr.mxu0 0.0
        %1848 = vmatpush1.msra.mxu0 0.0
        %1849 = vmatprep.mubr.f32.mxu0 0.0
        %v1850 = vand.u32 %v771, 4294901760
        %1851 = vmatmul.mubr.f32.gmra.mrb[0].mxu0 %v1850
        %v1852 = vpop.f32.mrb[0].mxu0
        %v1853 = vadd.f32 %v1751, %v1852
        %v1854 = vpop.f32.mrb[0].mxu0
        %v1855 = vadd.f32 %v1753, %v1854
        %1856 = vdwg.mxu0
        %v1857 = vand.u32 %v721, 4294901760
        %1858 = vmatprep.subr.mxu0 %v1857
        %v1859 = vand.u32 %v720, 4294901760
        %1860 = vmatpush1.msra.mxu0 %v1859
        %v1861 = vand.u32 %v730, 4294901760
        %1862 = vmatprep.subr.mxu0 %v1861
        %v1863 = vand.u32 %v729, 4294901760
        %1864 = vmatpush1.msra.mxu0 %v1863
        %v1865 = vand.u32 %v739, 4294901760
        %1866 = vmatprep.subr.mxu0 %v1865
        %v1867 = vand.u32 %v738, 4294901760
        %1868 = vmatpush1.msra.mxu0 %v1867
        %v1869 = vand.u32 %v748, 4294901760
        %1870 = vmatprep.subr.mxu0 %v1869
        %v1871 = vand.u32 %v747, 4294901760
        %1872 = vmatpush1.msra.mxu0 %v1871
        %v1873 = vand.u32 %v784, 4294901760
        %1874 = vmatprep.subr.mxu0 %v1873
        %v1875 = vand.u32 %v781, 4294901760
        %1876 = vmatpush1.msra.mxu0 %v1875
        %1877 = vmatprep.subr.mxu0 0.0
        %1878 = vmatpush1.msra.mxu0 0.0
        %1879 = vmatprep.subr.mxu0 0.0
        %1880 = vmatpush1.msra.mxu0 0.0
        %1881 = vmatprep.subr.mxu0 0.0
        %1882 = vmatpush1.msra.mxu0 0.0
        %1883 = vmatprep.subr.mxu0 0.0
        %1884 = vmatpush1.msra.mxu0 0.0
        %1885 = vmatprep.subr.mxu0 0.0
        %1886 = vmatpush1.msra.mxu0 0.0
        %1887 = vmatprep.subr.mxu0 0.0
        %1888 = vmatpush1.msra.mxu0 0.0
        %1889 = vmatprep.subr.mxu0 0.0
        %1890 = vmatpush1.msra.mxu0 0.0
        %1891 = vmatprep.subr.mxu0 0.0
        %1892 = vmatpush1.msra.mxu0 0.0
        %1893 = vmatprep.subr.mxu0 0.0
        %1894 = vmatpush1.msra.mxu0 0.0
        %1895 = vmatprep.subr.mxu0 0.0
        %1896 = vmatpush1.msra.mxu0 0.0
        %1897 = vmatprep.subr.mxu0 0.0
        %1898 = vmatpush1.msra.mxu0 0.0
        %1899 = vmatprep.subr.mxu0 0.0
        %1900 = vmatpush1.msra.mxu0 0.0
        %1901 = vmatprep.subr.mxu0 0.0
        %1902 = vmatpush1.msra.mxu0 0.0
        %1903 = vmatprep.subr.mxu0 0.0
        %1904 = vmatpush1.msra.mxu0 0.0
        %1905 = vmatprep.subr.mxu0 0.0
        %1906 = vmatpush1.msra.mxu0 0.0
        %1907 = vmatprep.subr.mxu0 0.0
        %1908 = vmatpush1.msra.mxu0 0.0
        %1909 = vmatprep.subr.mxu0 0.0
        %1910 = vmatpush1.msra.mxu0 0.0
        %1911 = vmatprep.subr.mxu0 0.0
        %1912 = vmatpush1.msra.mxu0 0.0
        %1913 = vmatprep.subr.mxu0 0.0
        %1914 = vmatpush1.msra.mxu0 0.0
        %1915 = vmatprep.subr.mxu0 0.0
        %1916 = vmatpush1.msra.mxu0 0.0
        %1917 = vmatprep.subr.mxu0 0.0
        %1918 = vmatpush1.msra.mxu0 0.0
        %1919 = vmatprep.subr.mxu0 0.0
        %1920 = vmatpush1.msra.mxu0 0.0
        %1921 = vmatprep.subr.mxu0 0.0
        %1922 = vmatpush1.msra.mxu0 0.0
        %1923 = vmatprep.subr.mxu0 0.0
        %1924 = vmatpush1.msra.mxu0 0.0
        %1925 = vmatprep.subr.mxu0 0.0
        %1926 = vmatpush1.msra.mxu0 0.0
        %1927 = vmatprep.subr.mxu0 0.0
        %1928 = vmatpush1.msra.mxu0 0.0
        %1929 = vmatprep.subr.mxu0 0.0
        %1930 = vmatpush1.msra.mxu0 0.0
        %1931 = vmatprep.mubr.f32.mxu0 0.0
        %v1932 = vand.u32 %v771, 4294901760
        %1933 = vmatmul.mubr.f32.gmra.mrb[0].mxu0 %v1932
        %v1934 = vpop.f32.mrb[0].mxu0
        %v1935 = vadd.f32 %v1853, %v1934
        %v1936 = vpop.f32.mrb[0].mxu0
        %v1937 = vadd.f32 %v1855, %v1936
        %1938 = vdwg.mxu0
        %v1939 = vand.u32 %v723, 4294901760
        %1940 = vmatprep.subr.mxu0 %v1939
        %v1941 = vand.u32 %v722, 4294901760
        %1942 = vmatpush1.msra.mxu0 %v1941
        %v1943 = vand.u32 %v732, 4294901760
        %1944 = vmatprep.subr.mxu0 %v1943
        %v1945 = vand.u32 %v731, 4294901760
        %1946 = vmatpush1.msra.mxu0 %v1945
        %v1947 = vand.u32 %v741, 4294901760
        %1948 = vmatprep.subr.mxu0 %v1947
        %v1949 = vand.u32 %v740, 4294901760
        %1950 = vmatpush1.msra.mxu0 %v1949
        %v1951 = vand.u32 %v750, 4294901760
        %1952 = vmatprep.subr.mxu0 %v1951
        %v1953 = vand.u32 %v749, 4294901760
        %1954 = vmatpush1.msra.mxu0 %v1953
        %v1955 = vand.u32 %v790, 4294901760
        %1956 = vmatprep.subr.mxu0 %v1955
        %v1957 = vand.u32 %v787, 4294901760
        %1958 = vmatpush1.msra.mxu0 %v1957
        %1959 = vmatprep.subr.mxu0 0.0
        %1960 = vmatpush1.msra.mxu0 0.0
        %1961 = vmatprep.subr.mxu0 0.0
        %1962 = vmatpush1.msra.mxu0 0.0
        %1963 = vmatprep.subr.mxu0 0.0
        %1964 = vmatpush1.msra.mxu0 0.0
        %1965 = vmatprep.subr.mxu0 0.0
        %1966 = vmatpush1.msra.mxu0 0.0
        %1967 = vmatprep.subr.mxu0 0.0
        %1968 = vmatpush1.msra.mxu0 0.0
        %1969 = vmatprep.subr.mxu0 0.0
        %1970 = vmatpush1.msra.mxu0 0.0
        %1971 = vmatprep.subr.mxu0 0.0
        %1972 = vmatpush1.msra.mxu0 0.0
        %1973 = vmatprep.subr.mxu0 0.0
        %1974 = vmatpush1.msra.mxu0 0.0
        %1975 = vmatprep.subr.mxu0 0.0
        %1976 = vmatpush1.msra.mxu0 0.0
        %1977 = vmatprep.subr.mxu0 0.0
        %1978 = vmatpush1.msra.mxu0 0.0
        %1979 = vmatprep.subr.mxu0 0.0
        %1980 = vmatpush1.msra.mxu0 0.0
        %1981 = vmatprep.subr.mxu0 0.0
        %1982 = vmatpush1.msra.mxu0 0.0
        %1983 = vmatprep.subr.mxu0 0.0
        %1984 = vmatpush1.msra.mxu0 0.0
        %1985 = vmatprep.subr.mxu0 0.0
        %1986 = vmatpush1.msra.mxu0 0.0
        %1987 = vmatprep.subr.mxu0 0.0
        %1988 = vmatpush1.msra.mxu0 0.0
        %1989 = vmatprep.subr.mxu0 0.0
        %1990 = vmatpush1.msra.mxu0 0.0
        %1991 = vmatprep.subr.mxu0 0.0
        %1992 = vmatpush1.msra.mxu0 0.0
        %1993 = vmatprep.subr.mxu0 0.0
        %1994 = vmatpush1.msra.mxu0 0.0
        %1995 = vmatprep.subr.mxu0 0.0
        %1996 = vmatpush1.msra.mxu0 0.0
        %1997 = vmatprep.subr.mxu0 0.0
        %1998 = vmatpush1.msra.mxu0 0.0
        %1999 = vmatprep.subr.mxu0 0.0
        %2000 = vmatpush1.msra.mxu0 0.0
        %2001 = vmatprep.subr.mxu0 0.0
        %2002 = vmatpush1.msra.mxu0 0.0
        %2003 = vmatprep.subr.mxu0 0.0
        %2004 = vmatpush1.msra.mxu0 0.0
        %2005 = vmatprep.subr.mxu0 0.0
        %2006 = vmatpush1.msra.mxu0 0.0
        %2007 = vmatprep.subr.mxu0 0.0
        %2008 = vmatpush1.msra.mxu0 0.0
        %2009 = vmatprep.subr.mxu0 0.0
        %2010 = vmatpush1.msra.mxu0 0.0
        %2011 = vmatprep.subr.mxu0 0.0
        %2012 = vmatpush1.msra.mxu0 0.0
        %2013 = vmatprep.mubr.f32.mxu0 0.0
        %v2014 = vand.u32 %v771, 4294901760
        %v2015 = vsub.f32 %v771, %v2014
        %v2016 = vand.u32 %v2015, 4294901760
        %v2017 = vsub.f32 %v2015, %v2016
        %v2018 = vand.u32 %v2017, 4294901760
        %2019 = vmatmul.mubr.f32.gmra.mrb[0].mxu0 %v2018
        %v2020 = vpop.f32.mrb[0].mxu0
        %v2021 = vadd.f32 %v767, %v2020
        %v2022 = vpop.f32.mrb[0].mxu0
        %v2023 = vadd.f32 %v767, %v2022
        %2024 = vdwg.mxu0
        %v2025 = vand.u32 %v723, 4294901760
        %v2026 = vsub.f32 %v723, %v2025
        %v2027 = vand.u32 %v2026, 4294901760
        %v2028 = vsub.f32 %v2026, %v2027
        %v2029 = vand.u32 %v2028, 4294901760
        %2030 = vmatprep.subr.mxu0 %v2029
        %v2031 = vand.u32 %v722, 4294901760
        %v2032 = vsub.f32 %v722, %v2031
        %v2033 = vand.u32 %v2032, 4294901760
        %v2034 = vsub.f32 %v2032, %v2033
        %v2035 = vand.u32 %v2034, 4294901760
        %2036 = vmatpush1.msra.mxu0 %v2035
        %v2037 = vand.u32 %v732, 4294901760
        %v2038 = vsub.f32 %v732, %v2037
        %v2039 = vand.u32 %v2038, 4294901760
        %v2040 = vsub.f32 %v2038, %v2039
        %v2041 = vand.u32 %v2040, 4294901760
        %2042 = vmatprep.subr.mxu0 %v2041
        %v2043 = vand.u32 %v731, 4294901760
        %v2044 = vsub.f32 %v731, %v2043
        %v2045 = vand.u32 %v2044, 4294901760
        %v2046 = vsub.f32 %v2044, %v2045
        %v2047 = vand.u32 %v2046, 4294901760
        %2048 = vmatpush1.msra.mxu0 %v2047
        %v2049 = vand.u32 %v741, 4294901760
        %v2050 = vsub.f32 %v741, %v2049
        %v2051 = vand.u32 %v2050, 4294901760
        %v2052 = vsub.f32 %v2050, %v2051
        %v2053 = vand.u32 %v2052, 4294901760
        %2054 = vmatprep.subr.mxu0 %v2053
        %v2055 = vand.u32 %v740, 4294901760
        %v2056 = vsub.f32 %v740, %v2055
        %v2057 = vand.u32 %v2056, 4294901760
        %v2058 = vsub.f32 %v2056, %v2057
        %v2059 = vand.u32 %v2058, 4294901760
        %2060 = vmatpush1.msra.mxu0 %v2059
        %v2061 = vand.u32 %v750, 4294901760
        %v2062 = vsub.f32 %v750, %v2061
        %v2063 = vand.u32 %v2062, 4294901760
        %v2064 = vsub.f32 %v2062, %v2063
        %v2065 = vand.u32 %v2064, 4294901760
        %2066 = vmatprep.subr.mxu0 %v2065
        %v2067 = vand.u32 %v749, 4294901760
        %v2068 = vsub.f32 %v749, %v2067
        %v2069 = vand.u32 %v2068, 4294901760
        %v2070 = vsub.f32 %v2068, %v2069
        %v2071 = vand.u32 %v2070, 4294901760
        %2072 = vmatpush1.msra.mxu0 %v2071
        %v2073 = vand.u32 %v790, 4294901760
        %v2074 = vsub.f32 %v790, %v2073
        %v2075 = vand.u32 %v2074, 4294901760
        %v2076 = vsub.f32 %v2074, %v2075
        %v2077 = vand.u32 %v2076, 4294901760
        %2078 = vmatprep.subr.mxu0 %v2077
        %v2079 = vand.u32 %v787, 4294901760
        %v2080 = vsub.f32 %v787, %v2079
        %v2081 = vand.u32 %v2080, 4294901760
        %v2082 = vsub.f32 %v2080, %v2081
        %v2083 = vand.u32 %v2082, 4294901760
        %2084 = vmatpush1.msra.mxu0 %v2083
        %2085 = vmatprep.subr.mxu0 0.0
        %2086 = vmatpush1.msra.mxu0 0.0
        %2087 = vmatprep.subr.mxu0 0.0
        %2088 = vmatpush1.msra.mxu0 0.0
        %2089 = vmatprep.subr.mxu0 0.0
        %2090 = vmatpush1.msra.mxu0 0.0
        %2091 = vmatprep.subr.mxu0 0.0
        %2092 = vmatpush1.msra.mxu0 0.0
        %2093 = vmatprep.subr.mxu0 0.0
        %2094 = vmatpush1.msra.mxu0 0.0
        %2095 = vmatprep.subr.mxu0 0.0
        %2096 = vmatpush1.msra.mxu0 0.0
        %2097 = vmatprep.subr.mxu0 0.0
        %2098 = vmatpush1.msra.mxu0 0.0
        %2099 = vmatprep.subr.mxu0 0.0
        %2100 = vmatpush1.msra.mxu0 0.0
        %2101 = vmatprep.subr.mxu0 0.0
        %2102 = vmatpush1.msra.mxu0 0.0
        %2103 = vmatprep.subr.mxu0 0.0
        %2104 = vmatpush1.msra.mxu0 0.0
        %2105 = vmatprep.subr.mxu0 0.0
        %2106 = vmatpush1.msra.mxu0 0.0
        %2107 = vmatprep.subr.mxu0 0.0
        %2108 = vmatpush1.msra.mxu0 0.0
        %2109 = vmatprep.subr.mxu0 0.0
        %2110 = vmatpush1.msra.mxu0 0.0
        %2111 = vmatprep.subr.mxu0 0.0
        %2112 = vmatpush1.msra.mxu0 0.0
        %2113 = vmatprep.subr.mxu0 0.0
        %2114 = vmatpush1.msra.mxu0 0.0
        %2115 = vmatprep.subr.mxu0 0.0
        %2116 = vmatpush1.msra.mxu0 0.0
        %2117 = vmatprep.subr.mxu0 0.0
        %2118 = vmatpush1.msra.mxu0 0.0
        %2119 = vmatprep.subr.mxu0 0.0
        %2120 = vmatpush1.msra.mxu0 0.0
        %2121 = vmatprep.subr.mxu0 0.0
        %2122 = vmatpush1.msra.mxu0 0.0
        %2123 = vmatprep.subr.mxu0 0.0
        %2124 = vmatpush1.msra.mxu0 0.0
        %2125 = vmatprep.subr.mxu0 0.0
        %2126 = vmatpush1.msra.mxu0 0.0
        %2127 = vmatprep.subr.mxu0 0.0
        %2128 = vmatpush1.msra.mxu0 0.0
        %2129 = vmatprep.subr.mxu0 0.0
        %2130 = vmatpush1.msra.mxu0 0.0
        %2131 = vmatprep.subr.mxu0 0.0
        %2132 = vmatpush1.msra.mxu0 0.0
        %2133 = vmatprep.subr.mxu0 0.0
        %2134 = vmatpush1.msra.mxu0 0.0
        %2135 = vmatprep.subr.mxu0 0.0
        %2136 = vmatpush1.msra.mxu0 0.0
        %2137 = vmatprep.subr.mxu0 0.0
        %2138 = vmatpush1.msra.mxu0 0.0
        %2139 = vmatprep.mubr.f32.mxu0 0.0
        %v2140 = vand.u32 %v771, 4294901760
        %2141 = vmatmul.mubr.f32.gmra.mrb[0].mxu0 %v2140
        %v2142 = vpop.f32.mrb[0].mxu0
        %v2143 = vadd.f32 %v2021, %v2142
        %v2144 = vpop.f32.mrb[0].mxu0
        %v2145 = vadd.f32 %v2023, %v2144
        %2146 = vdwg.mxu0
        %v2147 = vand.u32 %v723, 4294901760
        %v2148 = vsub.f32 %v723, %v2147
        %2149 = vmatprep.subr.mxu0 %v2148
        %v2150 = vand.u32 %v722, 4294901760
        %v2151 = vsub.f32 %v722, %v2150
        %2152 = vmatpush1.msra.mxu0 %v2151
        %v2153 = vand.u32 %v732, 4294901760
        %v2154 = vsub.f32 %v732, %v2153
        %2155 = vmatprep.subr.mxu0 %v2154
        %v2156 = vand.u32 %v731, 4294901760
        %v2157 = vsub.f32 %v731, %v2156
        %2158 = vmatpush1.msra.mxu0 %v2157
        %v2159 = vand.u32 %v741, 4294901760
        %v2160 = vsub.f32 %v741, %v2159
        %2161 = vmatprep.subr.mxu0 %v2160
        %v2162 = vand.u32 %v740, 4294901760
        %v2163 = vsub.f32 %v740, %v2162
        %2164 = vmatpush1.msra.mxu0 %v2163
        %v2165 = vand.u32 %v750, 4294901760
        %v2166 = vsub.f32 %v750, %v2165
        %2167 = vmatprep.subr.mxu0 %v2166
        %v2168 = vand.u32 %v749, 4294901760
        %v2169 = vsub.f32 %v749, %v2168
        %2170 = vmatpush1.msra.mxu0 %v2169
        %v2171 = vand.u32 %v790, 4294901760
        %v2172 = vsub.f32 %v790, %v2171
        %2173 = vmatprep.subr.mxu0 %v2172
        %v2174 = vand.u32 %v787, 4294901760
        %v2175 = vsub.f32 %v787, %v2174
        %2176 = vmatpush1.msra.mxu0 %v2175
        %2177 = vmatprep.subr.mxu0 0.0
        %2178 = vmatpush1.msra.mxu0 0.0
        %2179 = vmatprep.subr.mxu0 0.0
        %2180 = vmatpush1.msra.mxu0 0.0
        %2181 = vmatprep.subr.mxu0 0.0
        %2182 = vmatpush1.msra.mxu0 0.0
        %2183 = vmatprep.subr.mxu0 0.0
        %2184 = vmatpush1.msra.mxu0 0.0
        %2185 = vmatprep.subr.mxu0 0.0
        %2186 = vmatpush1.msra.mxu0 0.0
        %2187 = vmatprep.subr.mxu0 0.0
        %2188 = vmatpush1.msra.mxu0 0.0
        %2189 = vmatprep.subr.mxu0 0.0
        %2190 = vmatpush1.msra.mxu0 0.0
        %2191 = vmatprep.subr.mxu0 0.0
        %2192 = vmatpush1.msra.mxu0 0.0
        %2193 = vmatprep.subr.mxu0 0.0
        %2194 = vmatpush1.msra.mxu0 0.0
        %2195 = vmatprep.subr.mxu0 0.0
        %2196 = vmatpush1.msra.mxu0 0.0
        %2197 = vmatprep.subr.mxu0 0.0
        %2198 = vmatpush1.msra.mxu0 0.0
        %2199 = vmatprep.subr.mxu0 0.0
        %2200 = vmatpush1.msra.mxu0 0.0
        %2201 = vmatprep.subr.mxu0 0.0
        %2202 = vmatpush1.msra.mxu0 0.0
        %2203 = vmatprep.subr.mxu0 0.0
        %2204 = vmatpush1.msra.mxu0 0.0
        %2205 = vmatprep.subr.mxu0 0.0
        %2206 = vmatpush1.msra.mxu0 0.0
        %2207 = vmatprep.subr.mxu0 0.0
        %2208 = vmatpush1.msra.mxu0 0.0
        %2209 = vmatprep.subr.mxu0 0.0
        %2210 = vmatpush1.msra.mxu0 0.0
        %2211 = vmatprep.subr.mxu0 0.0
        %2212 = vmatpush1.msra.mxu0 0.0
        %2213 = vmatprep.subr.mxu0 0.0
        %2214 = vmatpush1.msra.mxu0 0.0
        %2215 = vmatprep.subr.mxu0 0.0
        %2216 = vmatpush1.msra.mxu0 0.0
        %2217 = vmatprep.subr.mxu0 0.0
        %2218 = vmatpush1.msra.mxu0 0.0
        %2219 = vmatprep.subr.mxu0 0.0
        %2220 = vmatpush1.msra.mxu0 0.0
        %2221 = vmatprep.subr.mxu0 0.0
        %2222 = vmatpush1.msra.mxu0 0.0
        %2223 = vmatprep.subr.mxu0 0.0
        %2224 = vmatpush1.msra.mxu0 0.0
        %2225 = vmatprep.subr.mxu0 0.0
        %2226 = vmatpush1.msra.mxu0 0.0
        %2227 = vmatprep.subr.mxu0 0.0
        %2228 = vmatpush1.msra.mxu0 0.0
        %2229 = vmatprep.subr.mxu0 0.0
        %2230 = vmatpush1.msra.mxu0 0.0
        %2231 = vmatprep.mubr.f32.mxu0 0.0
        %v2232 = vand.u32 %v771, 4294901760
        %v2233 = vsub.f32 %v771, %v2232
        %2234 = vmatmul.mubr.f32.gmra.mrb[0].mxu0 %v2233
        %v2235 = vpop.f32.mrb[0].mxu0
        %v2236 = vadd.f32 %v2143, %v2235
        %v2237 = vpop.f32.mrb[0].mxu0
        %v2238 = vadd.f32 %v2145, %v2237
        %2239 = vdwg.mxu0
        %v2240 = vand.u32 %v723, 4294901760
        %2241 = vmatprep.subr.mxu0 %v2240
        %v2242 = vand.u32 %v722, 4294901760
        %2243 = vmatpush1.msra.mxu0 %v2242
        %v2244 = vand.u32 %v732, 4294901760
        %2245 = vmatprep.subr.mxu0 %v2244
        %v2246 = vand.u32 %v731, 4294901760
        %2247 = vmatpush1.msra.mxu0 %v2246
        %v2248 = vand.u32 %v741, 4294901760
        %2249 = vmatprep.subr.mxu0 %v2248
        %v2250 = vand.u32 %v740, 4294901760
        %2251 = vmatpush1.msra.mxu0 %v2250
        %v2252 = vand.u32 %v750, 4294901760
        %2253 = vmatprep.subr.mxu0 %v2252
        %v2254 = vand.u32 %v749, 4294901760
        %2255 = vmatpush1.msra.mxu0 %v2254
        %v2256 = vand.u32 %v790, 4294901760
        %2257 = vmatprep.subr.mxu0 %v2256
        %v2258 = vand.u32 %v787, 4294901760
        %2259 = vmatpush1.msra.mxu0 %v2258
        %2260 = vmatprep.subr.mxu0 0.0
        %2261 = vmatpush1.msra.mxu0 0.0
        %2262 = vmatprep.subr.mxu0 0.0
        %2263 = vmatpush1.msra.mxu0 0.0
        %2264 = vmatprep.subr.mxu0 0.0
        %2265 = vmatpush1.msra.mxu0 0.0
        %2266 = vmatprep.subr.mxu0 0.0
        %2267 = vmatpush1.msra.mxu0 0.0
        %2268 = vmatprep.subr.mxu0 0.0
        %2269 = vmatpush1.msra.mxu0 0.0
        %2270 = vmatprep.subr.mxu0 0.0
        %2271 = vmatpush1.msra.mxu0 0.0
        %2272 = vmatprep.subr.mxu0 0.0
        %2273 = vmatpush1.msra.mxu0 0.0
        %2274 = vmatprep.subr.mxu0 0.0
        %2275 = vmatpush1.msra.mxu0 0.0
        %2276 = vmatprep.subr.mxu0 0.0
        %2277 = vmatpush1.msra.mxu0 0.0
        %2278 = vmatprep.subr.mxu0 0.0
        %2279 = vmatpush1.msra.mxu0 0.0
        %2280 = vmatprep.subr.mxu0 0.0
        %2281 = vmatpush1.msra.mxu0 0.0
        %2282 = vmatprep.subr.mxu0 0.0
        %2283 = vmatpush1.msra.mxu0 0.0
        %2284 = vmatprep.subr.mxu0 0.0
        %2285 = vmatpush1.msra.mxu0 0.0
        %2286 = vmatprep.subr.mxu0 0.0
        %2287 = vmatpush1.msra.mxu0 0.0
        %2288 = vmatprep.subr.mxu0 0.0
        %2289 = vmatpush1.msra.mxu0 0.0
        %2290 = vmatprep.subr.mxu0 0.0
        %2291 = vmatpush1.msra.mxu0 0.0
        %2292 = vmatprep.subr.mxu0 0.0
        %2293 = vmatpush1.msra.mxu0 0.0
        %2294 = vmatprep.subr.mxu0 0.0
        %2295 = vmatpush1.msra.mxu0 0.0
        %2296 = vmatprep.subr.mxu0 0.0
        %2297 = vmatpush1.msra.mxu0 0.0
        %2298 = vmatprep.subr.mxu0 0.0
        %2299 = vmatpush1.msra.mxu0 0.0
        %2300 = vmatprep.subr.mxu0 0.0
        %2301 = vmatpush1.msra.mxu0 0.0
        %2302 = vmatprep.subr.mxu0 0.0
        %2303 = vmatpush1.msra.mxu0 0.0
        %2304 = vmatprep.subr.mxu0 0.0
        %2305 = vmatpush1.msra.mxu0 0.0
        %2306 = vmatprep.subr.mxu0 0.0
        %2307 = vmatpush1.msra.mxu0 0.0
        %2308 = vmatprep.subr.mxu0 0.0
        %2309 = vmatpush1.msra.mxu0 0.0
        %2310 = vmatprep.subr.mxu0 0.0
        %2311 = vmatpush1.msra.mxu0 0.0
        %2312 = vmatprep.subr.mxu0 0.0
        %2313 = vmatpush1.msra.mxu0 0.0
        %2314 = vmatprep.mubr.f32.mxu0 0.0
        %v2315 = vand.u32 %v771, 4294901760
        %v2316 = vsub.f32 %v771, %v2315
        %v2317 = vand.u32 %v2316, 4294901760
        %2318 = vmatmul.mubr.f32.gmra.mrb[0].mxu0 %v2317
        %v2319 = vpop.f32.mrb[0].mxu0
        %v2320 = vadd.f32 %v2236, %v2319
        %v2321 = vpop.f32.mrb[0].mxu0
        %v2322 = vadd.f32 %v2238, %v2321
        %2323 = vdwg.mxu0
        %v2324 = vand.u32 %v723, 4294901760
        %v2325 = vsub.f32 %v723, %v2324
        %v2326 = vand.u32 %v2325, 4294901760
        %2327 = vmatprep.subr.mxu0 %v2326
        %v2328 = vand.u32 %v722, 4294901760
        %v2329 = vsub.f32 %v722, %v2328
        %v2330 = vand.u32 %v2329, 4294901760
        %2331 = vmatpush1.msra.mxu0 %v2330
        %v2332 = vand.u32 %v732, 4294901760
        %v2333 = vsub.f32 %v732, %v2332
        %v2334 = vand.u32 %v2333, 4294901760
        %2335 = vmatprep.subr.mxu0 %v2334
        %v2336 = vand.u32 %v731, 4294901760
        %v2337 = vsub.f32 %v731, %v2336
        %v2338 = vand.u32 %v2337, 4294901760
        %2339 = vmatpush1.msra.mxu0 %v2338
        %v2340 = vand.u32 %v741, 4294901760
        %v2341 = vsub.f32 %v741, %v2340
        %v2342 = vand.u32 %v2341, 4294901760
        %2343 = vmatprep.subr.mxu0 %v2342
        %v2344 = vand.u32 %v740, 4294901760
        %v2345 = vsub.f32 %v740, %v2344
        %v2346 = vand.u32 %v2345, 4294901760
        %2347 = vmatpush1.msra.mxu0 %v2346
        %v2348 = vand.u32 %v750, 4294901760
        %v2349 = vsub.f32 %v750, %v2348
        %v2350 = vand.u32 %v2349, 4294901760
        %2351 = vmatprep.subr.mxu0 %v2350
        %v2352 = vand.u32 %v749, 4294901760
        %v2353 = vsub.f32 %v749, %v2352
        %v2354 = vand.u32 %v2353, 4294901760
        %2355 = vmatpush1.msra.mxu0 %v2354
        %v2356 = vand.u32 %v790, 4294901760
        %v2357 = vsub.f32 %v790, %v2356
        %v2358 = vand.u32 %v2357, 4294901760
        %2359 = vmatprep.subr.mxu0 %v2358
        %v2360 = vand.u32 %v787, 4294901760
        %v2361 = vsub.f32 %v787, %v2360
        %v2362 = vand.u32 %v2361, 4294901760
        %2363 = vmatpush1.msra.mxu0 %v2362
        %2364 = vmatprep.subr.mxu0 0.0
        %2365 = vmatpush1.msra.mxu0 0.0
        %2366 = vmatprep.subr.mxu0 0.0
        %2367 = vmatpush1.msra.mxu0 0.0
        %2368 = vmatprep.subr.mxu0 0.0
        %2369 = vmatpush1.msra.mxu0 0.0
        %2370 = vmatprep.subr.mxu0 0.0
        %2371 = vmatpush1.msra.mxu0 0.0
        %2372 = vmatprep.subr.mxu0 0.0
        %2373 = vmatpush1.msra.mxu0 0.0
        %2374 = vmatprep.subr.mxu0 0.0
        %2375 = vmatpush1.msra.mxu0 0.0
        %2376 = vmatprep.subr.mxu0 0.0
        %2377 = vmatpush1.msra.mxu0 0.0
        %2378 = vmatprep.subr.mxu0 0.0
        %2379 = vmatpush1.msra.mxu0 0.0
        %2380 = vmatprep.subr.mxu0 0.0
        %2381 = vmatpush1.msra.mxu0 0.0
        %2382 = vmatprep.subr.mxu0 0.0
        %2383 = vmatpush1.msra.mxu0 0.0
        %2384 = vmatprep.subr.mxu0 0.0
        %2385 = vmatpush1.msra.mxu0 0.0
        %2386 = vmatprep.subr.mxu0 0.0
        %2387 = vmatpush1.msra.mxu0 0.0
        %2388 = vmatprep.subr.mxu0 0.0
        %2389 = vmatpush1.msra.mxu0 0.0
        %2390 = vmatprep.subr.mxu0 0.0
        %2391 = vmatpush1.msra.mxu0 0.0
        %2392 = vmatprep.subr.mxu0 0.0
        %2393 = vmatpush1.msra.mxu0 0.0
        %2394 = vmatprep.subr.mxu0 0.0
        %2395 = vmatpush1.msra.mxu0 0.0
        %2396 = vmatprep.subr.mxu0 0.0
        %2397 = vmatpush1.msra.mxu0 0.0
        %2398 = vmatprep.subr.mxu0 0.0
        %2399 = vmatpush1.msra.mxu0 0.0
        %2400 = vmatprep.subr.mxu0 0.0
        %2401 = vmatpush1.msra.mxu0 0.0
        %2402 = vmatprep.subr.mxu0 0.0
        %2403 = vmatpush1.msra.mxu0 0.0
        %2404 = vmatprep.subr.mxu0 0.0
        %2405 = vmatpush1.msra.mxu0 0.0
        %2406 = vmatprep.subr.mxu0 0.0
        %2407 = vmatpush1.msra.mxu0 0.0
        %2408 = vmatprep.subr.mxu0 0.0
        %2409 = vmatpush1.msra.mxu0 0.0
        %2410 = vmatprep.subr.mxu0 0.0
        %2411 = vmatpush1.msra.mxu0 0.0
        %2412 = vmatprep.subr.mxu0 0.0
        %2413 = vmatpush1.msra.mxu0 0.0
        %2414 = vmatprep.subr.mxu0 0.0
        %2415 = vmatpush1.msra.mxu0 0.0
        %2416 = vmatprep.subr.mxu0 0.0
        %2417 = vmatpush1.msra.mxu0 0.0
        %2418 = vmatprep.mubr.f32.mxu0 0.0
        %v2419 = vand.u32 %v771, 4294901760
        %2420 = vmatmul.mubr.f32.gmra.mrb[0].mxu0 %v2419
        %v2421 = vpop.f32.mrb[0].mxu0
        %v2422 = vadd.f32 %v2320, %v2421
        %v2423 = vpop.f32.mrb[0].mxu0
        %v2424 = vadd.f32 %v2322, %v2423
        %2425 = vdwg.mxu0
        %v2426 = vand.u32 %v723, 4294901760
        %2427 = vmatprep.subr.mxu0 %v2426
        %v2428 = vand.u32 %v722, 4294901760
        %2429 = vmatpush1.msra.mxu0 %v2428
        %v2430 = vand.u32 %v732, 4294901760
        %2431 = vmatprep.subr.mxu0 %v2430
        %v2432 = vand.u32 %v731, 4294901760
        %2433 = vmatpush1.msra.mxu0 %v2432
        %v2434 = vand.u32 %v741, 4294901760
        %2435 = vmatprep.subr.mxu0 %v2434
        %v2436 = vand.u32 %v740, 4294901760
        %2437 = vmatpush1.msra.mxu0 %v2436
        %v2438 = vand.u32 %v750, 4294901760
        %2439 = vmatprep.subr.mxu0 %v2438
        %v2440 = vand.u32 %v749, 4294901760
        %2441 = vmatpush1.msra.mxu0 %v2440
        %v2442 = vand.u32 %v790, 4294901760
        %2443 = vmatprep.subr.mxu0 %v2442
        %v2444 = vand.u32 %v787, 4294901760
        %2445 = vmatpush1.msra.mxu0 %v2444
        %2446 = vmatprep.subr.mxu0 0.0
        %2447 = vmatpush1.msra.mxu0 0.0
        %2448 = vmatprep.subr.mxu0 0.0
        %2449 = vmatpush1.msra.mxu0 0.0
        %2450 = vmatprep.subr.mxu0 0.0
        %2451 = vmatpush1.msra.mxu0 0.0
        %2452 = vmatprep.subr.mxu0 0.0
        %2453 = vmatpush1.msra.mxu0 0.0
        %2454 = vmatprep.subr.mxu0 0.0
        %2455 = vmatpush1.msra.mxu0 0.0
        %2456 = vmatprep.subr.mxu0 0.0
        %2457 = vmatpush1.msra.mxu0 0.0
        %2458 = vmatprep.subr.mxu0 0.0
        %2459 = vmatpush1.msra.mxu0 0.0
        %2460 = vmatprep.subr.mxu0 0.0
        %2461 = vmatpush1.msra.mxu0 0.0
        %2462 = vmatprep.subr.mxu0 0.0
        %2463 = vmatpush1.msra.mxu0 0.0
        %2464 = vmatprep.subr.mxu0 0.0
        %2465 = vmatpush1.msra.mxu0 0.0
        %2466 = vmatprep.subr.mxu0 0.0
        %2467 = vmatpush1.msra.mxu0 0.0
        %2468 = vmatprep.subr.mxu0 0.0
        %2469 = vmatpush1.msra.mxu0 0.0
        %2470 = vmatprep.subr.mxu0 0.0
        %2471 = vmatpush1.msra.mxu0 0.0
        %2472 = vmatprep.subr.mxu0 0.0
        %2473 = vmatpush1.msra.mxu0 0.0
        %2474 = vmatprep.subr.mxu0 0.0
        %2475 = vmatpush1.msra.mxu0 0.0
        %2476 = vmatprep.subr.mxu0 0.0
        %2477 = vmatpush1.msra.mxu0 0.0
        %2478 = vmatprep.subr.mxu0 0.0
        %2479 = vmatpush1.msra.mxu0 0.0
        %2480 = vmatprep.subr.mxu0 0.0
        %2481 = vmatpush1.msra.mxu0 0.0
        %2482 = vmatprep.subr.mxu0 0.0
        %2483 = vmatpush1.msra.mxu0 0.0
        %2484 = vmatprep.subr.mxu0 0.0
        %2485 = vmatpush1.msra.mxu0 0.0
        %2486 = vmatprep.subr.mxu0 0.0
        %2487 = vmatpush1.msra.mxu0 0.0
        %2488 = vmatprep.subr.mxu0 0.0
        %2489 = vmatpush1.msra.mxu0 0.0
        %2490 = vmatprep.subr.mxu0 0.0
        %2491 = vmatpush1.msra.mxu0 0.0
        %2492 = vmatprep.subr.mxu0 0.0
        %2493 = vmatpush1.msra.mxu0 0.0
        %2494 = vmatprep.subr.mxu0 0.0
        %2495 = vmatpush1.msra.mxu0 0.0
        %2496 = vmatprep.subr.mxu0 0.0
        %2497 = vmatpush1.msra.mxu0 0.0
        %2498 = vmatprep.subr.mxu0 0.0
        %2499 = vmatpush1.msra.mxu0 0.0
        %2500 = vmatprep.mubr.f32.mxu0 0.0
        %v2501 = vand.u32 %v771, 4294901760
        %2502 = vmatmul.mubr.f32.gmra.mrb[0].mxu0 %v2501
        %v2503 = vpop.f32.mrb[0].mxu0
        %v2504 = vadd.f32 %v2422, %v2503
        %v2505 = vpop.f32.mrb[0].mxu0
        %v2506 = vadd.f32 %v2424, %v2505
        %2507 = vdwg.mxu0
        %v2508 = vand.u32 %v725, 4294901760
        %2509 = vmatprep.subr.mxu0 %v2508
        %v2510 = vand.u32 %v724, 4294901760
        %2511 = vmatpush1.msra.mxu0 %v2510
        %v2512 = vand.u32 %v734, 4294901760
        %2513 = vmatprep.subr.mxu0 %v2512
        %v2514 = vand.u32 %v733, 4294901760
        %2515 = vmatpush1.msra.mxu0 %v2514
        %v2516 = vand.u32 %v743, 4294901760
        %2517 = vmatprep.subr.mxu0 %v2516
        %v2518 = vand.u32 %v742, 4294901760
        %2519 = vmatpush1.msra.mxu0 %v2518
        %v2520 = vand.u32 %v752, 4294901760
        %2521 = vmatprep.subr.mxu0 %v2520
        %v2522 = vand.u32 %v751, 4294901760
        %2523 = vmatpush1.msra.mxu0 %v2522
        %v2524 = vand.u32 %v796, 4294901760
        %2525 = vmatprep.subr.mxu0 %v2524
        %v2526 = vand.u32 %v793, 4294901760
        %2527 = vmatpush1.msra.mxu0 %v2526
        %2528 = vmatprep.subr.mxu0 0.0
        %2529 = vmatpush1.msra.mxu0 0.0
        %2530 = vmatprep.subr.mxu0 0.0
        %2531 = vmatpush1.msra.mxu0 0.0
        %2532 = vmatprep.subr.mxu0 0.0
        %2533 = vmatpush1.msra.mxu0 0.0
        %2534 = vmatprep.subr.mxu0 0.0
        %2535 = vmatpush1.msra.mxu0 0.0
        %2536 = vmatprep.subr.mxu0 0.0
        %2537 = vmatpush1.msra.mxu0 0.0
        %2538 = vmatprep.subr.mxu0 0.0
        %2539 = vmatpush1.msra.mxu0 0.0
        %2540 = vmatprep.subr.mxu0 0.0
        %2541 = vmatpush1.msra.mxu0 0.0
        %2542 = vmatprep.subr.mxu0 0.0
        %2543 = vmatpush1.msra.mxu0 0.0
        %2544 = vmatprep.subr.mxu0 0.0
        %2545 = vmatpush1.msra.mxu0 0.0
        %2546 = vmatprep.subr.mxu0 0.0
        %2547 = vmatpush1.msra.mxu0 0.0
        %2548 = vmatprep.subr.mxu0 0.0
        %2549 = vmatpush1.msra.mxu0 0.0
        %2550 = vmatprep.subr.mxu0 0.0
        %2551 = vmatpush1.msra.mxu0 0.0
        %2552 = vmatprep.subr.mxu0 0.0
        %2553 = vmatpush1.msra.mxu0 0.0
        %2554 = vmatprep.subr.mxu0 0.0
        %2555 = vmatpush1.msra.mxu0 0.0
        %2556 = vmatprep.subr.mxu0 0.0
        %2557 = vmatpush1.msra.mxu0 0.0
        %2558 = vmatprep.subr.mxu0 0.0
        %2559 = vmatpush1.msra.mxu0 0.0
        %2560 = vmatprep.subr.mxu0 0.0
        %2561 = vmatpush1.msra.mxu0 0.0
        %2562 = vmatprep.subr.mxu0 0.0
        %2563 = vmatpush1.msra.mxu0 0.0
        %2564 = vmatprep.subr.mxu0 0.0
        %2565 = vmatpush1.msra.mxu0 0.0
        %2566 = vmatprep.subr.mxu0 0.0
        %2567 = vmatpush1.msra.mxu0 0.0
        %2568 = vmatprep.subr.mxu0 0.0
        %2569 = vmatpush1.msra.mxu0 0.0
        %2570 = vmatprep.subr.mxu0 0.0
        %2571 = vmatpush1.msra.mxu0 0.0
        %2572 = vmatprep.subr.mxu0 0.0
        %2573 = vmatpush1.msra.mxu0 0.0
        %2574 = vmatprep.subr.mxu0 0.0
        %2575 = vmatpush1.msra.mxu0 0.0
        %2576 = vmatprep.subr.mxu0 0.0
        %2577 = vmatpush1.msra.mxu0 0.0
        %2578 = vmatprep.subr.mxu0 0.0
        %2579 = vmatpush1.msra.mxu0 0.0
        %2580 = vmatprep.subr.mxu0 0.0
        %2581 = vmatpush1.msra.mxu0 0.0
        %2582 = vmatprep.mubr.f32.mxu0 0.0
        %v2583 = vand.u32 %v771, 4294901760
        %v2584 = vsub.f32 %v771, %v2583
        %v2585 = vand.u32 %v2584, 4294901760
        %v2586 = vsub.f32 %v2584, %v2585
        %v2587 = vand.u32 %v2586, 4294901760
        %2588 = vmatmul.mubr.f32.gmra.mrb[0].mxu0 %v2587
        %v2589 = vpop.f32.mrb[0].mxu0
        %v2590 = vadd.f32 %v767, %v2589
        %v2591 = vpop.f32.mrb[0].mxu0
        %v2592 = vadd.f32 %v767, %v2591
        %2593 = vdwg.mxu0
        %v2594 = vand.u32 %v725, 4294901760
        %v2595 = vsub.f32 %v725, %v2594
        %v2596 = vand.u32 %v2595, 4294901760
        %v2597 = vsub.f32 %v2595, %v2596
        %v2598 = vand.u32 %v2597, 4294901760
        %2599 = vmatprep.subr.mxu0 %v2598
        %v2600 = vand.u32 %v724, 4294901760
        %v2601 = vsub.f32 %v724, %v2600
        %v2602 = vand.u32 %v2601, 4294901760
        %v2603 = vsub.f32 %v2601, %v2602
        %v2604 = vand.u32 %v2603, 4294901760
        %2605 = vmatpush1.msra.mxu0 %v2604
        %v2606 = vand.u32 %v734, 4294901760
        %v2607 = vsub.f32 %v734, %v2606
        %v2608 = vand.u32 %v2607, 4294901760
        %v2609 = vsub.f32 %v2607, %v2608
        %v2610 = vand.u32 %v2609, 4294901760
        %2611 = vmatprep.subr.mxu0 %v2610
        %v2612 = vand.u32 %v733, 4294901760
        %v2613 = vsub.f32 %v733, %v2612
        %v2614 = vand.u32 %v2613, 4294901760
        %v2615 = vsub.f32 %v2613, %v2614
        %v2616 = vand.u32 %v2615, 4294901760
        %2617 = vmatpush1.msra.mxu0 %v2616
        %v2618 = vand.u32 %v743, 4294901760
        %v2619 = vsub.f32 %v743, %v2618
        %v2620 = vand.u32 %v2619, 4294901760
        %v2621 = vsub.f32 %v2619, %v2620
        %v2622 = vand.u32 %v2621, 4294901760
        %2623 = vmatprep.subr.mxu0 %v2622
        %v2624 = vand.u32 %v742, 4294901760
        %v2625 = vsub.f32 %v742, %v2624
        %v2626 = vand.u32 %v2625, 4294901760
        %v2627 = vsub.f32 %v2625, %v2626
        %v2628 = vand.u32 %v2627, 4294901760
        %2629 = vmatpush1.msra.mxu0 %v2628
        %v2630 = vand.u32 %v752, 4294901760
        %v2631 = vsub.f32 %v752, %v2630
        %v2632 = vand.u32 %v2631, 4294901760
        %v2633 = vsub.f32 %v2631, %v2632
        %v2634 = vand.u32 %v2633, 4294901760
        %2635 = vmatprep.subr.mxu0 %v2634
        %v2636 = vand.u32 %v751, 4294901760
        %v2637 = vsub.f32 %v751, %v2636
        %v2638 = vand.u32 %v2637, 4294901760
        %v2639 = vsub.f32 %v2637, %v2638
        %v2640 = vand.u32 %v2639, 4294901760
        %2641 = vmatpush1.msra.mxu0 %v2640
        %v2642 = vand.u32 %v796, 4294901760
        %v2643 = vsub.f32 %v796, %v2642
        %v2644 = vand.u32 %v2643, 4294901760
        %v2645 = vsub.f32 %v2643, %v2644
        %v2646 = vand.u32 %v2645, 4294901760
        %2647 = vmatprep.subr.mxu0 %v2646
        %v2648 = vand.u32 %v793, 4294901760
        %v2649 = vsub.f32 %v793, %v2648
        %v2650 = vand.u32 %v2649, 4294901760
        %v2651 = vsub.f32 %v2649, %v2650
        %v2652 = vand.u32 %v2651, 4294901760
        %2653 = vmatpush1.msra.mxu0 %v2652
        %2654 = vmatprep.subr.mxu0 0.0
        %2655 = vmatpush1.msra.mxu0 0.0
        %2656 = vmatprep.subr.mxu0 0.0
        %2657 = vmatpush1.msra.mxu0 0.0
        %2658 = vmatprep.subr.mxu0 0.0
        %2659 = vmatpush1.msra.mxu0 0.0
        %2660 = vmatprep.subr.mxu0 0.0
        %2661 = vmatpush1.msra.mxu0 0.0
        %2662 = vmatprep.subr.mxu0 0.0
        %2663 = vmatpush1.msra.mxu0 0.0
        %2664 = vmatprep.subr.mxu0 0.0
        %2665 = vmatpush1.msra.mxu0 0.0
        %2666 = vmatprep.subr.mxu0 0.0
        %2667 = vmatpush1.msra.mxu0 0.0
        %2668 = vmatprep.subr.mxu0 0.0
        %2669 = vmatpush1.msra.mxu0 0.0
        %2670 = vmatprep.subr.mxu0 0.0
        %2671 = vmatpush1.msra.mxu0 0.0
        %2672 = vmatprep.subr.mxu0 0.0
        %2673 = vmatpush1.msra.mxu0 0.0
        %2674 = vmatprep.subr.mxu0 0.0
        %2675 = vmatpush1.msra.mxu0 0.0
        %2676 = vmatprep.subr.mxu0 0.0
        %2677 = vmatpush1.msra.mxu0 0.0
        %2678 = vmatprep.subr.mxu0 0.0
        %2679 = vmatpush1.msra.mxu0 0.0
        %2680 = vmatprep.subr.mxu0 0.0
        %2681 = vmatpush1.msra.mxu0 0.0
        %2682 = vmatprep.subr.mxu0 0.0
        %2683 = vmatpush1.msra.mxu0 0.0
        %2684 = vmatprep.subr.mxu0 0.0
        %2685 = vmatpush1.msra.mxu0 0.0
        %2686 = vmatprep.subr.mxu0 0.0
        %2687 = vmatpush1.msra.mxu0 0.0
        %2688 = vmatprep.subr.mxu0 0.0
        %2689 = vmatpush1.msra.mxu0 0.0
        %2690 = vmatprep.subr.mxu0 0.0
        %2691 = vmatpush1.msra.mxu0 0.0
        %2692 = vmatprep.subr.mxu0 0.0
        %2693 = vmatpush1.msra.mxu0 0.0
        %2694 = vmatprep.subr.mxu0 0.0
        %2695 = vmatpush1.msra.mxu0 0.0
        %2696 = vmatprep.subr.mxu0 0.0
        %2697 = vmatpush1.msra.mxu0 0.0
        %2698 = vmatprep.subr.mxu0 0.0
        %2699 = vmatpush1.msra.mxu0 0.0
        %2700 = vmatprep.subr.mxu0 0.0
        %2701 = vmatpush1.msra.mxu0 0.0
        %2702 = vmatprep.subr.mxu0 0.0
        %2703 = vmatpush1.msra.mxu0 0.0
        %2704 = vmatprep.subr.mxu0 0.0
        %2705 = vmatpush1.msra.mxu0 0.0
        %2706 = vmatprep.subr.mxu0 0.0
        %2707 = vmatpush1.msra.mxu0 0.0
        %2708 = vmatprep.mubr.f32.mxu0 0.0
        %v2709 = vand.u32 %v771, 4294901760
        %2710 = vmatmul.mubr.f32.gmra.mrb[0].mxu0 %v2709
        %v2711 = vpop.f32.mrb[0].mxu0
        %v2712 = vadd.f32 %v2590, %v2711
        %v2713 = vpop.f32.mrb[0].mxu0
        %v2714 = vadd.f32 %v2592, %v2713
        %2715 = vdwg.mxu0
        %v2716 = vand.u32 %v725, 4294901760
        %v2717 = vsub.f32 %v725, %v2716
        %2718 = vmatprep.subr.mxu0 %v2717
        %v2719 = vand.u32 %v724, 4294901760
        %v2720 = vsub.f32 %v724, %v2719
        %2721 = vmatpush1.msra.mxu0 %v2720
        %v2722 = vand.u32 %v734, 4294901760
        %v2723 = vsub.f32 %v734, %v2722
        %2724 = vmatprep.subr.mxu0 %v2723
        %v2725 = vand.u32 %v733, 4294901760
        %v2726 = vsub.f32 %v733, %v2725
        %2727 = vmatpush1.msra.mxu0 %v2726
        %v2728 = vand.u32 %v743, 4294901760
        %v2729 = vsub.f32 %v743, %v2728
        %2730 = vmatprep.subr.mxu0 %v2729
        %v2731 = vand.u32 %v742, 4294901760
        %v2732 = vsub.f32 %v742, %v2731
        %2733 = vmatpush1.msra.mxu0 %v2732
        %v2734 = vand.u32 %v752, 4294901760
        %v2735 = vsub.f32 %v752, %v2734
        %2736 = vmatprep.subr.mxu0 %v2735
        %v2737 = vand.u32 %v751, 4294901760
        %v2738 = vsub.f32 %v751, %v2737
        %2739 = vmatpush1.msra.mxu0 %v2738
        %v2740 = vand.u32 %v796, 4294901760
        %v2741 = vsub.f32 %v796, %v2740
        %2742 = vmatprep.subr.mxu0 %v2741
        %v2743 = vand.u32 %v793, 4294901760
        %v2744 = vsub.f32 %v793, %v2743
        %2745 = vmatpush1.msra.mxu0 %v2744
        %2746 = vmatprep.subr.mxu0 0.0
        %2747 = vmatpush1.msra.mxu0 0.0
        %2748 = vmatprep.subr.mxu0 0.0
        %2749 = vmatpush1.msra.mxu0 0.0
        %2750 = vmatprep.subr.mxu0 0.0
        %2751 = vmatpush1.msra.mxu0 0.0
        %2752 = vmatprep.subr.mxu0 0.0
        %2753 = vmatpush1.msra.mxu0 0.0
        %2754 = vmatprep.subr.mxu0 0.0
        %2755 = vmatpush1.msra.mxu0 0.0
        %2756 = vmatprep.subr.mxu0 0.0
        %2757 = vmatpush1.msra.mxu0 0.0
        %2758 = vmatprep.subr.mxu0 0.0
        %2759 = vmatpush1.msra.mxu0 0.0
        %2760 = vmatprep.subr.mxu0 0.0
        %2761 = vmatpush1.msra.mxu0 0.0
        %2762 = vmatprep.subr.mxu0 0.0
        %2763 = vmatpush1.msra.mxu0 0.0
        %2764 = vmatprep.subr.mxu0 0.0
        %2765 = vmatpush1.msra.mxu0 0.0
        %2766 = vmatprep.subr.mxu0 0.0
        %2767 = vmatpush1.msra.mxu0 0.0
        %2768 = vmatprep.subr.mxu0 0.0
        %2769 = vmatpush1.msra.mxu0 0.0
        %2770 = vmatprep.subr.mxu0 0.0
        %2771 = vmatpush1.msra.mxu0 0.0
        %2772 = vmatprep.subr.mxu0 0.0
        %2773 = vmatpush1.msra.mxu0 0.0
        %2774 = vmatprep.subr.mxu0 0.0
        %2775 = vmatpush1.msra.mxu0 0.0
        %2776 = vmatprep.subr.mxu0 0.0
        %2777 = vmatpush1.msra.mxu0 0.0
        %2778 = vmatprep.subr.mxu0 0.0
        %2779 = vmatpush1.msra.mxu0 0.0
        %2780 = vmatprep.subr.mxu0 0.0
        %2781 = vmatpush1.msra.mxu0 0.0
        %2782 = vmatprep.subr.mxu0 0.0
        %2783 = vmatpush1.msra.mxu0 0.0
        %2784 = vmatprep.subr.mxu0 0.0
        %2785 = vmatpush1.msra.mxu0 0.0
        %2786 = vmatprep.subr.mxu0 0.0
        %2787 = vmatpush1.msra.mxu0 0.0
        %2788 = vmatprep.subr.mxu0 0.0
        %2789 = vmatpush1.msra.mxu0 0.0
        %2790 = vmatprep.subr.mxu0 0.0
        %2791 = vmatpush1.msra.mxu0 0.0
        %2792 = vmatprep.subr.mxu0 0.0
        %2793 = vmatpush1.msra.mxu0 0.0
        %2794 = vmatprep.subr.mxu0 0.0
        %2795 = vmatpush1.msra.mxu0 0.0
        %2796 = vmatprep.subr.mxu0 0.0
        %2797 = vmatpush1.msra.mxu0 0.0
        %2798 = vmatprep.subr.mxu0 0.0
        %2799 = vmatpush1.msra.mxu0 0.0
        %2800 = vmatprep.mubr.f32.mxu0 0.0
        %v2801 = vand.u32 %v771, 4294901760
        %v2802 = vsub.f32 %v771, %v2801
        %2803 = vmatmul.mubr.f32.gmra.mrb[0].mxu0 %v2802
        %v2804 = vpop.f32.mrb[0].mxu0
        %v2805 = vadd.f32 %v2712, %v2804
        %v2806 = vpop.f32.mrb[0].mxu0
        %v2807 = vadd.f32 %v2714, %v2806
        %2808 = vdwg.mxu0
        %v2809 = vand.u32 %v725, 4294901760
        %2810 = vmatprep.subr.mxu0 %v2809
        %v2811 = vand.u32 %v724, 4294901760
        %2812 = vmatpush1.msra.mxu0 %v2811
        %v2813 = vand.u32 %v734, 4294901760
        %2814 = vmatprep.subr.mxu0 %v2813
        %v2815 = vand.u32 %v733, 4294901760
        %2816 = vmatpush1.msra.mxu0 %v2815
        %v2817 = vand.u32 %v743, 4294901760
        %2818 = vmatprep.subr.mxu0 %v2817
        %v2819 = vand.u32 %v742, 4294901760
        %2820 = vmatpush1.msra.mxu0 %v2819
        %v2821 = vand.u32 %v752, 4294901760
        %2822 = vmatprep.subr.mxu0 %v2821
        %v2823 = vand.u32 %v751, 4294901760
        %2824 = vmatpush1.msra.mxu0 %v2823
        %v2825 = vand.u32 %v796, 4294901760
        %2826 = vmatprep.subr.mxu0 %v2825
        %v2827 = vand.u32 %v793, 4294901760
        %2828 = vmatpush1.msra.mxu0 %v2827
        %2829 = vmatprep.subr.mxu0 0.0
        %2830 = vmatpush1.msra.mxu0 0.0
        %2831 = vmatprep.subr.mxu0 0.0
        %2832 = vmatpush1.msra.mxu0 0.0
        %2833 = vmatprep.subr.mxu0 0.0
        %2834 = vmatpush1.msra.mxu0 0.0
        %2835 = vmatprep.subr.mxu0 0.0
        %2836 = vmatpush1.msra.mxu0 0.0
        %2837 = vmatprep.subr.mxu0 0.0
        %2838 = vmatpush1.msra.mxu0 0.0
        %2839 = vmatprep.subr.mxu0 0.0
        %2840 = vmatpush1.msra.mxu0 0.0
        %2841 = vmatprep.subr.mxu0 0.0
        %2842 = vmatpush1.msra.mxu0 0.0
        %2843 = vmatprep.subr.mxu0 0.0
        %2844 = vmatpush1.msra.mxu0 0.0
        %2845 = vmatprep.subr.mxu0 0.0
        %2846 = vmatpush1.msra.mxu0 0.0
        %2847 = vmatprep.subr.mxu0 0.0
        %2848 = vmatpush1.msra.mxu0 0.0
        %2849 = vmatprep.subr.mxu0 0.0
        %2850 = vmatpush1.msra.mxu0 0.0
        %2851 = vmatprep.subr.mxu0 0.0
        %2852 = vmatpush1.msra.mxu0 0.0
        %2853 = vmatprep.subr.mxu0 0.0
        %2854 = vmatpush1.msra.mxu0 0.0
        %2855 = vmatprep.subr.mxu0 0.0
        %2856 = vmatpush1.msra.mxu0 0.0
        %2857 = vmatprep.subr.mxu0 0.0
        %2858 = vmatpush1.msra.mxu0 0.0
        %2859 = vmatprep.subr.mxu0 0.0
        %2860 = vmatpush1.msra.mxu0 0.0
        %2861 = vmatprep.subr.mxu0 0.0
        %2862 = vmatpush1.msra.mxu0 0.0
        %2863 = vmatprep.subr.mxu0 0.0
        %2864 = vmatpush1.msra.mxu0 0.0
        %2865 = vmatprep.subr.mxu0 0.0
        %2866 = vmatpush1.msra.mxu0 0.0
        %2867 = vmatprep.subr.mxu0 0.0
        %2868 = vmatpush1.msra.mxu0 0.0
        %2869 = vmatprep.subr.mxu0 0.0
        %2870 = vmatpush1.msra.mxu0 0.0
        %2871 = vmatprep.subr.mxu0 0.0
        %2872 = vmatpush1.msra.mxu0 0.0
        %2873 = vmatprep.subr.mxu0 0.0
        %2874 = vmatpush1.msra.mxu0 0.0
        %2875 = vmatprep.subr.mxu0 0.0
        %2876 = vmatpush1.msra.mxu0 0.0
        %2877 = vmatprep.subr.mxu0 0.0
        %2878 = vmatpush1.msra.mxu0 0.0
        %2879 = vmatprep.subr.mxu0 0.0
        %2880 = vmatpush1.msra.mxu0 0.0
        %2881 = vmatprep.subr.mxu0 0.0
        %2882 = vmatpush1.msra.mxu0 0.0
        %2883 = vmatprep.mubr.f32.mxu0 0.0
        %v2884 = vand.u32 %v771, 4294901760
        %v2885 = vsub.f32 %v771, %v2884
        %v2886 = vand.u32 %v2885, 4294901760
        %2887 = vmatmul.mubr.f32.gmra.mrb[0].mxu0 %v2886
        %v2888 = vpop.f32.mrb[0].mxu0
        %v2889 = vadd.f32 %v2805, %v2888
        %v2890 = vpop.f32.mrb[0].mxu0
        %v2891 = vadd.f32 %v2807, %v2890
        %2892 = vdwg.mxu0
        %v2893 = vand.u32 %v725, 4294901760
        %v2894 = vsub.f32 %v725, %v2893
        %v2895 = vand.u32 %v2894, 4294901760
        %2896 = vmatprep.subr.mxu0 %v2895
        %v2897 = vand.u32 %v724, 4294901760
        %v2898 = vsub.f32 %v724, %v2897
        %v2899 = vand.u32 %v2898, 4294901760
        %2900 = vmatpush1.msra.mxu0 %v2899
        %v2901 = vand.u32 %v734, 4294901760
        %v2902 = vsub.f32 %v734, %v2901
        %v2903 = vand.u32 %v2902, 4294901760
        %2904 = vmatprep.subr.mxu0 %v2903
        %v2905 = vand.u32 %v733, 4294901760
        %v2906 = vsub.f32 %v733, %v2905
        %v2907 = vand.u32 %v2906, 4294901760
        %2908 = vmatpush1.msra.mxu0 %v2907
        %v2909 = vand.u32 %v743, 4294901760
        %v2910 = vsub.f32 %v743, %v2909
        %v2911 = vand.u32 %v2910, 4294901760
        %2912 = vmatprep.subr.mxu0 %v2911
        %v2913 = vand.u32 %v742, 4294901760
        %v2914 = vsub.f32 %v742, %v2913
        %v2915 = vand.u32 %v2914, 4294901760
        %2916 = vmatpush1.msra.mxu0 %v2915
        %v2917 = vand.u32 %v752, 4294901760
        %v2918 = vsub.f32 %v752, %v2917
        %v2919 = vand.u32 %v2918, 4294901760
        %2920 = vmatprep.subr.mxu0 %v2919
        %v2921 = vand.u32 %v751, 4294901760
        %v2922 = vsub.f32 %v751, %v2921
        %v2923 = vand.u32 %v2922, 4294901760
        %2924 = vmatpush1.msra.mxu0 %v2923
        %v2925 = vand.u32 %v796, 4294901760
        %v2926 = vsub.f32 %v796, %v2925
        %v2927 = vand.u32 %v2926, 4294901760
        %2928 = vmatprep.subr.mxu0 %v2927
        %v2929 = vand.u32 %v793, 4294901760
        %v2930 = vsub.f32 %v793, %v2929
        %v2931 = vand.u32 %v2930, 4294901760
        %2932 = vmatpush1.msra.mxu0 %v2931
        %2933 = vmatprep.subr.mxu0 0.0
        %2934 = vmatpush1.msra.mxu0 0.0
        %2935 = vmatprep.subr.mxu0 0.0
        %2936 = vmatpush1.msra.mxu0 0.0
        %2937 = vmatprep.subr.mxu0 0.0
        %2938 = vmatpush1.msra.mxu0 0.0
        %2939 = vmatprep.subr.mxu0 0.0
        %2940 = vmatpush1.msra.mxu0 0.0
        %2941 = vmatprep.subr.mxu0 0.0
        %2942 = vmatpush1.msra.mxu0 0.0
        %2943 = vmatprep.subr.mxu0 0.0
        %2944 = vmatpush1.msra.mxu0 0.0
        %2945 = vmatprep.subr.mxu0 0.0
        %2946 = vmatpush1.msra.mxu0 0.0
        %2947 = vmatprep.subr.mxu0 0.0
        %2948 = vmatpush1.msra.mxu0 0.0
        %2949 = vmatprep.subr.mxu0 0.0
        %2950 = vmatpush1.msra.mxu0 0.0
        %2951 = vmatprep.subr.mxu0 0.0
        %2952 = vmatpush1.msra.mxu0 0.0
        %2953 = vmatprep.subr.mxu0 0.0
        %2954 = vmatpush1.msra.mxu0 0.0
        %2955 = vmatprep.subr.mxu0 0.0
        %2956 = vmatpush1.msra.mxu0 0.0
        %2957 = vmatprep.subr.mxu0 0.0
        %2958 = vmatpush1.msra.mxu0 0.0
        %2959 = vmatprep.subr.mxu0 0.0
        %2960 = vmatpush1.msra.mxu0 0.0
        %2961 = vmatprep.subr.mxu0 0.0
        %2962 = vmatpush1.msra.mxu0 0.0
        %2963 = vmatprep.subr.mxu0 0.0
        %2964 = vmatpush1.msra.mxu0 0.0
        %2965 = vmatprep.subr.mxu0 0.0
        %2966 = vmatpush1.msra.mxu0 0.0
        %2967 = vmatprep.subr.mxu0 0.0
        %2968 = vmatpush1.msra.mxu0 0.0
        %2969 = vmatprep.subr.mxu0 0.0
        %2970 = vmatpush1.msra.mxu0 0.0
        %2971 = vmatprep.subr.mxu0 0.0
        %2972 = vmatpush1.msra.mxu0 0.0
        %2973 = vmatprep.subr.mxu0 0.0
        %2974 = vmatpush1.msra.mxu0 0.0
        %2975 = vmatprep.subr.mxu0 0.0
        %2976 = vmatpush1.msra.mxu0 0.0
        %2977 = vmatprep.subr.mxu0 0.0
        %2978 = vmatpush1.msra.mxu0 0.0
        %2979 = vmatprep.subr.mxu0 0.0
        %2980 = vmatpush1.msra.mxu0 0.0
        %2981 = vmatprep.subr.mxu0 0.0
        %2982 = vmatpush1.msra.mxu0 0.0
        %2983 = vmatprep.subr.mxu0 0.0
        %2984 = vmatpush1.msra.mxu0 0.0
        %2985 = vmatprep.subr.mxu0 0.0
        %2986 = vmatpush1.msra.mxu0 0.0
        %2987 = vmatprep.mubr.f32.mxu0 0.0
        %v2988 = vand.u32 %v771, 4294901760
        %2989 = vmatmul.mubr.f32.gmra.mrb[0].mxu0 %v2988
        %v2990 = vpop.f32.mrb[0].mxu0
        %v2991 = vadd.f32 %v2889, %v2990
        %v2992 = vpop.f32.mrb[0].mxu0
        %v2993 = vadd.f32 %v2891, %v2992
        %2994 = vdwg.mxu0
        %v2995 = vand.u32 %v725, 4294901760
        %2996 = vmatprep.subr.mxu0 %v2995
        %v2997 = vand.u32 %v724, 4294901760
        %2998 = vmatpush1.msra.mxu0 %v2997
        %v2999 = vand.u32 %v734, 4294901760
        %3000 = vmatprep.subr.mxu0 %v2999
        %v3001 = vand.u32 %v733, 4294901760
        %3002 = vmatpush1.msra.mxu0 %v3001
        %v3003 = vand.u32 %v743, 4294901760
        %3004 = vmatprep.subr.mxu0 %v3003
        %v3005 = vand.u32 %v742, 4294901760
        %3006 = vmatpush1.msra.mxu0 %v3005
        %v3007 = vand.u32 %v752, 4294901760
        %3008 = vmatprep.subr.mxu0 %v3007
        %v3009 = vand.u32 %v751, 4294901760
        %3010 = vmatpush1.msra.mxu0 %v3009
        %v3011 = vand.u32 %v796, 4294901760
        %3012 = vmatprep.subr.mxu0 %v3011
        %v3013 = vand.u32 %v793, 4294901760
        %3014 = vmatpush1.msra.mxu0 %v3013
        %3015 = vmatprep.subr.mxu0 0.0
        %3016 = vmatpush1.msra.mxu0 0.0
        %3017 = vmatprep.subr.mxu0 0.0
        %3018 = vmatpush1.msra.mxu0 0.0
        %3019 = vmatprep.subr.mxu0 0.0
        %3020 = vmatpush1.msra.mxu0 0.0
        %3021 = vmatprep.subr.mxu0 0.0
        %3022 = vmatpush1.msra.mxu0 0.0
        %3023 = vmatprep.subr.mxu0 0.0
        %3024 = vmatpush1.msra.mxu0 0.0
        %3025 = vmatprep.subr.mxu0 0.0
        %3026 = vmatpush1.msra.mxu0 0.0
        %3027 = vmatprep.subr.mxu0 0.0
        %3028 = vmatpush1.msra.mxu0 0.0
        %3029 = vmatprep.subr.mxu0 0.0
        %3030 = vmatpush1.msra.mxu0 0.0
        %3031 = vmatprep.subr.mxu0 0.0
        %3032 = vmatpush1.msra.mxu0 0.0
        %3033 = vmatprep.subr.mxu0 0.0
        %3034 = vmatpush1.msra.mxu0 0.0
        %3035 = vmatprep.subr.mxu0 0.0
        %3036 = vmatpush1.msra.mxu0 0.0
        %3037 = vmatprep.subr.mxu0 0.0
        %3038 = vmatpush1.msra.mxu0 0.0
        %3039 = vmatprep.subr.mxu0 0.0
        %3040 = vmatpush1.msra.mxu0 0.0
        %3041 = vmatprep.subr.mxu0 0.0
        %3042 = vmatpush1.msra.mxu0 0.0
        %3043 = vmatprep.subr.mxu0 0.0
        %3044 = vmatpush1.msra.mxu0 0.0
        %3045 = vmatprep.subr.mxu0 0.0
        %3046 = vmatpush1.msra.mxu0 0.0
        %3047 = vmatprep.subr.mxu0 0.0
        %3048 = vmatpush1.msra.mxu0 0.0
        %3049 = vmatprep.subr.mxu0 0.0
        %3050 = vmatpush1.msra.mxu0 0.0
        %3051 = vmatprep.subr.mxu0 0.0
        %3052 = vmatpush1.msra.mxu0 0.0
        %3053 = vmatprep.subr.mxu0 0.0
        %3054 = vmatpush1.msra.mxu0 0.0
        %3055 = vmatprep.subr.mxu0 0.0
        %3056 = vmatpush1.msra.mxu0 0.0
        %3057 = vmatprep.subr.mxu0 0.0
        %3058 = vmatpush1.msra.mxu0 0.0
        %3059 = vmatprep.subr.mxu0 0.0
        %3060 = vmatpush1.msra.mxu0 0.0
        %3061 = vmatprep.subr.mxu0 0.0
        %3062 = vmatpush1.msra.mxu0 0.0
        %3063 = vmatprep.subr.mxu0 0.0
        %3064 = vmatpush1.msra.mxu0 0.0
        %3065 = vmatprep.subr.mxu0 0.0
        %3066 = vmatpush1.msra.mxu0 0.0
        %3067 = vmatprep.subr.mxu0 0.0
        %3068 = vmatpush1.msra.mxu0 0.0
        %3069 = vmatprep.mubr.f32.mxu0 0.0
        %v3070 = vand.u32 %v771, 4294901760
        %3071 = vmatmul.mubr.f32.gmra.mrb[0].mxu0 %v3070
        %v3072 = vpop.f32.mrb[0].mxu0
        %v3073 = vadd.f32 %v2991, %v3072
        %v3074 = vpop.f32.mrb[0].mxu0
        %v3075 = vadd.f32 %v2993, %v3074
        %3076 = vdwg.mxu0
        %3077 = vmatprep.subr.mxu0 0.0
        %v3078 = vand.u32 %v726, 4294901760
        %3079 = vmatpush1.msra.mxu0 %v3078
        %3080 = vmatprep.subr.mxu0 0.0
        %v3081 = vand.u32 %v735, 4294901760
        %3082 = vmatpush1.msra.mxu0 %v3081
        %3083 = vmatprep.subr.mxu0 0.0
        %v3084 = vand.u32 %v744, 4294901760
        %3085 = vmatpush1.msra.mxu0 %v3084
        %3086 = vmatprep.subr.mxu0 0.0
        %v3087 = vand.u32 %v753, 4294901760
        %3088 = vmatpush1.msra.mxu0 %v3087
        %3089 = vmatprep.subr.mxu0 0.0
        %v3090 = vand.u32 %v799, 4294901760
        %3091 = vmatpush1.msra.mxu0 %v3090
        %3092 = vmatprep.subr.mxu0 0.0
        %3093 = vmatpush1.msra.mxu0 0.0
        %3094 = vmatprep.subr.mxu0 0.0
        %3095 = vmatpush1.msra.mxu0 0.0
        %3096 = vmatprep.subr.mxu0 0.0
        %3097 = vmatpush1.msra.mxu0 0.0
        %3098 = vmatprep.subr.mxu0 0.0
        %3099 = vmatpush1.msra.mxu0 0.0
        %3100 = vmatprep.subr.mxu0 0.0
        %3101 = vmatpush1.msra.mxu0 0.0
        %3102 = vmatprep.subr.mxu0 0.0
        %3103 = vmatpush1.msra.mxu0 0.0
        %3104 = vmatprep.subr.mxu0 0.0
        %3105 = vmatpush1.msra.mxu0 0.0
        %3106 = vmatprep.subr.mxu0 0.0
        %3107 = vmatpush1.msra.mxu0 0.0
        %3108 = vmatprep.subr.mxu0 0.0
        %3109 = vmatpush1.msra.mxu0 0.0
        %3110 = vmatprep.subr.mxu0 0.0
        %3111 = vmatpush1.msra.mxu0 0.0
        %3112 = vmatprep.subr.mxu0 0.0
        %3113 = vmatpush1.msra.mxu0 0.0
        %3114 = vmatprep.subr.mxu0 0.0
        %3115 = vmatpush1.msra.mxu0 0.0
        %3116 = vmatprep.subr.mxu0 0.0
        %3117 = vmatpush1.msra.mxu0 0.0
        %3118 = vmatprep.subr.mxu0 0.0
        %3119 = vmatpush1.msra.mxu0 0.0
        %3120 = vmatprep.subr.mxu0 0.0
        %3121 = vmatpush1.msra.mxu0 0.0
        %3122 = vmatprep.subr.mxu0 0.0
        %3123 = vmatpush1.msra.mxu0 0.0
        %3124 = vmatprep.subr.mxu0 0.0
        %3125 = vmatpush1.msra.mxu0 0.0
        %3126 = vmatprep.subr.mxu0 0.0
        %3127 = vmatpush1.msra.mxu0 0.0
        %3128 = vmatprep.subr.mxu0 0.0
        %3129 = vmatpush1.msra.mxu0 0.0
        %3130 = vmatprep.subr.mxu0 0.0
        %3131 = vmatpush1.msra.mxu0 0.0
        %3132 = vmatprep.subr.mxu0 0.0
        %3133 = vmatpush1.msra.mxu0 0.0
        %3134 = vmatprep.subr.mxu0 0.0
        %3135 = vmatpush1.msra.mxu0 0.0
        %3136 = vmatprep.subr.mxu0 0.0
        %3137 = vmatpush1.msra.mxu0 0.0
        %3138 = vmatprep.subr.mxu0 0.0
        %3139 = vmatpush1.msra.mxu0 0.0
        %3140 = vmatprep.subr.mxu0 0.0
        %3141 = vmatpush1.msra.mxu0 0.0
        %3142 = vmatprep.subr.mxu0 0.0
        %3143 = vmatpush1.msra.mxu0 0.0
        %3144 = vmatprep.subr.mxu0 0.0
        %3145 = vmatpush1.msra.mxu0 0.0
        %3146 = vmatprep.mubr.f32.mxu0 0.0
        %v3147 = vand.u32 %v771, 4294901760
        %v3148 = vsub.f32 %v771, %v3147
        %v3149 = vand.u32 %v3148, 4294901760
        %v3150 = vsub.f32 %v3148, %v3149
        %v3151 = vand.u32 %v3150, 4294901760
        %3152 = vmatmul.mubr.f32.gmra.mrb[0].mxu0 %v3151
        %v3153 = vpop.f32.mrb[0].mxu0
        %v3154 = vadd.f32 %v767, %v3153
        %v3155 = vpop.f32.mrb[0].mxu0
        %3156 = vdwg.mxu0
        %3157 = vmatprep.subr.mxu0 0.0
        %v3158 = vand.u32 %v726, 4294901760
        %v3159 = vsub.f32 %v726, %v3158
        %v3160 = vand.u32 %v3159, 4294901760
        %v3161 = vsub.f32 %v3159, %v3160
        %v3162 = vand.u32 %v3161, 4294901760
        %3163 = vmatpush1.msra.mxu0 %v3162
        %3164 = vmatprep.subr.mxu0 0.0
        %v3165 = vand.u32 %v735, 4294901760
        %v3166 = vsub.f32 %v735, %v3165
        %v3167 = vand.u32 %v3166, 4294901760
        %v3168 = vsub.f32 %v3166, %v3167
        %v3169 = vand.u32 %v3168, 4294901760
        %3170 = vmatpush1.msra.mxu0 %v3169
        %3171 = vmatprep.subr.mxu0 0.0
        %v3172 = vand.u32 %v744, 4294901760
        %v3173 = vsub.f32 %v744, %v3172
        %v3174 = vand.u32 %v3173, 4294901760
        %v3175 = vsub.f32 %v3173, %v3174
        %v3176 = vand.u32 %v3175, 4294901760
        %3177 = vmatpush1.msra.mxu0 %v3176
        %3178 = vmatprep.subr.mxu0 0.0
        %v3179 = vand.u32 %v753, 4294901760
        %v3180 = vsub.f32 %v753, %v3179
        %v3181 = vand.u32 %v3180, 4294901760
        %v3182 = vsub.f32 %v3180, %v3181
        %v3183 = vand.u32 %v3182, 4294901760
        %3184 = vmatpush1.msra.mxu0 %v3183
        %3185 = vmatprep.subr.mxu0 0.0
        %v3186 = vand.u32 %v799, 4294901760
        %v3187 = vsub.f32 %v799, %v3186
        %v3188 = vand.u32 %v3187, 4294901760
        %v3189 = vsub.f32 %v3187, %v3188
        %v3190 = vand.u32 %v3189, 4294901760
        %3191 = vmatpush1.msra.mxu0 %v3190
        %3192 = vmatprep.subr.mxu0 0.0
        %3193 = vmatpush1.msra.mxu0 0.0
        %3194 = vmatprep.subr.mxu0 0.0
        %3195 = vmatpush1.msra.mxu0 0.0
        %3196 = vmatprep.subr.mxu0 0.0
        %3197 = vmatpush1.msra.mxu0 0.0
        %3198 = vmatprep.subr.mxu0 0.0
        %3199 = vmatpush1.msra.mxu0 0.0
        %3200 = vmatprep.subr.mxu0 0.0
        %3201 = vmatpush1.msra.mxu0 0.0
        %3202 = vmatprep.subr.mxu0 0.0
        %3203 = vmatpush1.msra.mxu0 0.0
        %3204 = vmatprep.subr.mxu0 0.0
        %3205 = vmatpush1.msra.mxu0 0.0
        %3206 = vmatprep.subr.mxu0 0.0
        %3207 = vmatpush1.msra.mxu0 0.0
        %3208 = vmatprep.subr.mxu0 0.0
        %3209 = vmatpush1.msra.mxu0 0.0
        %3210 = vmatprep.subr.mxu0 0.0
        %3211 = vmatpush1.msra.mxu0 0.0
        %3212 = vmatprep.subr.mxu0 0.0
        %3213 = vmatpush1.msra.mxu0 0.0
        %3214 = vmatprep.subr.mxu0 0.0
        %3215 = vmatpush1.msra.mxu0 0.0
        %3216 = vmatprep.subr.mxu0 0.0
        %3217 = vmatpush1.msra.mxu0 0.0
        %3218 = vmatprep.subr.mxu0 0.0
        %3219 = vmatpush1.msra.mxu0 0.0
        %3220 = vmatprep.subr.mxu0 0.0
        %3221 = vmatpush1.msra.mxu0 0.0
        %3222 = vmatprep.subr.mxu0 0.0
        %3223 = vmatpush1.msra.mxu0 0.0
        %3224 = vmatprep.subr.mxu0 0.0
        %3225 = vmatpush1.msra.mxu0 0.0
        %3226 = vmatprep.subr.mxu0 0.0
        %3227 = vmatpush1.msra.mxu0 0.0
        %3228 = vmatprep.subr.mxu0 0.0
        %3229 = vmatpush1.msra.mxu0 0.0
        %3230 = vmatprep.subr.mxu0 0.0
        %3231 = vmatpush1.msra.mxu0 0.0
        %3232 = vmatprep.subr.mxu0 0.0
        %3233 = vmatpush1.msra.mxu0 0.0
        %3234 = vmatprep.subr.mxu0 0.0
        %3235 = vmatpush1.msra.mxu0 0.0
        %3236 = vmatprep.subr.mxu0 0.0
        %3237 = vmatpush1.msra.mxu0 0.0
        %3238 = vmatprep.subr.mxu0 0.0
        %3239 = vmatpush1.msra.mxu0 0.0
        %3240 = vmatprep.subr.mxu0 0.0
        %3241 = vmatpush1.msra.mxu0 0.0
        %3242 = vmatprep.subr.mxu0 0.0
        %3243 = vmatpush1.msra.mxu0 0.0
        %3244 = vmatprep.subr.mxu0 0.0
        %3245 = vmatpush1.msra.mxu0 0.0
        %3246 = vmatprep.mubr.f32.mxu0 0.0
        %v3247 = vand.u32 %v771, 4294901760
        %3248 = vmatmul.mubr.f32.gmra.mrb[0].mxu0 %v3247
        %v3249 = vpop.f32.mrb[0].mxu0
        %v3250 = vadd.f32 %v3154, %v3249
        %v3251 = vpop.f32.mrb[0].mxu0
        %3252 = vdwg.mxu0
        %3253 = vmatprep.subr.mxu0 0.0
        %v3254 = vand.u32 %v726, 4294901760
        %v3255 = vsub.f32 %v726, %v3254
        %3256 = vmatpush1.msra.mxu0 %v3255
        %3257 = vmatprep.subr.mxu0 0.0
        %v3258 = vand.u32 %v735, 4294901760
        %v3259 = vsub.f32 %v735, %v3258
        %3260 = vmatpush1.msra.mxu0 %v3259
        %3261 = vmatprep.subr.mxu0 0.0
        %v3262 = vand.u32 %v744, 4294901760
        %v3263 = vsub.f32 %v744, %v3262
        %3264 = vmatpush1.msra.mxu0 %v3263
        %3265 = vmatprep.subr.mxu0 0.0
        %v3266 = vand.u32 %v753, 4294901760
        %v3267 = vsub.f32 %v753, %v3266
        %3268 = vmatpush1.msra.mxu0 %v3267
        %3269 = vmatprep.subr.mxu0 0.0
        %v3270 = vand.u32 %v799, 4294901760
        %v3271 = vsub.f32 %v799, %v3270
        %3272 = vmatpush1.msra.mxu0 %v3271
        %3273 = vmatprep.subr.mxu0 0.0
        %3274 = vmatpush1.msra.mxu0 0.0
        %3275 = vmatprep.subr.mxu0 0.0
        %3276 = vmatpush1.msra.mxu0 0.0
        %3277 = vmatprep.subr.mxu0 0.0
        %3278 = vmatpush1.msra.mxu0 0.0
        %3279 = vmatprep.subr.mxu0 0.0
        %3280 = vmatpush1.msra.mxu0 0.0
        %3281 = vmatprep.subr.mxu0 0.0
        %3282 = vmatpush1.msra.mxu0 0.0
        %3283 = vmatprep.subr.mxu0 0.0
        %3284 = vmatpush1.msra.mxu0 0.0
        %3285 = vmatprep.subr.mxu0 0.0
        %3286 = vmatpush1.msra.mxu0 0.0
        %3287 = vmatprep.subr.mxu0 0.0
        %3288 = vmatpush1.msra.mxu0 0.0
        %3289 = vmatprep.subr.mxu0 0.0
        %3290 = vmatpush1.msra.mxu0 0.0
        %3291 = vmatprep.subr.mxu0 0.0
        %3292 = vmatpush1.msra.mxu0 0.0
        %3293 = vmatprep.subr.mxu0 0.0
        %3294 = vmatpush1.msra.mxu0 0.0
        %3295 = vmatprep.subr.mxu0 0.0
        %3296 = vmatpush1.msra.mxu0 0.0
        %3297 = vmatprep.subr.mxu0 0.0
        %3298 = vmatpush1.msra.mxu0 0.0
        %3299 = vmatprep.subr.mxu0 0.0
        %3300 = vmatpush1.msra.mxu0 0.0
        %3301 = vmatprep.subr.mxu0 0.0
        %3302 = vmatpush1.msra.mxu0 0.0
        %3303 = vmatprep.subr.mxu0 0.0
        %3304 = vmatpush1.msra.mxu0 0.0
        %3305 = vmatprep.subr.mxu0 0.0
        %3306 = vmatpush1.msra.mxu0 0.0
        %3307 = vmatprep.subr.mxu0 0.0
        %3308 = vmatpush1.msra.mxu0 0.0
        %3309 = vmatprep.subr.mxu0 0.0
        %3310 = vmatpush1.msra.mxu0 0.0
        %3311 = vmatprep.subr.mxu0 0.0
        %3312 = vmatpush1.msra.mxu0 0.0
        %3313 = vmatprep.subr.mxu0 0.0
        %3314 = vmatpush1.msra.mxu0 0.0
        %3315 = vmatprep.subr.mxu0 0.0
        %3316 = vmatpush1.msra.mxu0 0.0
        %3317 = vmatprep.subr.mxu0 0.0
        %3318 = vmatpush1.msra.mxu0 0.0
        %3319 = vmatprep.subr.mxu0 0.0
        %3320 = vmatpush1.msra.mxu0 0.0
        %3321 = vmatprep.subr.mxu0 0.0
        %3322 = vmatpush1.msra.mxu0 0.0
        %3323 = vmatprep.subr.mxu0 0.0
        %3324 = vmatpush1.msra.mxu0 0.0
        %3325 = vmatprep.subr.mxu0 0.0
        %3326 = vmatpush1.msra.mxu0 0.0
        %3327 = vmatprep.mubr.f32.mxu0 0.0
        %v3328 = vand.u32 %v771, 4294901760
        %v3329 = vsub.f32 %v771, %v3328
        %3330 = vmatmul.mubr.f32.gmra.mrb[0].mxu0 %v3329
        %v3331 = vpop.f32.mrb[0].mxu0
        %v3332 = vadd.f32 %v3250, %v3331
        %v3333 = vpop.f32.mrb[0].mxu0
        %3334 = vdwg.mxu0
        %3335 = vmatprep.subr.mxu0 0.0
        %v3336 = vand.u32 %v726, 4294901760
        %3337 = vmatpush1.msra.mxu0 %v3336
        %3338 = vmatprep.subr.mxu0 0.0
        %v3339 = vand.u32 %v735, 4294901760
        %3340 = vmatpush1.msra.mxu0 %v3339
        %3341 = vmatprep.subr.mxu0 0.0
        %v3342 = vand.u32 %v744, 4294901760
        %3343 = vmatpush1.msra.mxu0 %v3342
        %3344 = vmatprep.subr.mxu0 0.0
        %v3345 = vand.u32 %v753, 4294901760
        %3346 = vmatpush1.msra.mxu0 %v3345
        %3347 = vmatprep.subr.mxu0 0.0
        %v3348 = vand.u32 %v799, 4294901760
        %3349 = vmatpush1.msra.mxu0 %v3348
        %3350 = vmatprep.subr.mxu0 0.0
        %3351 = vmatpush1.msra.mxu0 0.0
        %3352 = vmatprep.subr.mxu0 0.0
        %3353 = vmatpush1.msra.mxu0 0.0
        %3354 = vmatprep.subr.mxu0 0.0
        %3355 = vmatpush1.msra.mxu0 0.0
        %3356 = vmatprep.subr.mxu0 0.0
        %3357 = vmatpush1.msra.mxu0 0.0
        %3358 = vmatprep.subr.mxu0 0.0
        %3359 = vmatpush1.msra.mxu0 0.0
        %3360 = vmatprep.subr.mxu0 0.0
        %3361 = vmatpush1.msra.mxu0 0.0
        %3362 = vmatprep.subr.mxu0 0.0
        %3363 = vmatpush1.msra.mxu0 0.0
        %3364 = vmatprep.subr.mxu0 0.0
        %3365 = vmatpush1.msra.mxu0 0.0
        %3366 = vmatprep.subr.mxu0 0.0
        %3367 = vmatpush1.msra.mxu0 0.0
        %3368 = vmatprep.subr.mxu0 0.0
        %3369 = vmatpush1.msra.mxu0 0.0
        %3370 = vmatprep.subr.mxu0 0.0
        %3371 = vmatpush1.msra.mxu0 0.0
        %3372 = vmatprep.subr.mxu0 0.0
        %3373 = vmatpush1.msra.mxu0 0.0
        %3374 = vmatprep.subr.mxu0 0.0
        %3375 = vmatpush1.msra.mxu0 0.0
        %3376 = vmatprep.subr.mxu0 0.0
        %3377 = vmatpush1.msra.mxu0 0.0
        %3378 = vmatprep.subr.mxu0 0.0
        %3379 = vmatpush1.msra.mxu0 0.0
        %3380 = vmatprep.subr.mxu0 0.0
        %3381 = vmatpush1.msra.mxu0 0.0
        %3382 = vmatprep.subr.mxu0 0.0
        %3383 = vmatpush1.msra.mxu0 0.0
        %3384 = vmatprep.subr.mxu0 0.0
        %3385 = vmatpush1.msra.mxu0 0.0
        %3386 = vmatprep.subr.mxu0 0.0
        %3387 = vmatpush1.msra.mxu0 0.0
        %3388 = vmatprep.subr.mxu0 0.0
        %3389 = vmatpush1.msra.mxu0 0.0
        %3390 = vmatprep.subr.mxu0 0.0
        %3391 = vmatpush1.msra.mxu0 0.0
        %3392 = vmatprep.subr.mxu0 0.0
        %3393 = vmatpush1.msra.mxu0 0.0
        %3394 = vmatprep.subr.mxu0 0.0
        %3395 = vmatpush1.msra.mxu0 0.0
        %3396 = vmatprep.subr.mxu0 0.0
        %3397 = vmatpush1.msra.mxu0 0.0
        %3398 = vmatprep.subr.mxu0 0.0
        %3399 = vmatpush1.msra.mxu0 0.0
        %3400 = vmatprep.subr.mxu0 0.0
        %3401 = vmatpush1.msra.mxu0 0.0
        %3402 = vmatprep.subr.mxu0 0.0
        %3403 = vmatpush1.msra.mxu0 0.0
        %3404 = vmatprep.mubr.f32.mxu0 0.0
        %v3405 = vand.u32 %v771, 4294901760
        %v3406 = vsub.f32 %v771, %v3405
        %v3407 = vand.u32 %v3406, 4294901760
        %3408 = vmatmul.mubr.f32.gmra.mrb[0].mxu0 %v3407
        %v3409 = vpop.f32.mrb[0].mxu0
        %v3410 = vadd.f32 %v3332, %v3409
        %v3411 = vpop.f32.mrb[0].mxu0
        %3412 = vdwg.mxu0
        %3413 = vmatprep.subr.mxu0 0.0
        %v3414 = vand.u32 %v726, 4294901760
        %v3415 = vsub.f32 %v726, %v3414
        %v3416 = vand.u32 %v3415, 4294901760
        %3417 = vmatpush1.msra.mxu0 %v3416
        %3418 = vmatprep.subr.mxu0 0.0
        %v3419 = vand.u32 %v735, 4294901760
        %v3420 = vsub.f32 %v735, %v3419
        %v3421 = vand.u32 %v3420, 4294901760
        %3422 = vmatpush1.msra.mxu0 %v3421
        %3423 = vmatprep.subr.mxu0 0.0
        %v3424 = vand.u32 %v744, 4294901760
        %v3425 = vsub.f32 %v744, %v3424
        %v3426 = vand.u32 %v3425, 4294901760
        %3427 = vmatpush1.msra.mxu0 %v3426
        %3428 = vmatprep.subr.mxu0 0.0
        %v3429 = vand.u32 %v753, 4294901760
        %v3430 = vsub.f32 %v753, %v3429
        %v3431 = vand.u32 %v3430, 4294901760
        %3432 = vmatpush1.msra.mxu0 %v3431
        %3433 = vmatprep.subr.mxu0 0.0
        %v3434 = vand.u32 %v799, 4294901760
        %v3435 = vsub.f32 %v799, %v3434
        %v3436 = vand.u32 %v3435, 4294901760
        %3437 = vmatpush1.msra.mxu0 %v3436
        %3438 = vmatprep.subr.mxu0 0.0
        %3439 = vmatpush1.msra.mxu0 0.0
        %3440 = vmatprep.subr.mxu0 0.0
        %3441 = vmatpush1.msra.mxu0 0.0
        %3442 = vmatprep.subr.mxu0 0.0
        %3443 = vmatpush1.msra.mxu0 0.0
        %3444 = vmatprep.subr.mxu0 0.0
        %3445 = vmatpush1.msra.mxu0 0.0
        %3446 = vmatprep.subr.mxu0 0.0
        %3447 = vmatpush1.msra.mxu0 0.0
        %3448 = vmatprep.subr.mxu0 0.0
        %3449 = vmatpush1.msra.mxu0 0.0
        %3450 = vmatprep.subr.mxu0 0.0
        %3451 = vmatpush1.msra.mxu0 0.0
        %3452 = vmatprep.subr.mxu0 0.0
        %3453 = vmatpush1.msra.mxu0 0.0
        %3454 = vmatprep.subr.mxu0 0.0
        %3455 = vmatpush1.msra.mxu0 0.0
        %3456 = vmatprep.subr.mxu0 0.0
        %3457 = vmatpush1.msra.mxu0 0.0
        %3458 = vmatprep.subr.mxu0 0.0
        %3459 = vmatpush1.msra.mxu0 0.0
        %3460 = vmatprep.subr.mxu0 0.0
        %3461 = vmatpush1.msra.mxu0 0.0
        %3462 = vmatprep.subr.mxu0 0.0
        %3463 = vmatpush1.msra.mxu0 0.0
        %3464 = vmatprep.subr.mxu0 0.0
        %3465 = vmatpush1.msra.mxu0 0.0
        %3466 = vmatprep.subr.mxu0 0.0
        %3467 = vmatpush1.msra.mxu0 0.0
        %3468 = vmatprep.subr.mxu0 0.0
        %3469 = vmatpush1.msra.mxu0 0.0
        %3470 = vmatprep.subr.mxu0 0.0
        %3471 = vmatpush1.msra.mxu0 0.0
        %3472 = vmatprep.subr.mxu0 0.0
        %3473 = vmatpush1.msra.mxu0 0.0
        %3474 = vmatprep.subr.mxu0 0.0
        %3475 = vmatpush1.msra.mxu0 0.0
        %3476 = vmatprep.subr.mxu0 0.0
        %3477 = vmatpush1.msra.mxu0 0.0
        %3478 = vmatprep.subr.mxu0 0.0
        %3479 = vmatpush1.msra.mxu0 0.0
        %3480 = vmatprep.subr.mxu0 0.0
        %3481 = vmatpush1.msra.mxu0 0.0
        %3482 = vmatprep.subr.mxu0 0.0
        %3483 = vmatpush1.msra.mxu0 0.0
        %3484 = vmatprep.subr.mxu0 0.0
        %3485 = vmatpush1.msra.mxu0 0.0
        %3486 = vmatprep.subr.mxu0 0.0
        %3487 = vmatpush1.msra.mxu0 0.0
        %3488 = vmatprep.subr.mxu0 0.0
        %3489 = vmatpush1.msra.mxu0 0.0
        %3490 = vmatprep.subr.mxu0 0.0
        %3491 = vmatpush1.msra.mxu0 0.0
        %3492 = vmatprep.mubr.f32.mxu0 0.0
        %v3493 = vand.u32 %v771, 4294901760
        %3494 = vmatmul.mubr.f32.gmra.mrb[0].mxu0 %v3493
        %v3495 = vpop.f32.mrb[0].mxu0
        %v3496 = vadd.f32 %v3410, %v3495
        %v3497 = vpop.f32.mrb[0].mxu0
        %3498 = vdwg.mxu0
        %3499 = vmatprep.subr.mxu0 0.0
        %v3500 = vand.u32 %v726, 4294901760
        %3501 = vmatpush1.msra.mxu0 %v3500
        %3502 = vmatprep.subr.mxu0 0.0
        %v3503 = vand.u32 %v735, 4294901760
        %3504 = vmatpush1.msra.mxu0 %v3503
        %3505 = vmatprep.subr.mxu0 0.0
        %v3506 = vand.u32 %v744, 4294901760
        %3507 = vmatpush1.msra.mxu0 %v3506
        %3508 = vmatprep.subr.mxu0 0.0
        %v3509 = vand.u32 %v753, 4294901760
        %3510 = vmatpush1.msra.mxu0 %v3509
        %3511 = vmatprep.subr.mxu0 0.0
        %v3512 = vand.u32 %v799, 4294901760
        %3513 = vmatpush1.msra.mxu0 %v3512
        %3514 = vmatprep.subr.mxu0 0.0
        %3515 = vmatpush1.msra.mxu0 0.0
        %3516 = vmatprep.subr.mxu0 0.0
        %3517 = vmatpush1.msra.mxu0 0.0
        %3518 = vmatprep.subr.mxu0 0.0
        %3519 = vmatpush1.msra.mxu0 0.0
        %3520 = vmatprep.subr.mxu0 0.0
        %3521 = vmatpush1.msra.mxu0 0.0
        %3522 = vmatprep.subr.mxu0 0.0
        %3523 = vmatpush1.msra.mxu0 0.0
        %3524 = vmatprep.subr.mxu0 0.0
        %3525 = vmatpush1.msra.mxu0 0.0
        %3526 = vmatprep.subr.mxu0 0.0
        %3527 = vmatpush1.msra.mxu0 0.0
        %3528 = vmatprep.subr.mxu0 0.0
        %3529 = vmatpush1.msra.mxu0 0.0
        %3530 = vmatprep.subr.mxu0 0.0
        %3531 = vmatpush1.msra.mxu0 0.0
        %3532 = vmatprep.subr.mxu0 0.0
        %3533 = vmatpush1.msra.mxu0 0.0
        %3534 = vmatprep.subr.mxu0 0.0
        %3535 = vmatpush1.msra.mxu0 0.0
        %3536 = vmatprep.subr.mxu0 0.0
        %3537 = vmatpush1.msra.mxu0 0.0
        %3538 = vmatprep.subr.mxu0 0.0
        %3539 = vmatpush1.msra.mxu0 0.0
        %3540 = vmatprep.subr.mxu0 0.0
        %3541 = vmatpush1.msra.mxu0 0.0
        %3542 = vmatprep.subr.mxu0 0.0
        %3543 = vmatpush1.msra.mxu0 0.0
        %3544 = vmatprep.subr.mxu0 0.0
        %3545 = vmatpush1.msra.mxu0 0.0
        %3546 = vmatprep.subr.mxu0 0.0
        %3547 = vmatpush1.msra.mxu0 0.0
        %3548 = vmatprep.subr.mxu0 0.0
        %3549 = vmatpush1.msra.mxu0 0.0
        %3550 = vmatprep.subr.mxu0 0.0
        %3551 = vmatpush1.msra.mxu0 0.0
        %3552 = vmatprep.subr.mxu0 0.0
        %3553 = vmatpush1.msra.mxu0 0.0
        %3554 = vmatprep.subr.mxu0 0.0
        %3555 = vmatpush1.msra.mxu0 0.0
        %3556 = vmatprep.subr.mxu0 0.0
        %3557 = vmatpush1.msra.mxu0 0.0
        %3558 = vmatprep.subr.mxu0 0.0
        %3559 = vmatpush1.msra.mxu0 0.0
        %3560 = vmatprep.subr.mxu0 0.0
        %3561 = vmatpush1.msra.mxu0 0.0
        %3562 = vmatprep.subr.mxu0 0.0
        %3563 = vmatpush1.msra.mxu0 0.0
        %3564 = vmatprep.subr.mxu0 0.0
        %3565 = vmatpush1.msra.mxu0 0.0
        %3566 = vmatprep.subr.mxu0 0.0
        %3567 = vmatpush1.msra.mxu0 0.0
        %3568 = vmatprep.mubr.f32.mxu0 0.0
        %v3569 = vand.u32 %v771, 4294901760
        %3570 = vmatmul.mubr.f32.gmra.mrb[0].mxu0 %v3569
        %v3571 = vpop.f32.mrb[0].mxu0
        %v3572 = vadd.f32 %v3496, %v3571
        %v3573 = vpop.f32.mrb[0].mxu0
        %3574 = vdwg.mxu0
        %v3575 = vmax.f32 %v1366, 0.0
        %v3576 = vmax.f32 %v1368, 0.0
        %v3577 = vmax.f32 %v1935, 0.0
        %v3578 = vmax.f32 %v1937, 0.0
        %v3579 = vmax.f32 %v2504, 0.0
        %v3580 = vmax.f32 %v2506, 0.0
        %v3581 = vmax.f32 %v3073, 0.0
        %v3582 = vmax.f32 %v3075, 0.0
        %v3583 = vmax.f32 %v3572, 0.0
        %3584 = vst [vmem:[%s186] sm:$0xff] %v3575
        %3585 = vst [vmem:[%s186 + $0x8] sm:$0xff] %v3576
        %3586 = vst [vmem:[%s186 + $0x10] sm:$0xff] %v3577
        %3587 = vst [vmem:[%s186 + $0x18] sm:$0xff] %v3578
        %3588 = vst [vmem:[%s186 + $0x20] sm:$0xff] %v3579
        %3589 = vst [vmem:[%s186 + $0x28] sm:$0xff] %v3580
        %3590 = vst [vmem:[%s186 + $0x30] sm:$0xff] %v3581
        %3591 = vst [vmem:[%s186 + $0x38] sm:$0xff] %v3582
        %3592 = vst [vmem:[%s186 + $0x40] sm:$0xff] %v3583
        %s3593 = sand.u32 %s96, 1
        %s3594 = scalar_lea.sflag [#allocation5], %s3593
        %s3595 = sand.u32 %s96, 1
        %s3596 = smul.addr %s3595, 72
        %s3597 = scalar_lea.vmem [#allocation6], %s3596
        // Predicated region
        $region37: #{tpu_custom_call.1} parent=31 // pred_check
          %p3598 = pneg %p106
        $region38: #{tpu_custom_call.1} parent=31 // pred_check_branch
          %3600 = sbr.rel (%p3598) target = $region40
        $region39: #{tpu_custom_call.1} parent=31 // pred_region
          %s3602 = ssub.s32 1152, 1152
          %3603 = vsyncadd %s3594, %s3602
          %s3604 = smul.addr %s20, 9
          %s3605 = smul.addr %s3604, 128
          %s3606 = scalar_lea.hbm %s3, %s3605
          %s3608 = sshll.u32 %s3597, 4
          %s3609 = int_to_ptr.vmem [resolvable:$true] %s3608
          %3611 = dma.vmem_to_hbm [thread:$0]  %s3609, 1152, %s3606, %s3594
        $region40: #{tpu_custom_call.1} parent=31 // pred_fallthru
          _
      $region32: #{tpu_custom_call.1} parent=5 // pred_fallthru
        _
      %p3612 = scmp.le.s32.totalorder 2, %s15
      // Predicated region
      $region41: #{tpu_custom_call.1} parent=5 // pred_check
        %p3613 = pneg %p3612
      $region42: #{tpu_custom_call.1} parent=5 // pred_check_branch
        %3615 = sbr.rel (%p3613) target = $region44
      $region43: #{tpu_custom_call.1} parent=5 // pred_region
        %s3616 = ssub.s32 %s15, 2
        // Predicated region
        $region45: #{tpu_custom_call.1} parent=43 // pred_check
          %p3617 = pneg %p112
        $region46: #{tpu_custom_call.1} parent=43 // pred_check_branch
          %3619 = sbr.rel (%p3617) target = $region48
        $region47: #{tpu_custom_call.1} parent=43 // pred_region
          %s3620 = sand.u32 %s97, 1
          %s3621 = scalar_lea.sflag [#allocation5], %s3620
          %s3622 = sand.u32 %s97, 1
          %s3623 = smul.addr %s3622, 72
          %s3624 = scalar_lea.vmem [#allocation6], %s3623
          %3625 = dma.done %s3621, 1152
        $region48: #{tpu_custom_call.1} parent=43 // pred_fallthru
          _
      $region44: #{tpu_custom_call.1} parent=5 // pred_fallthru
        _
    $region6: #{tpu_custom_call.1} parent=1 // loop_footer
      %s19 = sadd.s32 1, %s15
    $region7: #{tpu_custom_call.1} parent=1 // loop_footer_branch
      %14 = sbr.rel target = $region3
    $region8: #{tpu_custom_call.1} parent=1 // loop_exit
      _
    %3626 = vsyncpa [#allocation4], 1
    %s3627 = scalar_lea.sflag [#allocation4], 1
    %3628 = vsyncpa %s3627, 1
    %3629 = vsyncpa [#allocation5], 1
    %s3630 = scalar_lea.sflag [#allocation5], 1
    %3631 = vsyncpa %s3630, 1

</llo_original>
